<compile_context>
chip_gen: v7x
topology: tpu7x:2x2x1
jax: 0.10.0
libtpu: 0.0.40
codegen_flags: <defaults>
</compile_context>

<pallas_src>
import functools

import jax
import jax.numpy as jnp
from jax import lax
from jax.experimental import pallas as pl
from jax.experimental.pallas import tpu as pltpu


_VMEM_SPEC = pl.BlockSpec(memory_space=pltpu.MemorySpace.VMEM)


# ----------------------------------------------------------------------------
# LSTM cell helper (PyTorch gate order [i, f, g, o])
# ----------------------------------------------------------------------------
def _lstm_cell(gates, c_prev, hidden_dim):
    H = hidden_dim
    i_g = jax.nn.sigmoid(gates[:, 0 * H:1 * H])
    f_g = jax.nn.sigmoid(gates[:, 1 * H:2 * H])
    g_g = jnp.tanh(gates[:, 2 * H:3 * H])
    o_g = jax.nn.sigmoid(gates[:, 3 * H:4 * H])
    c_new = f_g * c_prev + i_g * g_g
    h_new = o_g * jnp.tanh(c_new)
    return h_new, c_new


# ----------------------------------------------------------------------------
# Kernel 1: fused bidirectional LSTM layer -> full sequence output
# ----------------------------------------------------------------------------
def _bilstm_seq_kernel(x_ref, wih_ref, whh_f_ref, whh_b_ref, b_ref, out_ref,
                       gx_sc, hf_sc, cf_sc, hb_sc, cb_sc, *, hidden_dim):
    """x_ref: (T, B, Din)  wih_ref: (Din, 8H)  whh_*: (H, 4H)  b_ref: (1, 8H)
    out_ref: (T, B, 2H)  gx_sc: (T, B, 8H)  h*/c* scratch: (B, H)."""
    H = hidden_dim
    G = 4 * H
    T, B, Din = x_ref.shape

    # Hoisted input projection for BOTH directions: one MXU matmul + one bias add.
    x2d = x_ref[...].reshape(T * B, Din)
    gx = jnp.dot(x2d, wih_ref[...], preferred_element_type=jnp.float32) + b_ref[...]
    gx_sc[...] = gx.reshape(T, B, 2 * G)

    hf_sc[...] = jnp.zeros_like(hf_sc)
    cf_sc[...] = jnp.zeros_like(cf_sc)
    hb_sc[...] = jnp.zeros_like(hb_sc)
    cb_sc[...] = jnp.zeros_like(cb_sc)

    def step(t, carry):
        tb = T - 1 - t
        # Per-direction gate blocks are 4H-wide (lane-aligned for 4H % 128 == 0).
        gates_f = gx_sc[t, :, 0:G] + jnp.dot(
            hf_sc[...], whh_f_ref[...], preferred_element_type=jnp.float32)
        gates_b = gx_sc[tb, :, G:2 * G] + jnp.dot(
            hb_sc[...], whh_b_ref[...], preferred_element_type=jnp.float32)
        h_f, c_f = _lstm_cell(gates_f, cf_sc[...], H)
        h_b, c_b = _lstm_cell(gates_b, cb_sc[...], H)
        hf_sc[...] = h_f
        cf_sc[...] = c_f
        hb_sc[...] = h_b
        cb_sc[...] = c_b
        out_ref[t, :, 0:H] = h_f
        out_ref[tb, :, H:2 * H] = h_b
        return carry

    lax.fori_loop(0, T, step, 0, unroll=True)


# ----------------------------------------------------------------------------
# Kernel 2: fused bidirectional LSTM (last layer) + online time pooling
#           + classifier (Linear -> Linear -> Linear -> Sigmoid)
# ----------------------------------------------------------------------------
def _bilstm_pool_cls_kernel(x_ref, wih_ref, whh_f_ref, whh_b_ref, b_ref,
                            w1_ref, b1_ref, w2_ref, b2_ref, w3_ref, b3_ref,
                            out_ref,
                            gx_sc, hf_sc, cf_sc, hb_sc, cb_sc,
                            maxf_sc, maxb_sc, sumf_sc, sumb_sc, lastb_sc,
                            *, hidden_dim):
    """Last layer never materializes its (T, B, 2H) sequence output: running
    max / sum accumulators (order-invariant) live in VMEM scratch and the
    pooled (B, 6H) features feed the fused classifier directly."""
    H = hidden_dim
    G = 4 * H
    T, B, Din = x_ref.shape

    x2d = x_ref[...].reshape(T * B, Din)
    gx = jnp.dot(x2d, wih_ref[...], preferred_element_type=jnp.float32) + b_ref[...]
    gx_sc[...] = gx.reshape(T, B, 2 * G)

    hf_sc[...] = jnp.zeros_like(hf_sc)
    cf_sc[...] = jnp.zeros_like(cf_sc)
    hb_sc[...] = jnp.zeros_like(hb_sc)
    cb_sc[...] = jnp.zeros_like(cb_sc)
    maxf_sc[...] = jnp.full(maxf_sc.shape, -jnp.inf, dtype=maxf_sc.dtype)
    maxb_sc[...] = jnp.full(maxb_sc.shape, -jnp.inf, dtype=maxb_sc.dtype)
    sumf_sc[...] = jnp.zeros_like(sumf_sc)
    sumb_sc[...] = jnp.zeros_like(sumb_sc)
    lastb_sc[...] = jnp.zeros_like(lastb_sc)

    def step(t, carry):
        tb = T - 1 - t
        gates_f = gx_sc[t, :, 0:G] + jnp.dot(
            hf_sc[...], whh_f_ref[...], preferred_element_type=jnp.float32)
        gates_b = gx_sc[tb, :, G:2 * G] + jnp.dot(
            hb_sc[...], whh_b_ref[...], preferred_element_type=jnp.float32)
        h_f, c_f = _lstm_cell(gates_f, cf_sc[...], H)
        h_b, c_b = _lstm_cell(gates_b, cb_sc[...], H)
        hf_sc[...] = h_f
        cf_sc[...] = c_f
        hb_sc[...] = h_b
        cb_sc[...] = c_b
        # Online pooling: max / mean are invariant to the visiting order.
        maxf_sc[...] = jnp.maximum(maxf_sc[...], h_f)
        maxb_sc[...] = jnp.maximum(maxb_sc[...], h_b)
        sumf_sc[...] = sumf_sc[...] + h_f
        sumb_sc[...] = sumb_sc[...] + h_b
        # Backward hidden for sequence position T-1 is produced at t == 0.
        lastb_sc[...] = jnp.where(t == 0, h_b, lastb_sc[...])
        return carry

    lax.fori_loop(0, T, step, 0, unroll=True)

    inv_t = jnp.float32(1.0 / T)
    # h_t = [max | mean | last], each 2H wide ([fwd | bwd]) -> (B, 6H)
    h_t = jnp.concatenate(
        [maxf_sc[...], maxb_sc[...],
         sumf_sc[...] * inv_t, sumb_sc[...] * inv_t,
         hf_sc[...], lastb_sc[...]], axis=1)

    # Fused classifier (Dropouts are identity in eval mode).
    z1 = jnp.dot(h_t, w1_ref[...], preferred_element_type=jnp.float32) + b1_ref[...]
    z2 = jnp.dot(z1, w2_ref[...], preferred_element_type=jnp.float32) + b2_ref[...]
    z3 = jnp.dot(z2, w3_ref[...], preferred_element_type=jnp.float32) + b3_ref[...]
    out_ref[...] = jax.nn.sigmoid(z3)


# ----------------------------------------------------------------------------
# pallas_call wrappers
# ----------------------------------------------------------------------------
def bilstm_seq_layer(x_tbd, wih, whh_f, whh_b, b, hidden_dim):
    T, B, _ = x_tbd.shape
    H = hidden_dim
    kernel = functools.partial(_bilstm_seq_kernel, hidden_dim=H)
    # TODO(synk): for production T/B/Din sizes add a time-chunked grid (BlockSpec
    # over T) so the hoisted projection / gx scratch do not exceed VMEM (v7x: 64 MiB).
    return pl.pallas_call(
        kernel,
        out_shape=jax.ShapeDtypeStruct((T, B, 2 * H), jnp.float32),
        in_specs=[_VMEM_SPEC] * 5,
        out_specs=_VMEM_SPEC,
        scratch_shapes=[
            pltpu.VMEM((T, B, 8 * H), jnp.float32),   # hoisted gates (both dirs)
            pltpu.VMEM((B, H), jnp.float32),          # h fwd
            pltpu.VMEM((B, H), jnp.float32),          # c fwd
            pltpu.VMEM((B, H), jnp.float32),          # h bwd
            pltpu.VMEM((B, H), jnp.float32),          # c bwd
        ],
    )(x_tbd, wih, whh_f, whh_b, b)


def bilstm_pool_classifier(x_tbd, wih, whh_f, whh_b, b,
                           w1, b1, w2, b2, w3, b3, hidden_dim):
    T, B, _ = x_tbd.shape
    H = hidden_dim
    kernel = functools.partial(_bilstm_pool_cls_kernel, hidden_dim=H)
    return pl.pallas_call(
        kernel,
        out_shape=jax.ShapeDtypeStruct((B, 1), jnp.float32),
        in_specs=[_VMEM_SPEC] * 11,
        out_specs=_VMEM_SPEC,
        scratch_shapes=[
            pltpu.VMEM((T, B, 8 * H), jnp.float32),   # hoisted gates (both dirs)
            pltpu.VMEM((B, H), jnp.float32),          # h fwd
            pltpu.VMEM((B, H), jnp.float32),          # c fwd
            pltpu.VMEM((B, H), jnp.float32),          # h bwd
            pltpu.VMEM((B, H), jnp.float32),          # c bwd
            pltpu.VMEM((B, H), jnp.float32),          # running max fwd
            pltpu.VMEM((B, H), jnp.float32),          # running max bwd
            pltpu.VMEM((B, H), jnp.float32),          # running sum fwd
            pltpu.VMEM((B, H), jnp.float32),          # running sum bwd
            pltpu.VMEM((B, H), jnp.float32),          # bwd hidden at position T-1
        ],
    )(x_tbd, wih, whh_f, whh_b, b, w1, b1, w2, b2, w3, b3)


# ----------------------------------------------------------------------------
# Full forward pass
# ----------------------------------------------------------------------------
def lstm_net_forward(token_ids, params, hidden_dim, num_layers):
    # Embedding lookup (gather) is glue in plain JAX; embedding is frozen.
    emb = params["embedding"]                       # (V, E)
    x = emb[token_ids].astype(jnp.float32)          # (B, T, E)
    x = jnp.transpose(x, (1, 0, 2))                 # time-major (T, B, E)

    # All layers except the last produce the full (T, B, 2H) sequence.
    for layer in range(num_layers - 1):
        x = bilstm_seq_layer(x,
                             params[f"wih_l{layer}"],
                             params[f"whh_f_l{layer}"],
                             params[f"whh_b_l{layer}"],
                             params[f"b_l{layer}"],
                             hidden_dim)
        # TODO(synk): inter-layer LSTM dropout (p=0.5) omitted — identity in eval mode.

    last = num_layers - 1
    return bilstm_pool_classifier(
        x,
        params[f"wih_l{last}"], params[f"whh_f_l{last}"],
        params[f"whh_b_l{last}"], params[f"b_l{last}"],
        params["w1"], params["b1"], params["w2"], params["b2"],
        params["w3"], params["b3"],
        hidden_dim)                                  # (B, 1)


# ----------------------------------------------------------------------------
# Deterministic parameter initialization (synthetic weights, fused layout)
# ----------------------------------------------------------------------------
def init_params(key, vocab, emb_dim, hidden_dim, num_layers):
    keys = iter(jax.random.split(key, 64))
    H = hidden_dim
    p = {}
    p["embedding"] = jax.random.normal(next(keys), (vocab, emb_dim),
                                       jnp.float32) * 0.1
    for layer in range(num_layers):
        din = emb_dim if layer == 0 else 2 * H
        # Input projection fused over directions: (Din, 8H) = [fwd 4H | bwd 4H],
        # gate order [i, f, g, o] per direction; bias is the combined b_ih + b_hh.
        p[f"wih_l{layer}"] = jax.random.normal(
            next(keys), (din, 8 * H), jnp.float32) * 0.1
        p[f"whh_f_l{layer}"] = jax.random.normal(
            next(keys), (H, 4 * H), jnp.float32) * 0.1
        p[f"whh_b_l{layer}"] = jax.random.normal(
            next(keys), (H, 4 * H), jnp.float32) * 0.1
        p[f"b_l{layer}"] = jax.random.normal(
            next(keys), (1, 8 * H), jnp.float32) * 0.1
    p["w1"] = jax.random.normal(next(keys), (6 * H, 1024), jnp.float32) * 0.05
    p["b1"] = jax.random.normal(next(keys), (1, 1024), jnp.float32) * 0.01
    p["w2"] = jax.random.normal(next(keys), (1024, 512), jnp.float32) * 0.05
    p["b2"] = jax.random.normal(next(keys), (1, 512), jnp.float32) * 0.01
    p["w3"] = jax.random.normal(next(keys), (512, 1), jnp.float32) * 0.05
    p["b3"] = jax.random.normal(next(keys), (1, 1), jnp.float32) * 0.01
    return p


if __name__ == "__main__":
    B, T = 2, 8                 # batch, sequence length
    V, E = 50, 64               # vocab, embedding_dim
    H, L = 32, 2                # hidden_dim, num_layers

    key = jax.random.PRNGKey(0)
    pkey, ikey = jax.random.split(key)
    params = init_params(pkey, V, E, H, L)
    tokens = jax.random.randint(ikey, (B, T), 0, V, dtype=jnp.int32)

    out = lstm_net_forward(tokens, params, H, L)
    out = jax.block_until_ready(out)
    assert out.shape == (B, 1)
    assert bool(jnp.all(jnp.isfinite(out)))
    assert bool(jnp.all((out >= 0.0) & (out <= 1.0)))
    print("KERNEL_OK")
</pallas_src>

<mosaic_0001>
module attributes {stable_mosaic.version = 11 : i64} {
  func.func @_bilstm_seq_kernel(%arg0: memref<8x2x64xf32, #tpu.memory_space<vmem>>, %arg1: memref<64x256xf32, #tpu.memory_space<vmem>>, %arg2: memref<32x128xf32, #tpu.memory_space<vmem>>, %arg3: memref<32x128xf32, #tpu.memory_space<vmem>>, %arg4: memref<1x256xf32, #tpu.memory_space<vmem>>, %arg5: memref<8x2x64xf32, #tpu.memory_space<vmem>>, %arg6: memref<8x2x256xf32, #tpu.memory_space<vmem>>, %arg7: memref<2x32xf32, #tpu.memory_space<vmem>>, %arg8: memref<2x32xf32, #tpu.memory_space<vmem>>, %arg9: memref<2x32xf32, #tpu.memory_space<vmem>>, %arg10: memref<2x32xf32, #tpu.memory_space<vmem>>) attributes {dimension_semantics = [], scalar_prefetch = 0 : i64, scratch_operands = 5 : i64, tpu.core_type = #tpu.core_type<tc>} {
    %c0 = arith.constant 0 : index
    %c0_0 = arith.constant 0 : index
    %c0_1 = arith.constant 0 : index
    %0 = vector.load %arg0[%c0, %c0_0, %c0_1] : memref<8x2x64xf32, #tpu.memory_space<vmem>>, vector<8x2x64xf32>
    %1 = vector.shape_cast %0 : vector<8x2x64xf32> to vector<16x64xf32>
    %c0_2 = arith.constant 0 : index
    %c0_3 = arith.constant 0 : index
    %2 = vector.load %arg1[%c0_2, %c0_3] : memref<64x256xf32, #tpu.memory_space<vmem>>, vector<64x256xf32>
    %cst = arith.constant dense<0.000000e+00> : vector<16x256xf32>
    %3 = tpu.matmul %1, %2, %cst {dimension_numbers = #tpu.dot_dimension_numbers<[1], [0], [0], [1], [0, 0, 1, 1], [], []>} : vector<16x64xf32>, vector<64x256xf32>, vector<16x256xf32> -> vector<16x256xf32>
    %c0_4 = arith.constant 0 : index
    %c0_5 = arith.constant 0 : index
    %4 = vector.load %arg4[%c0_4, %c0_5] : memref<1x256xf32, #tpu.memory_space<vmem>>, vector<1x256xf32>
    %5 = vector.broadcast %4 : vector<1x256xf32> to vector<16x256xf32>
    %6 = arith.addf %3, %5 : vector<16x256xf32>
    %7 = vector.shape_cast %6 : vector<16x256xf32> to vector<8x2x256xf32>
    %c0_6 = arith.constant 0 : index
    %c0_7 = arith.constant 0 : index
    %c0_8 = arith.constant 0 : index
    %8 = vector.load %arg6[%c0_6, %c0_7, %c0_8] : memref<8x2x256xf32, #tpu.memory_space<vmem>>, vector<8x2x256xf32>
    tpu.vector_store %arg6[%c0_6, %c0_7, %c0_8], %7 {strides = array<i32>} : memref<8x2x256xf32, #tpu.memory_space<vmem>>, vector<8x2x256xf32>,
    %cst_9 = arith.constant 0.000000e+00 : f32
    %9 = vector.broadcast %cst_9 : f32 to vector<2x32xf32>
    %c0_10 = arith.constant 0 : index
    %c0_11 = arith.constant 0 : index
    %10 = vector.load %arg7[%c0_10, %c0_11] : memref<2x32xf32, #tpu.memory_space<vmem>>, vector<2x32xf32>
    tpu.vector_store %arg7[%c0_10, %c0_11], %9 {strides = array<i32>} : memref<2x32xf32, #tpu.memory_space<vmem>>, vector<2x32xf32>,
    %cst_12 = arith.constant 0.000000e+00 : f32
    %11 = vector.broadcast %cst_12 : f32 to vector<2x32xf32>
    %c0_13 = arith.constant 0 : index
    %c0_14 = arith.constant 0 : index
    %12 = vector.load %arg8[%c0_13, %c0_14] : memref<2x32xf32, #tpu.memory_space<vmem>>, vector<2x32xf32>
    tpu.vector_store %arg8[%c0_13, %c0_14], %11 {strides = array<i32>} : memref<2x32xf32, #tpu.memory_space<vmem>>, vector<2x32xf32>,
    %cst_15 = arith.constant 0.000000e+00 : f32
    %13 = vector.broadcast %cst_15 : f32 to vector<2x32xf32>
    %c0_16 = arith.constant 0 : index
    %c0_17 = arith.constant 0 : index
    %14 = vector.load %arg9[%c0_16, %c0_17] : memref<2x32xf32, #tpu.memory_space<vmem>>, vector<2x32xf32>
    tpu.vector_store %arg9[%c0_16, %c0_17], %13 {strides = array<i32>} : memref<2x32xf32, #tpu.memory_space<vmem>>, vector<2x32xf32>,
    %cst_18 = arith.constant 0.000000e+00 : f32
    %15 = vector.broadcast %cst_18 : f32 to vector<2x32xf32>
    %c0_19 = arith.constant 0 : index
    %c0_20 = arith.constant 0 : index
    %16 = vector.load %arg10[%c0_19, %c0_20] : memref<2x32xf32, #tpu.memory_space<vmem>>, vector<2x32xf32>
    tpu.vector_store %arg10[%c0_19, %c0_20], %15 {strides = array<i32>} : memref<2x32xf32, #tpu.memory_space<vmem>>, vector<2x32xf32>,
    %c0_i32 = arith.constant 0 : i32
    %c7_i32 = arith.constant 7 : i32
    %17 = arith.subi %c7_i32, %c0_i32 : i32
    %18 = arith.index_cast %c0_i32 : i32 to index
    %c0_21 = arith.constant 0 : index
    %c0_22 = arith.constant 0 : index
    %19 = vector.load %arg6[%18, %c0_21, %c0_22] : memref<8x2x256xf32, #tpu.memory_space<vmem>>, vector<1x2x128xf32>
    %20 = vector.shape_cast %19 : vector<1x2x128xf32> to vector<2x128xf32>
    %c0_23 = arith.constant 0 : index
    %c0_24 = arith.constant 0 : index
    %21 = vector.load %arg7[%c0_23, %c0_24] : memref<2x32xf32, #tpu.memory_space<vmem>>, vector<2x32xf32>
    %c0_25 = arith.constant 0 : index
    %c0_26 = arith.constant 0 : index
    %22 = vector.load %arg2[%c0_25, %c0_26] : memref<32x128xf32, #tpu.memory_space<vmem>>, vector<32x128xf32>
    %cst_27 = arith.constant dense<0.000000e+00> : vector<2x128xf32>
    %23 = tpu.matmul %21, %22, %cst_27 {dimension_numbers = #tpu.dot_dimension_numbers<[1], [0], [0], [1], [0, 0, 1, 1], [], []>} : vector<2x32xf32>, vector<32x128xf32>, vector<2x128xf32> -> vector<2x128xf32>
    %24 = arith.addf %20, %23 : vector<2x128xf32>
    %25 = arith.index_cast %17 : i32 to index
    %c0_28 = arith.constant 0 : index
    %c128 = arith.constant 128 : index
    %26 = vector.load %arg6[%25, %c0_28, %c128] : memref<8x2x256xf32, #tpu.memory_space<vmem>>, vector<1x2x128xf32>
    %27 = vector.shape_cast %26 : vector<1x2x128xf32> to vector<2x128xf32>
    %c0_29 = arith.constant 0 : index
    %c0_30 = arith.constant 0 : index
    %28 = vector.load %arg9[%c0_29, %c0_30] : memref<2x32xf32, #tpu.memory_space<vmem>>, vector<2x32xf32>
    %c0_31 = arith.constant 0 : index
    %c0_32 = arith.constant 0 : index
    %29 = vector.load %arg3[%c0_31, %c0_32] : memref<32x128xf32, #tpu.memory_space<vmem>>, vector<32x128xf32>
    %cst_33 = arith.constant dense<0.000000e+00> : vector<2x128xf32>
    %30 = tpu.matmul %28, %29, %cst_33 {dimension_numbers = #tpu.dot_dimension_numbers<[1], [0], [0], [1], [0, 0, 1, 1], [], []>} : vector<2x32xf32>, vector<32x128xf32>, vector<2x128xf32> -> vector<2x128xf32>
    %31 = arith.addf %27, %30 : vector<2x128xf32>
    %c0_34 = arith.constant 0 : index
    %c0_35 = arith.constant 0 : index
    %32 = vector.load %arg8[%c0_34, %c0_35] : memref<2x32xf32, #tpu.memory_space<vmem>>, vector<2x32xf32>
    %33 = vector.extract_strided_slice %24 {offsets = [0, 0], sizes = [2, 32], strides = [1, 1]} : vector<2x128xf32> to vector<2x32xf32>
    %34 = arith.negf %33 : vector<2x32xf32>
    %35 = math.exp %34 : vector<2x32xf32>
    %cst_36 = arith.constant 1.000000e+00 : f32
    %36 = vector.broadcast %cst_36 : f32 to vector<2x32xf32>
    %37 = arith.addf %36, %35 : vector<2x32xf32>
    %38 = arith.divf %36, %37 : vector<2x32xf32>
    %39 = vector.extract_strided_slice %24 {offsets = [0, 32], sizes = [2, 32], strides = [1, 1]} : vector<2x128xf32> to vector<2x32xf32>
    %40 = arith.negf %39 : vector<2x32xf32>
    %41 = math.exp %40 : vector<2x32xf32>
    %cst_37 = arith.constant 1.000000e+00 : f32
    %42 = vector.broadcast %cst_37 : f32 to vector<2x32xf32>
    %43 = arith.addf %42, %41 : vector<2x32xf32>
    %44 = arith.divf %42, %43 : vector<2x32xf32>
    %45 = vector.extract_strided_slice %24 {offsets = [0, 64], sizes = [2, 32], strides = [1, 1]} : vector<2x128xf32> to vector<2x32xf32>
    %46 = math.tanh %45 : vector<2x32xf32>
    %47 = vector.extract_strided_slice %24 {offsets = [0, 96], sizes = [2, 32], strides = [1, 1]} : vector<2x128xf32> to vector<2x32xf32>
    %48 = arith.negf %47 : vector<2x32xf32>
    %49 = math.exp %48 : vector<2x32xf32>
    %cst_38 = arith.constant 1.000000e+00 : f32
    %50 = vector.broadcast %cst_38 : f32 to vector<2x32xf32>
    %51 = arith.addf %50, %49 : vector<2x32xf32>
    %52 = arith.divf %50, %51 : vector<2x32xf32>
    %53 = arith.mulf %44, %32 : vector<2x32xf32>
    %54 = arith.mulf %38, %46 : vector<2x32xf32>
    %55 = arith.addf %53, %54 : vector<2x32xf32>
    %56 = math.tanh %55 : vector<2x32xf32>
    %57 = arith.mulf %52, %56 : vector<2x32xf32>
    %c0_39 = arith.constant 0 : index
    %c0_40 = arith.constant 0 : index
    %58 = vector.load %arg10[%c0_39, %c0_40] : memref<2x32xf32, #tpu.memory_space<vmem>>, vector<2x32xf32>
    %59 = vector.extract_strided_slice %31 {offsets = [0, 0], sizes = [2, 32], strides = [1, 1]} : vector<2x128xf32> to vector<2x32xf32>
    %60 = arith.negf %59 : vector<2x32xf32>
    %61 = math.exp %60 : vector<2x32xf32>
    %cst_41 = arith.constant 1.000000e+00 : f32
    %62 = vector.broadcast %cst_41 : f32 to vector<2x32xf32>
    %63 = arith.addf %62, %61 : vector<2x32xf32>
    %64 = arith.divf %62, %63 : vector<2x32xf32>
    %65 = vector.extract_strided_slice %31 {offsets = [0, 32], sizes = [2, 32], strides = [1, 1]} : vector<2x128xf32> to vector<2x32xf32>
    %66 = arith.negf %65 : vector<2x32xf32>
    %67 = math.exp %66 : vector<2x32xf32>
    %cst_42 = arith.constant 1.000000e+00 : f32
    %68 = vector.broadcast %cst_42 : f32 to vector<2x32xf32>
    %69 = arith.addf %68, %67 : vector<2x32xf32>
    %70 = arith.divf %68, %69 : vector<2x32xf32>
    %71 = vector.extract_strided_slice %31 {offsets = [0, 64], sizes = [2, 32], strides = [1, 1]} : vector<2x128xf32> to vector<2x32xf32>
    %72 = math.tanh %71 : vector<2x32xf32>
    %73 = vector.extract_strided_slice %31 {offsets = [0, 96], sizes = [2, 32], strides = [1, 1]} : vector<2x128xf32> to vector<2x32xf32>
    %74 = arith.negf %73 : vector<2x32xf32>
    %75 = math.exp %74 : vector<2x32xf32>
    %cst_43 = arith.constant 1.000000e+00 : f32
    %76 = vector.broadcast %cst_43 : f32 to vector<2x32xf32>
    %77 = arith.addf %76, %75 : vector<2x32xf32>
    %78 = arith.divf %76, %77 : vector<2x32xf32>
    %79 = arith.mulf %70, %58 : vector<2x32xf32>
    %80 = arith.mulf %64, %72 : vector<2x32xf32>
    %81 = arith.addf %79, %80 : vector<2x32xf32>
    %82 = math.tanh %81 : vector<2x32xf32>
    %83 = arith.mulf %78, %82 : vector<2x32xf32>
    %c0_44 = arith.constant 0 : index
    %c0_45 = arith.constant 0 : index
    %84 = vector.load %arg7[%c0_44, %c0_45] : memref<2x32xf32, #tpu.memory_space<vmem>>, vector<2x32xf32>
    tpu.vector_store %arg7[%c0_44, %c0_45], %57 {strides = array<i32>} : memref<2x32xf32, #tpu.memory_space<vmem>>, vector<2x32xf32>,
    %c0_46 = arith.constant 0 : index
    %c0_47 = arith.constant 0 : index
    %85 = vector.load %arg8[%c0_46, %c0_47] : memref<2x32xf32, #tpu.memory_space<vmem>>, vector<2x32xf32>
    tpu.vector_store %arg8[%c0_46, %c0_47], %55 {strides = array<i32>} : memref<2x32xf32, #tpu.memory_space<vmem>>, vector<2x32xf32>,
    %c0_48 = arith.constant 0 : index
    %c0_49 = arith.constant 0 : index
    %86 = vector.load %arg9[%c0_48, %c0_49] : memref<2x32xf32, #tpu.memory_space<vmem>>, vector<2x32xf32>
    tpu.vector_store %arg9[%c0_48, %c0_49], %83 {strides = array<i32>} : memref<2x32xf32, #tpu.memory_space<vmem>>, vector<2x32xf32>,
    %c0_50 = arith.constant 0 : index
    %c0_51 = arith.constant 0 : index
    %87 = vector.load %arg10[%c0_50, %c0_51] : memref<2x32xf32, #tpu.memory_space<vmem>>, vector<2x32xf32>
    tpu.vector_store %arg10[%c0_50, %c0_51], %81 {strides = array<i32>} : memref<2x32xf32, #tpu.memory_space<vmem>>, vector<2x32xf32>,
    %88 = arith.index_cast %c0_i32 : i32 to index
    %c0_52 = arith.constant 0 : index
    %c0_53 = arith.constant 0 : index
    %89 = vector.load %arg5[%88, %c0_52, %c0_53] : memref<8x2x64xf32, #tpu.memory_space<vmem>>, vector<1x2x32xf32>
    %90 = vector.shape_cast %89 : vector<1x2x32xf32> to vector<2x32xf32>
    %91 = vector.shape_cast %57 : vector<2x32xf32> to vector<1x2x32xf32>
    tpu.vector_store %arg5[%88, %c0_52, %c0_53], %91 {strides = array<i32>} : memref<8x2x64xf32, #tpu.memory_space<vmem>>, vector<1x2x32xf32>,
    %92 = arith.index_cast %17 : i32 to index
    %c0_54 = arith.constant 0 : index
    %c32 = arith.constant 32 : index
    %93 = vector.load %arg5[%92, %c0_54, %c32] : memref<8x2x64xf32, #tpu.memory_space<vmem>>, vector<1x2x32xf32>
    %94 = vector.shape_cast %93 : vector<1x2x32xf32> to vector<2x32xf32>
    %95 = vector.shape_cast %83 : vector<2x32xf32> to vector<1x2x32xf32>
    tpu.vector_store %arg5[%92, %c0_54, %c32], %95 {strides = array<i32>} : memref<8x2x64xf32, #tpu.memory_space<vmem>>, vector<1x2x32xf32>,
    %c1_i32 = arith.constant 1 : i32
    %c7_i32_55 = arith.constant 7 : i32
    %96 = arith.subi %c7_i32_55, %c1_i32 : i32
    %97 = arith.index_cast %c1_i32 : i32 to index
    %c0_56 = arith.constant 0 : index
    %c0_57 = arith.constant 0 : index
    %98 = vector.load %arg6[%97, %c0_56, %c0_57] : memref<8x2x256xf32, #tpu.memory_space<vmem>>, vector<1x2x128xf32>
    %99 = vector.shape_cast %98 : vector<1x2x128xf32> to vector<2x128xf32>
    %c0_58 = arith.constant 0 : index
    %c0_59 = arith.constant 0 : index
    %100 = vector.load %arg7[%c0_58, %c0_59] : memref<2x32xf32, #tpu.memory_space<vmem>>, vector<2x32xf32>
    %c0_60 = arith.constant 0 : index
    %c0_61 = arith.constant 0 : index
    %101 = vector.load %arg2[%c0_60, %c0_61] : memref<32x128xf32, #tpu.memory_space<vmem>>, vector<32x128xf32>
    %cst_62 = arith.constant dense<0.000000e+00> : vector<2x128xf32>
    %102 = tpu.matmul %100, %101, %cst_62 {dimension_numbers = #tpu.dot_dimension_numbers<[1], [0], [0], [1], [0, 0, 1, 1], [], []>} : vector<2x32xf32>, vector<32x128xf32>, vector<2x128xf32> -> vector<2x128xf32>
    %103 = arith.addf %99, %102 : vector<2x128xf32>
    %104 = arith.index_cast %96 : i32 to index
    %c0_63 = arith.constant 0 : index
    %c128_64 = arith.constant 128 : index
    %105 = vector.load %arg6[%104, %c0_63, %c128_64] : memref<8x2x256xf32, #tpu.memory_space<vmem>>, vector<1x2x128xf32>
    %106 = vector.shape_cast %105 : vector<1x2x128xf32> to vector<2x128xf32>
    %c0_65 = arith.constant 0 : index
    %c0_66 = arith.constant 0 : index
    %107 = vector.load %arg9[%c0_65, %c0_66] : memref<2x32xf32, #tpu.memory_space<vmem>>, vector<2x32xf32>
    %c0_67 = arith.constant 0 : index
    %c0_68 = arith.constant 0 : index
    %108 = vector.load %arg3[%c0_67, %c0_68] : memref<32x128xf32, #tpu.memory_space<vmem>>, vector<32x128xf32>
    %cst_69 = arith.constant dense<0.000000e+00> : vector<2x128xf32>
    %109 = tpu.matmul %107, %108, %cst_69 {dimension_numbers = #tpu.dot_dimension_numbers<[1], [0], [0], [1], [0, 0, 1, 1], [], []>} : vector<2x32xf32>, vector<32x128xf32>, vector<2x128xf32> -> vector<2x128xf32>
    %110 = arith.addf %106, %109 : vector<2x128xf32>
    %c0_70 = arith.constant 0 : index
    %c0_71 = arith.constant 0 : index
    %111 = vector.load %arg8[%c0_70, %c0_71] : memref<2x32xf32, #tpu.memory_space<vmem>>, vector<2x32xf32>
    %112 = vector.extract_strided_slice %103 {offsets = [0, 0], sizes = [2, 32], strides = [1, 1]} : vector<2x128xf32> to vector<2x32xf32>
    %113 = arith.negf %112 : vector<2x32xf32>
    %114 = math.exp %113 : vector<2x32xf32>
    %cst_72 = arith.constant 1.000000e+00 : f32
    %115 = vector.broadcast %cst_72 : f32 to vector<2x32xf32>
    %116 = arith.addf %115, %114 : vector<2x32xf32>
    %117 = arith.divf %115, %116 : vector<2x32xf32>
    %118 = vector.extract_strided_slice %103 {offsets = [0, 32], sizes = [2, 32], strides = [1, 1]} : vector<2x128xf32> to vector<2x32xf32>
    %119 = arith.negf %118 : vector<2x32xf32>
    %120 = math.exp %119 : vector<2x32xf32>
    %cst_73 = arith.constant 1.000000e+00 : f32
    %121 = vector.broadcast %cst_73 : f32 to vector<2x32xf32>
    %122 = arith.addf %121, %120 : vector<2x32xf32>
    %123 = arith.divf %121, %122 : vector<2x32xf32>
    %124 = vector.extract_strided_slice %103 {offsets = [0, 64], sizes = [2, 32], strides = [1, 1]} : vector<2x128xf32> to vector<2x32xf32>
    %125 = math.tanh %124 : vector<2x32xf32>
    %126 = vector.extract_strided_slice %103 {offsets = [0, 96], sizes = [2, 32], strides = [1, 1]} : vector<2x128xf32> to vector<2x32xf32>
    %127 = arith.negf %126 : vector<2x32xf32>
    %128 = math.exp %127 : vector<2x32xf32>
    %cst_74 = arith.constant 1.000000e+00 : f32
    %129 = vector.broadcast %cst_74 : f32 to vector<2x32xf32>
    %130 = arith.addf %129, %128 : vector<2x32xf32>
    %131 = arith.divf %129, %130 : vector<2x32xf32>
    %132 = arith.mulf %123, %111 : vector<2x32xf32>
    %133 = arith.mulf %117, %125 : vector<2x32xf32>
    %134 = arith.addf %132, %133 : vector<2x32xf32>
    %135 = math.tanh %134 : vector<2x32xf32>
    %136 = arith.mulf %131, %135 : vector<2x32xf32>
    %c0_75 = arith.constant 0 : index
    %c0_76 = arith.constant 0 : index
    %137 = vector.load %arg10[%c0_75, %c0_76] : memref<2x32xf32, #tpu.memory_space<vmem>>, vector<2x32xf32>
    %138 = vector.extract_strided_slice %110 {offsets = [0, 0], sizes = [2, 32], strides = [1, 1]} : vector<2x128xf32> to vector<2x32xf32>
    %139 = arith.negf %138 : vector<2x32xf32>
    %140 = math.exp %139 : vector<2x32xf32>
    %cst_77 = arith.constant 1.000000e+00 : f32
    %141 = vector.broadcast %cst_77 : f32 to vector<2x32xf32>
    %142 = arith.addf %141, %140 : vector<2x32xf32>
    %143 = arith.divf %141, %142 : vector<2x32xf32>
    %144 = vector.extract_strided_slice %110 {offsets = [0, 32], sizes = [2, 32], strides = [1, 1]} : vector<2x128xf32> to vector<2x32xf32>
    %145 = arith.negf %144 : vector<2x32xf32>
    %146 = math.exp %145 : vector<2x32xf32>
    %cst_78 = arith.constant 1.000000e+00 : f32
    %147 = vector.broadcast %cst_78 : f32 to vector<2x32xf32>
    %148 = arith.addf %147, %146 : vector<2x32xf32>
    %149 = arith.divf %147, %148 : vector<2x32xf32>
    %150 = vector.extract_strided_slice %110 {offsets = [0, 64], sizes = [2, 32], strides = [1, 1]} : vector<2x128xf32> to vector<2x32xf32>
    %151 = math.tanh %150 : vector<2x32xf32>
    %152 = vector.extract_strided_slice %110 {offsets = [0, 96], sizes = [2, 32], strides = [1, 1]} : vector<2x128xf32> to vector<2x32xf32>
    %153 = arith.negf %152 : vector<2x32xf32>
    %154 = math.exp %153 : vector<2x32xf32>
    %cst_79 = arith.constant 1.000000e+00 : f32
    %155 = vector.broadcast %cst_79 : f32 to vector<2x32xf32>
    %156 = arith.addf %155, %154 : vector<2x32xf32>
    %157 = arith.divf %155, %156 : vector<2x32xf32>
    %158 = arith.mulf %149, %137 : vector<2x32xf32>
    %159 = arith.mulf %143, %151 : vector<2x32xf32>
    %160 = arith.addf %158, %159 : vector<2x32xf32>
    %161 = math.tanh %160 : vector<2x32xf32>
    %162 = arith.mulf %157, %161 : vector<2x32xf32>
    %c0_80 = arith.constant 0 : index
    %c0_81 = arith.constant 0 : index
    %163 = vector.load %arg7[%c0_80, %c0_81] : memref<2x32xf32, #tpu.memory_space<vmem>>, vector<2x32xf32>
    tpu.vector_store %arg7[%c0_80, %c0_81], %136 {strides = array<i32>} : memref<2x32xf32, #tpu.memory_space<vmem>>, vector<2x32xf32>,
    %c0_82 = arith.constant 0 : index
    %c0_83 = arith.constant 0 : index
    %164 = vector.load %arg8[%c0_82, %c0_83] : memref<2x32xf32, #tpu.memory_space<vmem>>, vector<2x32xf32>
    tpu.vector_store %arg8[%c0_82, %c0_83], %134 {strides = array<i32>} : memref<2x32xf32, #tpu.memory_space<vmem>>, vector<2x32xf32>,
    %c0_84 = arith.constant 0 : index
    %c0_85 = arith.constant 0 : index
    %165 = vector.load %arg9[%c0_84, %c0_85] : memref<2x32xf32, #tpu.memory_space<vmem>>, vector<2x32xf32>
    tpu.vector_store %arg9[%c0_84, %c0_85], %162 {strides = array<i32>} : memref<2x32xf32, #tpu.memory_space<vmem>>, vector<2x32xf32>,
    %c0_86 = arith.constant 0 : index
    %c0_87 = arith.constant 0 : index
    %166 = vector.load %arg10[%c0_86, %c0_87] : memref<2x32xf32, #tpu.memory_space<vmem>>, vector<2x32xf32>
    tpu.vector_store %arg10[%c0_86, %c0_87], %160 {strides = array<i32>} : memref<2x32xf32, #tpu.memory_space<vmem>>, vector<2x32xf32>,
    %167 = arith.index_cast %c1_i32 : i32 to index
    %c0_88 = arith.constant 0 : index
    %c0_89 = arith.constant 0 : index
    %168 = vector.load %arg5[%167, %c0_88, %c0_89] : memref<8x2x64xf32, #tpu.memory_space<vmem>>, vector<1x2x32xf32>
    %169 = vector.shape_cast %168 : vector<1x2x32xf32> to vector<2x32xf32>
    %170 = vector.shape_cast %136 : vector<2x32xf32> to vector<1x2x32xf32>
    tpu.vector_store %arg5[%167, %c0_88, %c0_89], %170 {strides = array<i32>} : memref<8x2x64xf32, #tpu.memory_space<vmem>>, vector<1x2x32xf32>,
    %171 = arith.index_cast %96 : i32 to index
    %c0_90 = arith.constant 0 : index
    %c32_91 = arith.constant 32 : index
    %172 = vector.load %arg5[%171, %c0_90, %c32_91] : memref<8x2x64xf32, #tpu.memory_space<vmem>>, vector<1x2x32xf32>
    %173 = vector.shape_cast %172 : vector<1x2x32xf32> to vector<2x32xf32>
    %174 = vector.shape_cast %162 : vector<2x32xf32> to vector<1x2x32xf32>
    tpu.vector_store %arg5[%171, %c0_90, %c32_91], %174 {strides = array<i32>} : memref<8x2x64xf32, #tpu.memory_space<vmem>>, vector<1x2x32xf32>,
    %c2_i32 = arith.constant 2 : i32
    %c7_i32_92 = arith.constant 7 : i32
    %175 = arith.subi %c7_i32_92, %c2_i32 : i32
    %176 = arith.index_cast %c2_i32 : i32 to index
    %c0_93 = arith.constant 0 : index
    %c0_94 = arith.constant 0 : index
    %177 = vector.load %arg6[%176, %c0_93, %c0_94] : memref<8x2x256xf32, #tpu.memory_space<vmem>>, vector<1x2x128xf32>
    %178 = vector.shape_cast %177 : vector<1x2x128xf32> to vector<2x128xf32>
    %c0_95 = arith.constant 0 : index
    %c0_96 = arith.constant 0 : index
    %179 = vector.load %arg7[%c0_95, %c0_96] : memref<2x32xf32, #tpu.memory_space<vmem>>, vector<2x32xf32>
    %c0_97 = arith.constant 0 : index
    %c0_98 = arith.constant 0 : index
    %180 = vector.load %arg2[%c0_97, %c0_98] : memref<32x128xf32, #tpu.memory_space<vmem>>, vector<32x128xf32>
    %cst_99 = arith.constant dense<0.000000e+00> : vector<2x128xf32>
    %181 = tpu.matmul %179, %180, %cst_99 {dimension_numbers = #tpu.dot_dimension_numbers<[1], [0], [0], [1], [0, 0, 1, 1], [], []>} : vector<2x32xf32>, vector<32x128xf32>, vector<2x128xf32> -> vector<2x128xf32>
    %182 = arith.addf %178, %181 : vector<2x128xf32>
    %183 = arith.index_cast %175 : i32 to index
    %c0_100 = arith.constant 0 : index
    %c128_101 = arith.constant 128 : index
    %184 = vector.load %arg6[%183, %c0_100, %c128_101] : memref<8x2x256xf32, #tpu.memory_space<vmem>>, vector<1x2x128xf32>
    %185 = vector.shape_cast %184 : vector<1x2x128xf32> to vector<2x128xf32>
    %c0_102 = arith.constant 0 : index
    %c0_103 = arith.constant 0 : index
    %186 = vector.load %arg9[%c0_102, %c0_103] : memref<2x32xf32, #tpu.memory_space<vmem>>, vector<2x32xf32>
    %c0_104 = arith.constant 0 : index
    %c0_105 = arith.constant 0 : index
    %187 = vector.load %arg3[%c0_104, %c0_105] : memref<32x128xf32, #tpu.memory_space<vmem>>, vector<32x128xf32>
    %cst_106 = arith.constant dense<0.000000e+00> : vector<2x128xf32>
    %188 = tpu.matmul %186, %187, %cst_106 {dimension_numbers = #tpu.dot_dimension_numbers<[1], [0], [0], [1], [0, 0, 1, 1], [], []>} : vector<2x32xf32>, vector<32x128xf32>, vector<2x128xf32> -> vector<2x128xf32>
    %189 = arith.addf %185, %188 : vector<2x128xf32>
    %c0_107 = arith.constant 0 : index
    %c0_108 = arith.constant 0 : index
    %190 = vector.load %arg8[%c0_107, %c0_108] : memref<2x32xf32, #tpu.memory_space<vmem>>, vector<2x32xf32>
    %191 = vector.extract_strided_slice %182 {offsets = [0, 0], sizes = [2, 32], strides = [1, 1]} : vector<2x128xf32> to vector<2x32xf32>
    %192 = arith.negf %191 : vector<2x32xf32>
    %193 = math.exp %192 : vector<2x32xf32>
    %cst_109 = arith.constant 1.000000e+00 : f32
    %194 = vector.broadcast %cst_109 : f32 to vector<2x32xf32>
    %195 = arith.addf %194, %193 : vector<2x32xf32>
    %196 = arith.divf %194, %195 : vector<2x32xf32>
    %197 = vector.extract_strided_slice %182 {offsets = [0, 32], sizes = [2, 32], strides = [1, 1]} : vector<2x128xf32> to vector<2x32xf32>
    %198 = arith.negf %197 : vector<2x32xf32>
    %199 = math.exp %198 : vector<2x32xf32>
    %cst_110 = arith.constant 1.000000e+00 : f32
    %200 = vector.broadcast %cst_110 : f32 to vector<2x32xf32>
    %201 = arith.addf %200, %199 : vector<2x32xf32>
    %202 = arith.divf %200, %201 : vector<2x32xf32>
    %203 = vector.extract_strided_slice %182 {offsets = [0, 64], sizes = [2, 32], strides = [1, 1]} : vector<2x128xf32> to vector<2x32xf32>
    %204 = math.tanh %203 : vector<2x32xf32>
    %205 = vector.extract_strided_slice %182 {offsets = [0, 96], sizes = [2, 32], strides = [1, 1]} : vector<2x128xf32> to vector<2x32xf32>
    %206 = arith.negf %205 : vector<2x32xf32>
    %207 = math.exp %206 : vector<2x32xf32>
    %cst_111 = arith.constant 1.000000e+00 : f32
    %208 = vector.broadcast %cst_111 : f32 to vector<2x32xf32>
    %209 = arith.addf %208, %207 : vector<2x32xf32>
    %210 = arith.divf %208, %209 : vector<2x32xf32>
    %211 = arith.mulf %202, %190 : vector<2x32xf32>
    %212 = arith.mulf %196, %204 : vector<2x32xf32>
    %213 = arith.addf %211, %212 : vector<2x32xf32>
    %214 = math.tanh %213 : vector<2x32xf32>
    %215 = arith.mulf %210, %214 : vector<2x32xf32>
    %c0_112 = arith.constant 0 : index
    %c0_113 = arith.constant 0 : index
    %216 = vector.load %arg10[%c0_112, %c0_113] : memref<2x32xf32, #tpu.memory_space<vmem>>, vector<2x32xf32>
    %217 = vector.extract_strided_slice %189 {offsets = [0, 0], sizes = [2, 32], strides = [1, 1]} : vector<2x128xf32> to vector<2x32xf32>
    %218 = arith.negf %217 : vector<2x32xf32>
    %219 = math.exp %218 : vector<2x32xf32>
    %cst_114 = arith.constant 1.000000e+00 : f32
    %220 = vector.broadcast %cst_114 : f32 to vector<2x32xf32>
    %221 = arith.addf %220, %219 : vector<2x32xf32>
    %222 = arith.divf %220, %221 : vector<2x32xf32>
    %223 = vector.extract_strided_slice %189 {offsets = [0, 32], sizes = [2, 32], strides = [1, 1]} : vector<2x128xf32> to vector<2x32xf32>
    %224 = arith.negf %223 : vector<2x32xf32>
    %225 = math.exp %224 : vector<2x32xf32>
    %cst_115 = arith.constant 1.000000e+00 : f32
    %226 = vector.broadcast %cst_115 : f32 to vector<2x32xf32>
    %227 = arith.addf %226, %225 : vector<2x32xf32>
    %228 = arith.divf %226, %227 : vector<2x32xf32>
    %229 = vector.extract_strided_slice %189 {offsets = [0, 64], sizes = [2, 32], strides = [1, 1]} : vector<2x128xf32> to vector<2x32xf32>
    %230 = math.tanh %229 : vector<2x32xf32>
    %231 = vector.extract_strided_slice %189 {offsets = [0, 96], sizes = [2, 32], strides = [1, 1]} : vector<2x128xf32> to vector<2x32xf32>
    %232 = arith.negf %231 : vector<2x32xf32>
    %233 = math.exp %232 : vector<2x32xf32>
    %cst_116 = arith.constant 1.000000e+00 : f32
    %234 = vector.broadcast %cst_116 : f32 to vector<2x32xf32>
    %235 = arith.addf %234, %233 : vector<2x32xf32>
    %236 = arith.divf %234, %235 : vector<2x32xf32>
    %237 = arith.mulf %228, %216 : vector<2x32xf32>
    %238 = arith.mulf %222, %230 : vector<2x32xf32>
    %239 = arith.addf %237, %238 : vector<2x32xf32>
    %240 = math.tanh %239 : vector<2x32xf32>
    %241 = arith.mulf %236, %240 : vector<2x32xf32>
    %c0_117 = arith.constant 0 : index
    %c0_118 = arith.constant 0 : index
    %242 = vector.load %arg7[%c0_117, %c0_118] : memref<2x32xf32, #tpu.memory_space<vmem>>, vector<2x32xf32>
    tpu.vector_store %arg7[%c0_117, %c0_118], %215 {strides = array<i32>} : memref<2x32xf32, #tpu.memory_space<vmem>>, vector<2x32xf32>,
    %c0_119 = arith.constant 0 : index
    %c0_120 = arith.constant 0 : index
    %243 = vector.load %arg8[%c0_119, %c0_120] : memref<2x32xf32, #tpu.memory_space<vmem>>, vector<2x32xf32>
    tpu.vector_store %arg8[%c0_119, %c0_120], %213 {strides = array<i32>} : memref<2x32xf32, #tpu.memory_space<vmem>>, vector<2x32xf32>,
    %c0_121 = arith.constant 0 : index
    %c0_122 = arith.constant 0 : index
    %244 = vector.load %arg9[%c0_121, %c0_122] : memref<2x32xf32, #tpu.memory_space<vmem>>, vector<2x32xf32>
    tpu.vector_store %arg9[%c0_121, %c0_122], %241 {strides = array<i32>} : memref<2x32xf32, #tpu.memory_space<vmem>>, vector<2x32xf32>,
    %c0_123 = arith.constant 0 : index
    %c0_124 = arith.constant 0 : index
    %245 = vector.load %arg10[%c0_123, %c0_124] : memref<2x32xf32, #tpu.memory_space<vmem>>, vector<2x32xf32>
    tpu.vector_store %arg10[%c0_123, %c0_124], %239 {strides = array<i32>} : memref<2x32xf32, #tpu.memory_space<vmem>>, vector<2x32xf32>,
    %246 = arith.index_cast %c2_i32 : i32 to index
    %c0_125 = arith.constant 0 : index
    %c0_126 = arith.constant 0 : index
    %247 = vector.load %arg5[%246, %c0_125, %c0_126] : memref<8x2x64xf32, #tpu.memory_space<vmem>>, vector<1x2x32xf32>
    %248 = vector.shape_cast %247 : vector<1x2x32xf32> to vector<2x32xf32>
    %249 = vector.shape_cast %215 : vector<2x32xf32> to vector<1x2x32xf32>
    tpu.vector_store %arg5[%246, %c0_125, %c0_126], %249 {strides = array<i32>} : memref<8x2x64xf32, #tpu.memory_space<vmem>>, vector<1x2x32xf32>,
    %250 = arith.index_cast %175 : i32 to index
    %c0_127 = arith.constant 0 : index
    %c32_128 = arith.constant 32 : index
    %251 = vector.load %arg5[%250, %c0_127, %c32_128] : memref<8x2x64xf32, #tpu.memory_space<vmem>>, vector<1x2x32xf32>
    %252 = vector.shape_cast %251 : vector<1x2x32xf32> to vector<2x32xf32>
    %253 = vector.shape_cast %241 : vector<2x32xf32> to vector<1x2x32xf32>
    tpu.vector_store %arg5[%250, %c0_127, %c32_128], %253 {strides = array<i32>} : memref<8x2x64xf32, #tpu.memory_space<vmem>>, vector<1x2x32xf32>,
    %c3_i32 = arith.constant 3 : i32
    %c7_i32_129 = arith.constant 7 : i32
    %254 = arith.subi %c7_i32_129, %c3_i32 : i32
    %255 = arith.index_cast %c3_i32 : i32 to index
    %c0_130 = arith.constant 0 : index
    %c0_131 = arith.constant 0 : index
    %256 = vector.load %arg6[%255, %c0_130, %c0_131] : memref<8x2x256xf32, #tpu.memory_space<vmem>>, vector<1x2x128xf32>
    %257 = vector.shape_cast %256 : vector<1x2x128xf32> to vector<2x128xf32>
    %c0_132 = arith.constant 0 : index
    %c0_133 = arith.constant 0 : index
    %258 = vector.load %arg7[%c0_132, %c0_133] : memref<2x32xf32, #tpu.memory_space<vmem>>, vector<2x32xf32>
    %c0_134 = arith.constant 0 : index
    %c0_135 = arith.constant 0 : index
    %259 = vector.load %arg2[%c0_134, %c0_135] : memref<32x128xf32, #tpu.memory_space<vmem>>, vector<32x128xf32>
    %cst_136 = arith.constant dense<0.000000e+00> : vector<2x128xf32>
    %260 = tpu.matmul %258, %259, %cst_136 {dimension_numbers = #tpu.dot_dimension_numbers<[1], [0], [0], [1], [0, 0, 1, 1], [], []>} : vector<2x32xf32>, vector<32x128xf32>, vector<2x128xf32> -> vector<2x128xf32>
    %261 = arith.addf %257, %260 : vector<2x128xf32>
    %262 = arith.index_cast %254 : i32 to index
    %c0_137 = arith.constant 0 : index
    %c128_138 = arith.constant 128 : index
    %263 = vector.load %arg6[%262, %c0_137, %c128_138] : memref<8x2x256xf32, #tpu.memory_space<vmem>>, vector<1x2x128xf32>
    %264 = vector.shape_cast %263 : vector<1x2x128xf32> to vector<2x128xf32>
    %c0_139 = arith.constant 0 : index
    %c0_140 = arith.constant 0 : index
    %265 = vector.load %arg9[%c0_139, %c0_140] : memref<2x32xf32, #tpu.memory_space<vmem>>, vector<2x32xf32>
    %c0_141 = arith.constant 0 : index
    %c0_142 = arith.constant 0 : index
    %266 = vector.load %arg3[%c0_141, %c0_142] : memref<32x128xf32, #tpu.memory_space<vmem>>, vector<32x128xf32>
    %cst_143 = arith.constant dense<0.000000e+00> : vector<2x128xf32>
    %267 = tpu.matmul %265, %266, %cst_143 {dimension_numbers = #tpu.dot_dimension_numbers<[1], [0], [0], [1], [0, 0, 1, 1], [], []>} : vector<2x32xf32>, vector<32x128xf32>, vector<2x128xf32> -> vector<2x128xf32>
    %268 = arith.addf %264, %267 : vector<2x128xf32>
    %c0_144 = arith.constant 0 : index
    %c0_145 = arith.constant 0 : index
    %269 = vector.load %arg8[%c0_144, %c0_145] : memref<2x32xf32, #tpu.memory_space<vmem>>, vector<2x32xf32>
    %270 = vector.extract_strided_slice %261 {offsets = [0, 0], sizes = [2, 32], strides = [1, 1]} : vector<2x128xf32> to vector<2x32xf32>
    %271 = arith.negf %270 : vector<2x32xf32>
    %272 = math.exp %271 : vector<2x32xf32>
    %cst_146 = arith.constant 1.000000e+00 : f32
    %273 = vector.broadcast %cst_146 : f32 to vector<2x32xf32>
    %274 = arith.addf %273, %272 : vector<2x32xf32>
    %275 = arith.divf %273, %274 : vector<2x32xf32>
    %276 = vector.extract_strided_slice %261 {offsets = [0, 32], sizes = [2, 32], strides = [1, 1]} : vector<2x128xf32> to vector<2x32xf32>
    %277 = arith.negf %276 : vector<2x32xf32>
    %278 = math.exp %277 : vector<2x32xf32>
    %cst_147 = arith.constant 1.000000e+00 : f32
    %279 = vector.broadcast %cst_147 : f32 to vector<2x32xf32>
    %280 = arith.addf %279, %278 : vector<2x32xf32>
    %281 = arith.divf %279, %280 : vector<2x32xf32>
    %282 = vector.extract_strided_slice %261 {offsets = [0, 64], sizes = [2, 32], strides = [1, 1]} : vector<2x128xf32> to vector<2x32xf32>
    %283 = math.tanh %282 : vector<2x32xf32>
    %284 = vector.extract_strided_slice %261 {offsets = [0, 96], sizes = [2, 32], strides = [1, 1]} : vector<2x128xf32> to vector<2x32xf32>
    %285 = arith.negf %284 : vector<2x32xf32>
    %286 = math.exp %285 : vector<2x32xf32>
    %cst_148 = arith.constant 1.000000e+00 : f32
    %287 = vector.broadcast %cst_148 : f32 to vector<2x32xf32>
    %288 = arith.addf %287, %286 : vector<2x32xf32>
    %289 = arith.divf %287, %288 : vector<2x32xf32>
    %290 = arith.mulf %281, %269 : vector<2x32xf32>
    %291 = arith.mulf %275, %283 : vector<2x32xf32>
    %292 = arith.addf %290, %291 : vector<2x32xf32>
    %293 = math.tanh %292 : vector<2x32xf32>
    %294 = arith.mulf %289, %293 : vector<2x32xf32>
    %c0_149 = arith.constant 0 : index
    %c0_150 = arith.constant 0 : index
    %295 = vector.load %arg10[%c0_149, %c0_150] : memref<2x32xf32, #tpu.memory_space<vmem>>, vector<2x32xf32>
    %296 = vector.extract_strided_slice %268 {offsets = [0, 0], sizes = [2, 32], strides = [1, 1]} : vector<2x128xf32> to vector<2x32xf32>
    %297 = arith.negf %296 : vector<2x32xf32>
    %298 = math.exp %297 : vector<2x32xf32>
    %cst_151 = arith.constant 1.000000e+00 : f32
    %299 = vector.broadcast %cst_151 : f32 to vector<2x32xf32>
    %300 = arith.addf %299, %298 : vector<2x32xf32>
    %301 = arith.divf %299, %300 : vector<2x32xf32>
    %302 = vector.extract_strided_slice %268 {offsets = [0, 32], sizes = [2, 32], strides = [1, 1]} : vector<2x128xf32> to vector<2x32xf32>
    %303 = arith.negf %302 : vector<2x32xf32>
    %304 = math.exp %303 : vector<2x32xf32>
    %cst_152 = arith.constant 1.000000e+00 : f32
    %305 = vector.broadcast %cst_152 : f32 to vector<2x32xf32>
    %306 = arith.addf %305, %304 : vector<2x32xf32>
    %307 = arith.divf %305, %306 : vector<2x32xf32>
    %308 = vector.extract_strided_slice %268 {offsets = [0, 64], sizes = [2, 32], strides = [1, 1]} : vector<2x128xf32> to vector<2x32xf32>
    %309 = math.tanh %308 : vector<2x32xf32>
    %310 = vector.extract_strided_slice %268 {offsets = [0, 96], sizes = [2, 32], strides = [1, 1]} : vector<2x128xf32> to vector<2x32xf32>
    %311 = arith.negf %310 : vector<2x32xf32>
    %312 = math.exp %311 : vector<2x32xf32>
    %cst_153 = arith.constant 1.000000e+00 : f32
    %313 = vector.broadcast %cst_153 : f32 to vector<2x32xf32>
    %314 = arith.addf %313, %312 : vector<2x32xf32>
    %315 = arith.divf %313, %314 : vector<2x32xf32>
    %316 = arith.mulf %307, %295 : vector<2x32xf32>
    %317 = arith.mulf %301, %309 : vector<2x32xf32>
    %318 = arith.addf %316, %317 : vector<2x32xf32>
    %319 = math.tanh %318 : vector<2x32xf32>
    %320 = arith.mulf %315, %319 : vector<2x32xf32>
    %c0_154 = arith.constant 0 : index
    %c0_155 = arith.constant 0 : index
    %321 = vector.load %arg7[%c0_154, %c0_155] : memref<2x32xf32, #tpu.memory_space<vmem>>, vector<2x32xf32>
    tpu.vector_store %arg7[%c0_154, %c0_155], %294 {strides = array<i32>} : memref<2x32xf32, #tpu.memory_space<vmem>>, vector<2x32xf32>,
    %c0_156 = arith.constant 0 : index
    %c0_157 = arith.constant 0 : index
    %322 = vector.load %arg8[%c0_156, %c0_157] : memref<2x32xf32, #tpu.memory_space<vmem>>, vector<2x32xf32>
    tpu.vector_store %arg8[%c0_156, %c0_157], %292 {strides = array<i32>} : memref<2x32xf32, #tpu.memory_space<vmem>>, vector<2x32xf32>,
    %c0_158 = arith.constant 0 : index
    %c0_159 = arith.constant 0 : index
    %323 = vector.load %arg9[%c0_158, %c0_159] : memref<2x32xf32, #tpu.memory_space<vmem>>, vector<2x32xf32>
    tpu.vector_store %arg9[%c0_158, %c0_159], %320 {strides = array<i32>} : memref<2x32xf32, #tpu.memory_space<vmem>>, vector<2x32xf32>,
    %c0_160 = arith.constant 0 : index
    %c0_161 = arith.constant 0 : index
    %324 = vector.load %arg10[%c0_160, %c0_161] : memref<2x32xf32, #tpu.memory_space<vmem>>, vector<2x32xf32>
    tpu.vector_store %arg10[%c0_160, %c0_161], %318 {strides = array<i32>} : memref<2x32xf32, #tpu.memory_space<vmem>>, vector<2x32xf32>,
    %325 = arith.index_cast %c3_i32 : i32 to index
    %c0_162 = arith.constant 0 : index
    %c0_163 = arith.constant 0 : index
    %326 = vector.load %arg5[%325, %c0_162, %c0_163] : memref<8x2x64xf32, #tpu.memory_space<vmem>>, vector<1x2x32xf32>
    %327 = vector.shape_cast %326 : vector<1x2x32xf32> to vector<2x32xf32>
    %328 = vector.shape_cast %294 : vector<2x32xf32> to vector<1x2x32xf32>
    tpu.vector_store %arg5[%325, %c0_162, %c0_163], %328 {strides = array<i32>} : memref<8x2x64xf32, #tpu.memory_space<vmem>>, vector<1x2x32xf32>,
    %329 = arith.index_cast %254 : i32 to index
    %c0_164 = arith.constant 0 : index
    %c32_165 = arith.constant 32 : index
    %330 = vector.load %arg5[%329, %c0_164, %c32_165] : memref<8x2x64xf32, #tpu.memory_space<vmem>>, vector<1x2x32xf32>
    %331 = vector.shape_cast %330 : vector<1x2x32xf32> to vector<2x32xf32>
    %332 = vector.shape_cast %320 : vector<2x32xf32> to vector<1x2x32xf32>
    tpu.vector_store %arg5[%329, %c0_164, %c32_165], %332 {strides = array<i32>} : memref<8x2x64xf32, #tpu.memory_space<vmem>>, vector<1x2x32xf32>,
    %c4_i32 = arith.constant 4 : i32
    %c7_i32_166 = arith.constant 7 : i32
    %333 = arith.subi %c7_i32_166, %c4_i32 : i32
    %334 = arith.index_cast %c4_i32 : i32 to index
    %c0_167 = arith.constant 0 : index
    %c0_168 = arith.constant 0 : index
    %335 = vector.load %arg6[%334, %c0_167, %c0_168] : memref<8x2x256xf32, #tpu.memory_space<vmem>>, vector<1x2x128xf32>
    %336 = vector.shape_cast %335 : vector<1x2x128xf32> to vector<2x128xf32>
    %c0_169 = arith.constant 0 : index
    %c0_170 = arith.constant 0 : index
    %337 = vector.load %arg7[%c0_169, %c0_170] : memref<2x32xf32, #tpu.memory_space<vmem>>, vector<2x32xf32>
    %c0_171 = arith.constant 0 : index
    %c0_172 = arith.constant 0 : index
    %338 = vector.load %arg2[%c0_171, %c0_172] : memref<32x128xf32, #tpu.memory_space<vmem>>, vector<32x128xf32>
    %cst_173 = arith.constant dense<0.000000e+00> : vector<2x128xf32>
    %339 = tpu.matmul %337, %338, %cst_173 {dimension_numbers = #tpu.dot_dimension_numbers<[1], [0], [0], [1], [0, 0, 1, 1], [], []>} : vector<2x32xf32>, vector<32x128xf32>, vector<2x128xf32> -> vector<2x128xf32>
    %340 = arith.addf %336, %339 : vector<2x128xf32>
    %341 = arith.index_cast %333 : i32 to index
    %c0_174 = arith.constant 0 : index
    %c128_175 = arith.constant 128 : index
    %342 = vector.load %arg6[%341, %c0_174, %c128_175] : memref<8x2x256xf32, #tpu.memory_space<vmem>>, vector<1x2x128xf32>
    %343 = vector.shape_cast %342 : vector<1x2x128xf32> to vector<2x128xf32>
    %c0_176 = arith.constant 0 : index
    %c0_177 = arith.constant 0 : index
    %344 = vector.load %arg9[%c0_176, %c0_177] : memref<2x32xf32, #tpu.memory_space<vmem>>, vector<2x32xf32>
    %c0_178 = arith.constant 0 : index
    %c0_179 = arith.constant 0 : index
    %345 = vector.load %arg3[%c0_178, %c0_179] : memref<32x128xf32, #tpu.memory_space<vmem>>, vector<32x128xf32>
    %cst_180 = arith.constant dense<0.000000e+00> : vector<2x128xf32>
    %346 = tpu.matmul %344, %345, %cst_180 {dimension_numbers = #tpu.dot_dimension_numbers<[1], [0], [0], [1], [0, 0, 1, 1], [], []>} : vector<2x32xf32>, vector<32x128xf32>, vector<2x128xf32> -> vector<2x128xf32>
    %347 = arith.addf %343, %346 : vector<2x128xf32>
    %c0_181 = arith.constant 0 : index
    %c0_182 = arith.constant 0 : index
    %348 = vector.load %arg8[%c0_181, %c0_182] : memref<2x32xf32, #tpu.memory_space<vmem>>, vector<2x32xf32>
    %349 = vector.extract_strided_slice %340 {offsets = [0, 0], sizes = [2, 32], strides = [1, 1]} : vector<2x128xf32> to vector<2x32xf32>
    %350 = arith.negf %349 : vector<2x32xf32>
    %351 = math.exp %350 : vector<2x32xf32>
    %cst_183 = arith.constant 1.000000e+00 : f32
    %352 = vector.broadcast %cst_183 : f32 to vector<2x32xf32>
    %353 = arith.addf %352, %351 : vector<2x32xf32>
    %354 = arith.divf %352, %353 : vector<2x32xf32>
    %355 = vector.extract_strided_slice %340 {offsets = [0, 32], sizes = [2, 32], strides = [1, 1]} : vector<2x128xf32> to vector<2x32xf32>
    %356 = arith.negf %355 : vector<2x32xf32>
    %357 = math.exp %356 : vector<2x32xf32>
    %cst_184 = arith.constant 1.000000e+00 : f32
    %358 = vector.broadcast %cst_184 : f32 to vector<2x32xf32>
    %359 = arith.addf %358, %357 : vector<2x32xf32>
    %360 = arith.divf %358, %359 : vector<2x32xf32>
    %361 = vector.extract_strided_slice %340 {offsets = [0, 64], sizes = [2, 32], strides = [1, 1]} : vector<2x128xf32> to vector<2x32xf32>
    %362 = math.tanh %361 : vector<2x32xf32>
    %363 = vector.extract_strided_slice %340 {offsets = [0, 96], sizes = [2, 32], strides = [1, 1]} : vector<2x128xf32> to vector<2x32xf32>
    %364 = arith.negf %363 : vector<2x32xf32>
    %365 = math.exp %364 : vector<2x32xf32>
    %cst_185 = arith.constant 1.000000e+00 : f32
    %366 = vector.broadcast %cst_185 : f32 to vector<2x32xf32>
    %367 = arith.addf %366, %365 : vector<2x32xf32>
    %368 = arith.divf %366, %367 : vector<2x32xf32>
    %369 = arith.mulf %360, %348 : vector<2x32xf32>
    %370 = arith.mulf %354, %362 : vector<2x32xf32>
    %371 = arith.addf %369, %370 : vector<2x32xf32>
    %372 = math.tanh %371 : vector<2x32xf32>
    %373 = arith.mulf %368, %372 : vector<2x32xf32>
    %c0_186 = arith.constant 0 : index
    %c0_187 = arith.constant 0 : index
    %374 = vector.load %arg10[%c0_186, %c0_187] : memref<2x32xf32, #tpu.memory_space<vmem>>, vector<2x32xf32>
    %375 = vector.extract_strided_slice %347 {offsets = [0, 0], sizes = [2, 32], strides = [1, 1]} : vector<2x128xf32> to vector<2x32xf32>
    %376 = arith.negf %375 : vector<2x32xf32>
    %377 = math.exp %376 : vector<2x32xf32>
    %cst_188 = arith.constant 1.000000e+00 : f32
    %378 = vector.broadcast %cst_188 : f32 to vector<2x32xf32>
    %379 = arith.addf %378, %377 : vector<2x32xf32>
    %380 = arith.divf %378, %379 : vector<2x32xf32>
    %381 = vector.extract_strided_slice %347 {offsets = [0, 32], sizes = [2, 32], strides = [1, 1]} : vector<2x128xf32> to vector<2x32xf32>
    %382 = arith.negf %381 : vector<2x32xf32>
    %383 = math.exp %382 : vector<2x32xf32>
    %cst_189 = arith.constant 1.000000e+00 : f32
    %384 = vector.broadcast %cst_189 : f32 to vector<2x32xf32>
    %385 = arith.addf %384, %383 : vector<2x32xf32>
    %386 = arith.divf %384, %385 : vector<2x32xf32>
    %387 = vector.extract_strided_slice %347 {offsets = [0, 64], sizes = [2, 32], strides = [1, 1]} : vector<2x128xf32> to vector<2x32xf32>
    %388 = math.tanh %387 : vector<2x32xf32>
    %389 = vector.extract_strided_slice %347 {offsets = [0, 96], sizes = [2, 32], strides = [1, 1]} : vector<2x128xf32> to vector<2x32xf32>
    %390 = arith.negf %389 : vector<2x32xf32>
    %391 = math.exp %390 : vector<2x32xf32>
    %cst_190 = arith.constant 1.000000e+00 : f32
    %392 = vector.broadcast %cst_190 : f32 to vector<2x32xf32>
    %393 = arith.addf %392, %391 : vector<2x32xf32>
    %394 = arith.divf %392, %393 : vector<2x32xf32>
    %395 = arith.mulf %386, %374 : vector<2x32xf32>
    %396 = arith.mulf %380, %388 : vector<2x32xf32>
    %397 = arith.addf %395, %396 : vector<2x32xf32>
    %398 = math.tanh %397 : vector<2x32xf32>
    %399 = arith.mulf %394, %398 : vector<2x32xf32>
    %c0_191 = arith.constant 0 : index
    %c0_192 = arith.constant 0 : index
    %400 = vector.load %arg7[%c0_191, %c0_192] : memref<2x32xf32, #tpu.memory_space<vmem>>, vector<2x32xf32>
    tpu.vector_store %arg7[%c0_191, %c0_192], %373 {strides = array<i32>} : memref<2x32xf32, #tpu.memory_space<vmem>>, vector<2x32xf32>,
    %c0_193 = arith.constant 0 : index
    %c0_194 = arith.constant 0 : index
    %401 = vector.load %arg8[%c0_193, %c0_194] : memref<2x32xf32, #tpu.memory_space<vmem>>, vector<2x32xf32>
    tpu.vector_store %arg8[%c0_193, %c0_194], %371 {strides = array<i32>} : memref<2x32xf32, #tpu.memory_space<vmem>>, vector<2x32xf32>,
    %c0_195 = arith.constant 0 : index
    %c0_196 = arith.constant 0 : index
    %402 = vector.load %arg9[%c0_195, %c0_196] : memref<2x32xf32, #tpu.memory_space<vmem>>, vector<2x32xf32>
    tpu.vector_store %arg9[%c0_195, %c0_196], %399 {strides = array<i32>} : memref<2x32xf32, #tpu.memory_space<vmem>>, vector<2x32xf32>,
    %c0_197 = arith.constant 0 : index
    %c0_198 = arith.constant 0 : index
    %403 = vector.load %arg10[%c0_197, %c0_198] : memref<2x32xf32, #tpu.memory_space<vmem>>, vector<2x32xf32>
    tpu.vector_store %arg10[%c0_197, %c0_198], %397 {strides = array<i32>} : memref<2x32xf32, #tpu.memory_space<vmem>>, vector<2x32xf32>,
    %404 = arith.index_cast %c4_i32 : i32 to index
    %c0_199 = arith.constant 0 : index
    %c0_200 = arith.constant 0 : index
    %405 = vector.load %arg5[%404, %c0_199, %c0_200] : memref<8x2x64xf32, #tpu.memory_space<vmem>>, vector<1x2x32xf32>
    %406 = vector.shape_cast %405 : vector<1x2x32xf32> to vector<2x32xf32>
    %407 = vector.shape_cast %373 : vector<2x32xf32> to vector<1x2x32xf32>
    tpu.vector_store %arg5[%404, %c0_199, %c0_200], %407 {strides = array<i32>} : memref<8x2x64xf32, #tpu.memory_space<vmem>>, vector<1x2x32xf32>,
    %408 = arith.index_cast %333 : i32 to index
    %c0_201 = arith.constant 0 : index
    %c32_202 = arith.constant 32 : index
    %409 = vector.load %arg5[%408, %c0_201, %c32_202] : memref<8x2x64xf32, #tpu.memory_space<vmem>>, vector<1x2x32xf32>
    %410 = vector.shape_cast %409 : vector<1x2x32xf32> to vector<2x32xf32>
    %411 = vector.shape_cast %399 : vector<2x32xf32> to vector<1x2x32xf32>
    tpu.vector_store %arg5[%408, %c0_201, %c32_202], %411 {strides = array<i32>} : memref<8x2x64xf32, #tpu.memory_space<vmem>>, vector<1x2x32xf32>,
    %c5_i32 = arith.constant 5 : i32
    %c7_i32_203 = arith.constant 7 : i32
    %412 = arith.subi %c7_i32_203, %c5_i32 : i32
    %413 = arith.index_cast %c5_i32 : i32 to index
    %c0_204 = arith.constant 0 : index
    %c0_205 = arith.constant 0 : index
    %414 = vector.load %arg6[%413, %c0_204, %c0_205] : memref<8x2x256xf32, #tpu.memory_space<vmem>>, vector<1x2x128xf32>
    %415 = vector.shape_cast %414 : vector<1x2x128xf32> to vector<2x128xf32>
    %c0_206 = arith.constant 0 : index
    %c0_207 = arith.constant 0 : index
    %416 = vector.load %arg7[%c0_206, %c0_207] : memref<2x32xf32, #tpu.memory_space<vmem>>, vector<2x32xf32>
    %c0_208 = arith.constant 0 : index
    %c0_209 = arith.constant 0 : index
    %417 = vector.load %arg2[%c0_208, %c0_209] : memref<32x128xf32, #tpu.memory_space<vmem>>, vector<32x128xf32>
    %cst_210 = arith.constant dense<0.000000e+00> : vector<2x128xf32>
    %418 = tpu.matmul %416, %417, %cst_210 {dimension_numbers = #tpu.dot_dimension_numbers<[1], [0], [0], [1], [0, 0, 1, 1], [], []>} : vector<2x32xf32>, vector<32x128xf32>, vector<2x128xf32> -> vector<2x128xf32>
    %419 = arith.addf %415, %418 : vector<2x128xf32>
    %420 = arith.index_cast %412 : i32 to index
    %c0_211 = arith.constant 0 : index
    %c128_212 = arith.constant 128 : index
    %421 = vector.load %arg6[%420, %c0_211, %c128_212] : memref<8x2x256xf32, #tpu.memory_space<vmem>>, vector<1x2x128xf32>
    %422 = vector.shape_cast %421 : vector<1x2x128xf32> to vector<2x128xf32>
    %c0_213 = arith.constant 0 : index
    %c0_214 = arith.constant 0 : index
    %423 = vector.load %arg9[%c0_213, %c0_214] : memref<2x32xf32, #tpu.memory_space<vmem>>, vector<2x32xf32>
    %c0_215 = arith.constant 0 : index
    %c0_216 = arith.constant 0 : index
    %424 = vector.load %arg3[%c0_215, %c0_216] : memref<32x128xf32, #tpu.memory_space<vmem>>, vector<32x128xf32>
    %cst_217 = arith.constant dense<0.000000e+00> : vector<2x128xf32>
    %425 = tpu.matmul %423, %424, %cst_217 {dimension_numbers = #tpu.dot_dimension_numbers<[1], [0], [0], [1], [0, 0, 1, 1], [], []>} : vector<2x32xf32>, vector<32x128xf32>, vector<2x128xf32> -> vector<2x128xf32>
    %426 = arith.addf %422, %425 : vector<2x128xf32>
    %c0_218 = arith.constant 0 : index
    %c0_219 = arith.constant 0 : index
    %427 = vector.load %arg8[%c0_218, %c0_219] : memref<2x32xf32, #tpu.memory_space<vmem>>, vector<2x32xf32>
    %428 = vector.extract_strided_slice %419 {offsets = [0, 0], sizes = [2, 32], strides = [1, 1]} : vector<2x128xf32> to vector<2x32xf32>
    %429 = arith.negf %428 : vector<2x32xf32>
    %430 = math.exp %429 : vector<2x32xf32>
    %cst_220 = arith.constant 1.000000e+00 : f32
    %431 = vector.broadcast %cst_220 : f32 to vector<2x32xf32>
    %432 = arith.addf %431, %430 : vector<2x32xf32>
    %433 = arith.divf %431, %432 : vector<2x32xf32>
    %434 = vector.extract_strided_slice %419 {offsets = [0, 32], sizes = [2, 32], strides = [1, 1]} : vector<2x128xf32> to vector<2x32xf32>
    %435 = arith.negf %434 : vector<2x32xf32>
    %436 = math.exp %435 : vector<2x32xf32>
    %cst_221 = arith.constant 1.000000e+00 : f32
    %437 = vector.broadcast %cst_221 : f32 to vector<2x32xf32>
    %438 = arith.addf %437, %436 : vector<2x32xf32>
    %439 = arith.divf %437, %438 : vector<2x32xf32>
    %440 = vector.extract_strided_slice %419 {offsets = [0, 64], sizes = [2, 32], strides = [1, 1]} : vector<2x128xf32> to vector<2x32xf32>
    %441 = math.tanh %440 : vector<2x32xf32>
    %442 = vector.extract_strided_slice %419 {offsets = [0, 96], sizes = [2, 32], strides = [1, 1]} : vector<2x128xf32> to vector<2x32xf32>
    %443 = arith.negf %442 : vector<2x32xf32>
    %444 = math.exp %443 : vector<2x32xf32>
    %cst_222 = arith.constant 1.000000e+00 : f32
    %445 = vector.broadcast %cst_222 : f32 to vector<2x32xf32>
    %446 = arith.addf %445, %444 : vector<2x32xf32>
    %447 = arith.divf %445, %446 : vector<2x32xf32>
    %448 = arith.mulf %439, %427 : vector<2x32xf32>
    %449 = arith.mulf %433, %441 : vector<2x32xf32>
    %450 = arith.addf %448, %449 : vector<2x32xf32>
    %451 = math.tanh %450 : vector<2x32xf32>
    %452 = arith.mulf %447, %451 : vector<2x32xf32>
    %c0_223 = arith.constant 0 : index
    %c0_224 = arith.constant 0 : index
    %453 = vector.load %arg10[%c0_223, %c0_224] : memref<2x32xf32, #tpu.memory_space<vmem>>, vector<2x32xf32>
    %454 = vector.extract_strided_slice %426 {offsets = [0, 0], sizes = [2, 32], strides = [1, 1]} : vector<2x128xf32> to vector<2x32xf32>
    %455 = arith.negf %454 : vector<2x32xf32>
    %456 = math.exp %455 : vector<2x32xf32>
    %cst_225 = arith.constant 1.000000e+00 : f32
    %457 = vector.broadcast %cst_225 : f32 to vector<2x32xf32>
    %458 = arith.addf %457, %456 : vector<2x32xf32>
    %459 = arith.divf %457, %458 : vector<2x32xf32>
    %460 = vector.extract_strided_slice %426 {offsets = [0, 32], sizes = [2, 32], strides = [1, 1]} : vector<2x128xf32> to vector<2x32xf32>
    %461 = arith.negf %460 : vector<2x32xf32>
    %462 = math.exp %461 : vector<2x32xf32>
    %cst_226 = arith.constant 1.000000e+00 : f32
    %463 = vector.broadcast %cst_226 : f32 to vector<2x32xf32>
    %464 = arith.addf %463, %462 : vector<2x32xf32>
    %465 = arith.divf %463, %464 : vector<2x32xf32>
    %466 = vector.extract_strided_slice %426 {offsets = [0, 64], sizes = [2, 32], strides = [1, 1]} : vector<2x128xf32> to vector<2x32xf32>
    %467 = math.tanh %466 : vector<2x32xf32>
    %468 = vector.extract_strided_slice %426 {offsets = [0, 96], sizes = [2, 32], strides = [1, 1]} : vector<2x128xf32> to vector<2x32xf32>
    %469 = arith.negf %468 : vector<2x32xf32>
    %470 = math.exp %469 : vector<2x32xf32>
    %cst_227 = arith.constant 1.000000e+00 : f32
    %471 = vector.broadcast %cst_227 : f32 to vector<2x32xf32>
    %472 = arith.addf %471, %470 : vector<2x32xf32>
    %473 = arith.divf %471, %472 : vector<2x32xf32>
    %474 = arith.mulf %465, %453 : vector<2x32xf32>
    %475 = arith.mulf %459, %467 : vector<2x32xf32>
    %476 = arith.addf %474, %475 : vector<2x32xf32>
    %477 = math.tanh %476 : vector<2x32xf32>
    %478 = arith.mulf %473, %477 : vector<2x32xf32>
    %c0_228 = arith.constant 0 : index
    %c0_229 = arith.constant 0 : index
    %479 = vector.load %arg7[%c0_228, %c0_229] : memref<2x32xf32, #tpu.memory_space<vmem>>, vector<2x32xf32>
    tpu.vector_store %arg7[%c0_228, %c0_229], %452 {strides = array<i32>} : memref<2x32xf32, #tpu.memory_space<vmem>>, vector<2x32xf32>,
    %c0_230 = arith.constant 0 : index
    %c0_231 = arith.constant 0 : index
    %480 = vector.load %arg8[%c0_230, %c0_231] : memref<2x32xf32, #tpu.memory_space<vmem>>, vector<2x32xf32>
    tpu.vector_store %arg8[%c0_230, %c0_231], %450 {strides = array<i32>} : memref<2x32xf32, #tpu.memory_space<vmem>>, vector<2x32xf32>,
    %c0_232 = arith.constant 0 : index
    %c0_233 = arith.constant 0 : index
    %481 = vector.load %arg9[%c0_232, %c0_233] : memref<2x32xf32, #tpu.memory_space<vmem>>, vector<2x32xf32>
    tpu.vector_store %arg9[%c0_232, %c0_233], %478 {strides = array<i32>} : memref<2x32xf32, #tpu.memory_space<vmem>>, vector<2x32xf32>,
    %c0_234 = arith.constant 0 : index
    %c0_235 = arith.constant 0 : index
    %482 = vector.load %arg10[%c0_234, %c0_235] : memref<2x32xf32, #tpu.memory_space<vmem>>, vector<2x32xf32>
    tpu.vector_store %arg10[%c0_234, %c0_235], %476 {strides = array<i32>} : memref<2x32xf32, #tpu.memory_space<vmem>>, vector<2x32xf32>,
    %483 = arith.index_cast %c5_i32 : i32 to index
    %c0_236 = arith.constant 0 : index
    %c0_237 = arith.constant 0 : index
    %484 = vector.load %arg5[%483, %c0_236, %c0_237] : memref<8x2x64xf32, #tpu.memory_space<vmem>>, vector<1x2x32xf32>
    %485 = vector.shape_cast %484 : vector<1x2x32xf32> to vector<2x32xf32>
    %486 = vector.shape_cast %452 : vector<2x32xf32> to vector<1x2x32xf32>
    tpu.vector_store %arg5[%483, %c0_236, %c0_237], %486 {strides = array<i32>} : memref<8x2x64xf32, #tpu.memory_space<vmem>>, vector<1x2x32xf32>,
    %487 = arith.index_cast %412 : i32 to index
    %c0_238 = arith.constant 0 : index
    %c32_239 = arith.constant 32 : index
    %488 = vector.load %arg5[%487, %c0_238, %c32_239] : memref<8x2x64xf32, #tpu.memory_space<vmem>>, vector<1x2x32xf32>
    %489 = vector.shape_cast %488 : vector<1x2x32xf32> to vector<2x32xf32>
    %490 = vector.shape_cast %478 : vector<2x32xf32> to vector<1x2x32xf32>
    tpu.vector_store %arg5[%487, %c0_238, %c32_239], %490 {strides = array<i32>} : memref<8x2x64xf32, #tpu.memory_space<vmem>>, vector<1x2x32xf32>,
    %c6_i32 = arith.constant 6 : i32
    %c7_i32_240 = arith.constant 7 : i32
    %491 = arith.subi %c7_i32_240, %c6_i32 : i32
    %492 = arith.index_cast %c6_i32 : i32 to index
    %c0_241 = arith.constant 0 : index
    %c0_242 = arith.constant 0 : index
    %493 = vector.load %arg6[%492, %c0_241, %c0_242] : memref<8x2x256xf32, #tpu.memory_space<vmem>>, vector<1x2x128xf32>
    %494 = vector.shape_cast %493 : vector<1x2x128xf32> to vector<2x128xf32>
    %c0_243 = arith.constant 0 : index
    %c0_244 = arith.constant 0 : index
    %495 = vector.load %arg7[%c0_243, %c0_244] : memref<2x32xf32, #tpu.memory_space<vmem>>, vector<2x32xf32>
    %c0_245 = arith.constant 0 : index
    %c0_246 = arith.constant 0 : index
    %496 = vector.load %arg2[%c0_245, %c0_246] : memref<32x128xf32, #tpu.memory_space<vmem>>, vector<32x128xf32>
    %cst_247 = arith.constant dense<0.000000e+00> : vector<2x128xf32>
    %497 = tpu.matmul %495, %496, %cst_247 {dimension_numbers = #tpu.dot_dimension_numbers<[1], [0], [0], [1], [0, 0, 1, 1], [], []>} : vector<2x32xf32>, vector<32x128xf32>, vector<2x128xf32> -> vector<2x128xf32>
    %498 = arith.addf %494, %497 : vector<2x128xf32>
    %499 = arith.index_cast %491 : i32 to index
    %c0_248 = arith.constant 0 : index
    %c128_249 = arith.constant 128 : index
    %500 = vector.load %arg6[%499, %c0_248, %c128_249] : memref<8x2x256xf32, #tpu.memory_space<vmem>>, vector<1x2x128xf32>
    %501 = vector.shape_cast %500 : vector<1x2x128xf32> to vector<2x128xf32>
    %c0_250 = arith.constant 0 : index
    %c0_251 = arith.constant 0 : index
    %502 = vector.load %arg9[%c0_250, %c0_251] : memref<2x32xf32, #tpu.memory_space<vmem>>, vector<2x32xf32>
    %c0_252 = arith.constant 0 : index
    %c0_253 = arith.constant 0 : index
    %503 = vector.load %arg3[%c0_252, %c0_253] : memref<32x128xf32, #tpu.memory_space<vmem>>, vector<32x128xf32>
    %cst_254 = arith.constant dense<0.000000e+00> : vector<2x128xf32>
    %504 = tpu.matmul %502, %503, %cst_254 {dimension_numbers = #tpu.dot_dimension_numbers<[1], [0], [0], [1], [0, 0, 1, 1], [], []>} : vector<2x32xf32>, vector<32x128xf32>, vector<2x128xf32> -> vector<2x128xf32>
    %505 = arith.addf %501, %504 : vector<2x128xf32>
    %c0_255 = arith.constant 0 : index
    %c0_256 = arith.constant 0 : index
    %506 = vector.load %arg8[%c0_255, %c0_256] : memref<2x32xf32, #tpu.memory_space<vmem>>, vector<2x32xf32>
    %507 = vector.extract_strided_slice %498 {offsets = [0, 0], sizes = [2, 32], strides = [1, 1]} : vector<2x128xf32> to vector<2x32xf32>
    %508 = arith.negf %507 : vector<2x32xf32>
    %509 = math.exp %508 : vector<2x32xf32>
    %cst_257 = arith.constant 1.000000e+00 : f32
    %510 = vector.broadcast %cst_257 : f32 to vector<2x32xf32>
    %511 = arith.addf %510, %509 : vector<2x32xf32>
    %512 = arith.divf %510, %511 : vector<2x32xf32>
    %513 = vector.extract_strided_slice %498 {offsets = [0, 32], sizes = [2, 32], strides = [1, 1]} : vector<2x128xf32> to vector<2x32xf32>
    %514 = arith.negf %513 : vector<2x32xf32>
    %515 = math.exp %514 : vector<2x32xf32>
    %cst_258 = arith.constant 1.000000e+00 : f32
    %516 = vector.broadcast %cst_258 : f32 to vector<2x32xf32>
    %517 = arith.addf %516, %515 : vector<2x32xf32>
    %518 = arith.divf %516, %517 : vector<2x32xf32>
    %519 = vector.extract_strided_slice %498 {offsets = [0, 64], sizes = [2, 32], strides = [1, 1]} : vector<2x128xf32> to vector<2x32xf32>
    %520 = math.tanh %519 : vector<2x32xf32>
    %521 = vector.extract_strided_slice %498 {offsets = [0, 96], sizes = [2, 32], strides = [1, 1]} : vector<2x128xf32> to vector<2x32xf32>
    %522 = arith.negf %521 : vector<2x32xf32>
    %523 = math.exp %522 : vector<2x32xf32>
    %cst_259 = arith.constant 1.000000e+00 : f32
    %524 = vector.broadcast %cst_259 : f32 to vector<2x32xf32>
    %525 = arith.addf %524, %523 : vector<2x32xf32>
    %526 = arith.divf %524, %525 : vector<2x32xf32>
    %527 = arith.mulf %518, %506 : vector<2x32xf32>
    %528 = arith.mulf %512, %520 : vector<2x32xf32>
    %529 = arith.addf %527, %528 : vector<2x32xf32>
    %530 = math.tanh %529 : vector<2x32xf32>
    %531 = arith.mulf %526, %530 : vector<2x32xf32>
    %c0_260 = arith.constant 0 : index
    %c0_261 = arith.constant 0 : index
    %532 = vector.load %arg10[%c0_260, %c0_261] : memref<2x32xf32, #tpu.memory_space<vmem>>, vector<2x32xf32>
    %533 = vector.extract_strided_slice %505 {offsets = [0, 0], sizes = [2, 32], strides = [1, 1]} : vector<2x128xf32> to vector<2x32xf32>
    %534 = arith.negf %533 : vector<2x32xf32>
    %535 = math.exp %534 : vector<2x32xf32>
    %cst_262 = arith.constant 1.000000e+00 : f32
    %536 = vector.broadcast %cst_262 : f32 to vector<2x32xf32>
    %537 = arith.addf %536, %535 : vector<2x32xf32>
    %538 = arith.divf %536, %537 : vector<2x32xf32>
    %539 = vector.extract_strided_slice %505 {offsets = [0, 32], sizes = [2, 32], strides = [1, 1]} : vector<2x128xf32> to vector<2x32xf32>
    %540 = arith.negf %539 : vector<2x32xf32>
    %541 = math.exp %540 : vector<2x32xf32>
    %cst_263 = arith.constant 1.000000e+00 : f32
    %542 = vector.broadcast %cst_263 : f32 to vector<2x32xf32>
    %543 = arith.addf %542, %541 : vector<2x32xf32>
    %544 = arith.divf %542, %543 : vector<2x32xf32>
    %545 = vector.extract_strided_slice %505 {offsets = [0, 64], sizes = [2, 32], strides = [1, 1]} : vector<2x128xf32> to vector<2x32xf32>
    %546 = math.tanh %545 : vector<2x32xf32>
    %547 = vector.extract_strided_slice %505 {offsets = [0, 96], sizes = [2, 32], strides = [1, 1]} : vector<2x128xf32> to vector<2x32xf32>
    %548 = arith.negf %547 : vector<2x32xf32>
    %549 = math.exp %548 : vector<2x32xf32>
    %cst_264 = arith.constant 1.000000e+00 : f32
    %550 = vector.broadcast %cst_264 : f32 to vector<2x32xf32>
    %551 = arith.addf %550, %549 : vector<2x32xf32>
    %552 = arith.divf %550, %551 : vector<2x32xf32>
    %553 = arith.mulf %544, %532 : vector<2x32xf32>
    %554 = arith.mulf %538, %546 : vector<2x32xf32>
    %555 = arith.addf %553, %554 : vector<2x32xf32>
    %556 = math.tanh %555 : vector<2x32xf32>
    %557 = arith.mulf %552, %556 : vector<2x32xf32>
    %c0_265 = arith.constant 0 : index
    %c0_266 = arith.constant 0 : index
    %558 = vector.load %arg7[%c0_265, %c0_266] : memref<2x32xf32, #tpu.memory_space<vmem>>, vector<2x32xf32>
    tpu.vector_store %arg7[%c0_265, %c0_266], %531 {strides = array<i32>} : memref<2x32xf32, #tpu.memory_space<vmem>>, vector<2x32xf32>,
    %c0_267 = arith.constant 0 : index
    %c0_268 = arith.constant 0 : index
    %559 = vector.load %arg8[%c0_267, %c0_268] : memref<2x32xf32, #tpu.memory_space<vmem>>, vector<2x32xf32>
    tpu.vector_store %arg8[%c0_267, %c0_268], %529 {strides = array<i32>} : memref<2x32xf32, #tpu.memory_space<vmem>>, vector<2x32xf32>,
    %c0_269 = arith.constant 0 : index
    %c0_270 = arith.constant 0 : index
    %560 = vector.load %arg9[%c0_269, %c0_270] : memref<2x32xf32, #tpu.memory_space<vmem>>, vector<2x32xf32>
    tpu.vector_store %arg9[%c0_269, %c0_270], %557 {strides = array<i32>} : memref<2x32xf32, #tpu.memory_space<vmem>>, vector<2x32xf32>,
    %c0_271 = arith.constant 0 : index
    %c0_272 = arith.constant 0 : index
    %561 = vector.load %arg10[%c0_271, %c0_272] : memref<2x32xf32, #tpu.memory_space<vmem>>, vector<2x32xf32>
    tpu.vector_store %arg10[%c0_271, %c0_272], %555 {strides = array<i32>} : memref<2x32xf32, #tpu.memory_space<vmem>>, vector<2x32xf32>,
    %562 = arith.index_cast %c6_i32 : i32 to index
    %c0_273 = arith.constant 0 : index
    %c0_274 = arith.constant 0 : index
    %563 = vector.load %arg5[%562, %c0_273, %c0_274] : memref<8x2x64xf32, #tpu.memory_space<vmem>>, vector<1x2x32xf32>
    %564 = vector.shape_cast %563 : vector<1x2x32xf32> to vector<2x32xf32>
    %565 = vector.shape_cast %531 : vector<2x32xf32> to vector<1x2x32xf32>
    tpu.vector_store %arg5[%562, %c0_273, %c0_274], %565 {strides = array<i32>} : memref<8x2x64xf32, #tpu.memory_space<vmem>>, vector<1x2x32xf32>,
    %566 = arith.index_cast %491 : i32 to index
    %c0_275 = arith.constant 0 : index
    %c32_276 = arith.constant 32 : index
    %567 = vector.load %arg5[%566, %c0_275, %c32_276] : memref<8x2x64xf32, #tpu.memory_space<vmem>>, vector<1x2x32xf32>
    %568 = vector.shape_cast %567 : vector<1x2x32xf32> to vector<2x32xf32>
    %569 = vector.shape_cast %557 : vector<2x32xf32> to vector<1x2x32xf32>
    tpu.vector_store %arg5[%566, %c0_275, %c32_276], %569 {strides = array<i32>} : memref<8x2x64xf32, #tpu.memory_space<vmem>>, vector<1x2x32xf32>,
    %c7_i32_277 = arith.constant 7 : i32
    %c7_i32_278 = arith.constant 7 : i32
    %570 = arith.subi %c7_i32_278, %c7_i32_277 : i32
    %571 = arith.index_cast %c7_i32_277 : i32 to index
    %c0_279 = arith.constant 0 : index
    %c0_280 = arith.constant 0 : index
    %572 = vector.load %arg6[%571, %c0_279, %c0_280] : memref<8x2x256xf32, #tpu.memory_space<vmem>>, vector<1x2x128xf32>
    %573 = vector.shape_cast %572 : vector<1x2x128xf32> to vector<2x128xf32>
    %c0_281 = arith.constant 0 : index
    %c0_282 = arith.constant 0 : index
    %574 = vector.load %arg7[%c0_281, %c0_282] : memref<2x32xf32, #tpu.memory_space<vmem>>, vector<2x32xf32>
    %c0_283 = arith.constant 0 : index
    %c0_284 = arith.constant 0 : index
    %575 = vector.load %arg2[%c0_283, %c0_284] : memref<32x128xf32, #tpu.memory_space<vmem>>, vector<32x128xf32>
    %cst_285 = arith.constant dense<0.000000e+00> : vector<2x128xf32>
    %576 = tpu.matmul %574, %575, %cst_285 {dimension_numbers = #tpu.dot_dimension_numbers<[1], [0], [0], [1], [0, 0, 1, 1], [], []>} : vector<2x32xf32>, vector<32x128xf32>, vector<2x128xf32> -> vector<2x128xf32>
    %577 = arith.addf %573, %576 : vector<2x128xf32>
    %578 = arith.index_cast %570 : i32 to index
    %c0_286 = arith.constant 0 : index
    %c128_287 = arith.constant 128 : index
    %579 = vector.load %arg6[%578, %c0_286, %c128_287] : memref<8x2x256xf32, #tpu.memory_space<vmem>>, vector<1x2x128xf32>
    %580 = vector.shape_cast %579 : vector<1x2x128xf32> to vector<2x128xf32>
    %c0_288 = arith.constant 0 : index
    %c0_289 = arith.constant 0 : index
    %581 = vector.load %arg9[%c0_288, %c0_289] : memref<2x32xf32, #tpu.memory_space<vmem>>, vector<2x32xf32>
    %c0_290 = arith.constant 0 : index
    %c0_291 = arith.constant 0 : index
    %582 = vector.load %arg3[%c0_290, %c0_291] : memref<32x128xf32, #tpu.memory_space<vmem>>, vector<32x128xf32>
    %cst_292 = arith.constant dense<0.000000e+00> : vector<2x128xf32>
    %583 = tpu.matmul %581, %582, %cst_292 {dimension_numbers = #tpu.dot_dimension_numbers<[1], [0], [0], [1], [0, 0, 1, 1], [], []>} : vector<2x32xf32>, vector<32x128xf32>, vector<2x128xf32> -> vector<2x128xf32>
    %584 = arith.addf %580, %583 : vector<2x128xf32>
    %c0_293 = arith.constant 0 : index
    %c0_294 = arith.constant 0 : index
    %585 = vector.load %arg8[%c0_293, %c0_294] : memref<2x32xf32, #tpu.memory_space<vmem>>, vector<2x32xf32>
    %586 = vector.extract_strided_slice %577 {offsets = [0, 0], sizes = [2, 32], strides = [1, 1]} : vector<2x128xf32> to vector<2x32xf32>
    %587 = arith.negf %586 : vector<2x32xf32>
    %588 = math.exp %587 : vector<2x32xf32>
    %cst_295 = arith.constant 1.000000e+00 : f32
    %589 = vector.broadcast %cst_295 : f32 to vector<2x32xf32>
    %590 = arith.addf %589, %588 : vector<2x32xf32>
    %591 = arith.divf %589, %590 : vector<2x32xf32>
    %592 = vector.extract_strided_slice %577 {offsets = [0, 32], sizes = [2, 32], strides = [1, 1]} : vector<2x128xf32> to vector<2x32xf32>
    %593 = arith.negf %592 : vector<2x32xf32>
    %594 = math.exp %593 : vector<2x32xf32>
    %cst_296 = arith.constant 1.000000e+00 : f32
    %595 = vector.broadcast %cst_296 : f32 to vector<2x32xf32>
    %596 = arith.addf %595, %594 : vector<2x32xf32>
    %597 = arith.divf %595, %596 : vector<2x32xf32>
    %598 = vector.extract_strided_slice %577 {offsets = [0, 64], sizes = [2, 32], strides = [1, 1]} : vector<2x128xf32> to vector<2x32xf32>
    %599 = math.tanh %598 : vector<2x32xf32>
    %600 = vector.extract_strided_slice %577 {offsets = [0, 96], sizes = [2, 32], strides = [1, 1]} : vector<2x128xf32> to vector<2x32xf32>
    %601 = arith.negf %600 : vector<2x32xf32>
    %602 = math.exp %601 : vector<2x32xf32>
    %cst_297 = arith.constant 1.000000e+00 : f32
    %603 = vector.broadcast %cst_297 : f32 to vector<2x32xf32>
    %604 = arith.addf %603, %602 : vector<2x32xf32>
    %605 = arith.divf %603, %604 : vector<2x32xf32>
    %606 = arith.mulf %597, %585 : vector<2x32xf32>
    %607 = arith.mulf %591, %599 : vector<2x32xf32>
    %608 = arith.addf %606, %607 : vector<2x32xf32>
    %609 = math.tanh %608 : vector<2x32xf32>
    %610 = arith.mulf %605, %609 : vector<2x32xf32>
    %c0_298 = arith.constant 0 : index
    %c0_299 = arith.constant 0 : index
    %611 = vector.load %arg10[%c0_298, %c0_299] : memref<2x32xf32, #tpu.memory_space<vmem>>, vector<2x32xf32>
    %612 = vector.extract_strided_slice %584 {offsets = [0, 0], sizes = [2, 32], strides = [1, 1]} : vector<2x128xf32> to vector<2x32xf32>
    %613 = arith.negf %612 : vector<2x32xf32>
    %614 = math.exp %613 : vector<2x32xf32>
    %cst_300 = arith.constant 1.000000e+00 : f32
    %615 = vector.broadcast %cst_300 : f32 to vector<2x32xf32>
    %616 = arith.addf %615, %614 : vector<2x32xf32>
    %617 = arith.divf %615, %616 : vector<2x32xf32>
    %618 = vector.extract_strided_slice %584 {offsets = [0, 32], sizes = [2, 32], strides = [1, 1]} : vector<2x128xf32> to vector<2x32xf32>
    %619 = arith.negf %618 : vector<2x32xf32>
    %620 = math.exp %619 : vector<2x32xf32>
    %cst_301 = arith.constant 1.000000e+00 : f32
    %621 = vector.broadcast %cst_301 : f32 to vector<2x32xf32>
    %622 = arith.addf %621, %620 : vector<2x32xf32>
    %623 = arith.divf %621, %622 : vector<2x32xf32>
    %624 = vector.extract_strided_slice %584 {offsets = [0, 64], sizes = [2, 32], strides = [1, 1]} : vector<2x128xf32> to vector<2x32xf32>
    %625 = math.tanh %624 : vector<2x32xf32>
    %626 = vector.extract_strided_slice %584 {offsets = [0, 96], sizes = [2, 32], strides = [1, 1]} : vector<2x128xf32> to vector<2x32xf32>
    %627 = arith.negf %626 : vector<2x32xf32>
    %628 = math.exp %627 : vector<2x32xf32>
    %cst_302 = arith.constant 1.000000e+00 : f32
    %629 = vector.broadcast %cst_302 : f32 to vector<2x32xf32>
    %630 = arith.addf %629, %628 : vector<2x32xf32>
    %631 = arith.divf %629, %630 : vector<2x32xf32>
    %632 = arith.mulf %623, %611 : vector<2x32xf32>
    %633 = arith.mulf %617, %625 : vector<2x32xf32>
    %634 = arith.addf %632, %633 : vector<2x32xf32>
    %635 = math.tanh %634 : vector<2x32xf32>
    %636 = arith.mulf %631, %635 : vector<2x32xf32>
    %c0_303 = arith.constant 0 : index
    %c0_304 = arith.constant 0 : index
    %637 = vector.load %arg7[%c0_303, %c0_304] : memref<2x32xf32, #tpu.memory_space<vmem>>, vector<2x32xf32>
    tpu.vector_store %arg7[%c0_303, %c0_304], %610 {strides = array<i32>} : memref<2x32xf32, #tpu.memory_space<vmem>>, vector<2x32xf32>,
    %c0_305 = arith.constant 0 : index
    %c0_306 = arith.constant 0 : index
    %638 = vector.load %arg8[%c0_305, %c0_306] : memref<2x32xf32, #tpu.memory_space<vmem>>, vector<2x32xf32>
    tpu.vector_store %arg8[%c0_305, %c0_306], %608 {strides = array<i32>} : memref<2x32xf32, #tpu.memory_space<vmem>>, vector<2x32xf32>,
    %c0_307 = arith.constant 0 : index
    %c0_308 = arith.constant 0 : index
    %639 = vector.load %arg9[%c0_307, %c0_308] : memref<2x32xf32, #tpu.memory_space<vmem>>, vector<2x32xf32>
    tpu.vector_store %arg9[%c0_307, %c0_308], %636 {strides = array<i32>} : memref<2x32xf32, #tpu.memory_space<vmem>>, vector<2x32xf32>,
    %c0_309 = arith.constant 0 : index
    %c0_310 = arith.constant 0 : index
    %640 = vector.load %arg10[%c0_309, %c0_310] : memref<2x32xf32, #tpu.memory_space<vmem>>, vector<2x32xf32>
    tpu.vector_store %arg10[%c0_309, %c0_310], %634 {strides = array<i32>} : memref<2x32xf32, #tpu.memory_space<vmem>>, vector<2x32xf32>,
    %641 = arith.index_cast %c7_i32_277 : i32 to index
    %c0_311 = arith.constant 0 : index
    %c0_312 = arith.constant 0 : index
    %642 = vector.load %arg5[%641, %c0_311, %c0_312] : memref<8x2x64xf32, #tpu.memory_space<vmem>>, vector<1x2x32xf32>
    %643 = vector.shape_cast %642 : vector<1x2x32xf32> to vector<2x32xf32>
    %644 = vector.shape_cast %610 : vector<2x32xf32> to vector<1x2x32xf32>
    tpu.vector_store %arg5[%641, %c0_311, %c0_312], %644 {strides = array<i32>} : memref<8x2x64xf32, #tpu.memory_space<vmem>>, vector<1x2x32xf32>,
    %645 = arith.index_cast %570 : i32 to index
    %c0_313 = arith.constant 0 : index
    %c32_314 = arith.constant 32 : index
    %646 = vector.load %arg5[%645, %c0_313, %c32_314] : memref<8x2x64xf32, #tpu.memory_space<vmem>>, vector<1x2x32xf32>
    %647 = vector.shape_cast %646 : vector<1x2x32xf32> to vector<2x32xf32>
    %648 = vector.shape_cast %636 : vector<2x32xf32> to vector<1x2x32xf32>
    tpu.vector_store %arg5[%645, %c0_313, %c32_314], %648 {strides = array<i32>} : memref<8x2x64xf32, #tpu.memory_space<vmem>>, vector<1x2x32xf32>,
    %c8_i32 = arith.constant 8 : i32
    return
  }
}

</mosaic_0001>

<llo_original>
// kernel: tpu_custom_call.1
$region0: #{tpu_custom_call.1}
  #allocation0 [shape = 'u32[]', space=smem, size = 0x4, offset = 0x4, fixed_abs, tag = 'smem constant byte address 0x4 - core index']
  #allocation1 [shape = 'u32[144,128]{1,0:T(1,128)}', space=vmem, size = 0x12000, scoped, tag = 'internal scratch']
  #allocation2 [shape = 'f32[8,2,256]{2,1,0:T(2,128)}', space=vmem, size = 0x4000, scoped, tag = 'scratch operand']
  #allocation3 [shape = 'f32[2,32]{1,0:T(2,128)}', space=vmem, size = 0x400, scoped, tag = 'scratch operand']
  #allocation4 [shape = 'f32[2,32]{1,0:T(2,128)}', space=vmem, size = 0x400, scoped, tag = 'scratch operand']
  #allocation5 [shape = 'f32[2,32]{1,0:T(2,128)}', space=vmem, size = 0x400, scoped, tag = 'scratch operand']
  #allocation6 [shape = 'f32[2,32]{1,0:T(2,128)}', space=vmem, size = 0x400, scoped, tag = 'scratch operand']
  %s0 = inlined_call_operand.hbm [shape: f32[8,2,64], index: 0, kind: input, shape index: {}]
  %s1 = inlined_call_operand.hbm [shape: f32[64,256], index: 1, kind: input, shape index: {}]
  %s2 = inlined_call_operand.hbm [shape: f32[32,128], index: 2, kind: input, shape index: {}]
  %s3 = inlined_call_operand.hbm [shape: f32[32,128], index: 3, kind: input, shape index: {}]
  %s4 = inlined_call_operand.vmem [shape: f32[1,256], index: 4, kind: input, shape index: {}]
  %s5 = inlined_call_operand.hbm [shape: f32[8,2,64], index: 5, kind: output, shape index: {}]
  %s6 = sld [smem:[#allocation0]]
  $region46: #{tpu_custom_call.1} parent=0
    _
  %s8 = ssub.s32 1, %s6
  %s9 = scalar_select 0, %s8, %s6
  $region1: #{tpu_custom_call.1} parent=0
    #allocation7 [shape = 'u8[8192]{0}', space=vmem, size = 0x2000, scoped, tag = 'input window, operand 0, single buffered']
    #allocation8 [shape = 's32[1]{0}', space=sflag, size = 0x4, scoped, tag = 'scoped memory for tpu_custom_call.1']
    #allocation9 [shape = 's32[1]{0}', space=sflag, size = 0x4, scoped, tag = 'scoped memory for tpu_custom_call.1']
    #allocation10 [shape = 'u8[65536]{0}', space=vmem, size = 0x10000, scoped, tag = 'input window, operand 1, single buffered']
    #allocation11 [shape = 's32[1]{0}', space=sflag, size = 0x4, scoped, tag = 'scoped memory for tpu_custom_call.1']
    #allocation12 [shape = 'u8[16384]{0}', space=vmem, size = 0x4000, scoped, tag = 'input window, operand 2, single buffered']
    #allocation13 [shape = 'u8[16384]{0}', space=vmem, size = 0x4000, scoped, tag = 'input window, operand 3, single buffered']
    #allocation14 [shape = 's32[1]{0}', space=sflag, size = 0x4, scoped, tag = 'scoped memory for tpu_custom_call.1']
    #allocation15 [shape = 'u8[8192]{0}', space=vmem, size = 0x2000, scoped, tag = 'output window, operand 0, single buffered']
    %10 = vsyncpa [#allocation8], 0
    %11 = vsyncpa [#allocation11], 0
    %12 = vsyncpa [#allocation14], 0
    %13 = vsyncpa [#allocation9], 0
    // Predicated region
    $region2: #{tpu_custom_call.1} parent=1 // pred_check
      _
    $region3: #{tpu_custom_call.1} parent=1 // pred_check_branch
      %15 = sbr.rel (0) target = $region5
    $region4: #{tpu_custom_call.1} parent=1 // pred_region
      %s17 = ssub.s32 256, 256
      %18 = vsyncadd [#allocation8], %s17
      %s19 = sshll.u32 [#allocation7], 4
      %s20 = int_to_ptr.vmem [resolvable:$true] %s19
      %25 = dma.hbm_to_vmem [thread:$0]  %s0, 256, %s20, [#allocation8], 32, 32, 2
    $region5: #{tpu_custom_call.1} parent=1 // pred_fallthru
      _
    // Predicated region
    $region6: #{tpu_custom_call.1} parent=1 // pred_check
      _
    $region7: #{tpu_custom_call.1} parent=1 // pred_check_branch
      %27 = sbr.rel (0) target = $region9
    $region8: #{tpu_custom_call.1} parent=1 // pred_region
      %s29 = ssub.s32 2048, 2048
      %30 = vsyncadd [#allocation11], %s29
      %s31 = sshll.u32 [#allocation10], 4
      %s32 = int_to_ptr.vmem [resolvable:$true] %s31
      %37 = dma.hbm_to_vmem [thread:$0]  %s1, 2048, %s32, [#allocation11], 256, 256, 16
    $region9: #{tpu_custom_call.1} parent=1 // pred_fallthru
      _
    // Predicated region
    $region10: #{tpu_custom_call.1} parent=1 // pred_check
      _
    $region11: #{tpu_custom_call.1} parent=1 // pred_check_branch
      %39 = sbr.rel (0) target = $region13
    $region12: #{tpu_custom_call.1} parent=1 // pred_region
      %s41 = ssub.s32 512, 512
      %42 = vsyncadd [#allocation11], %s41
      %s43 = sshll.u32 [#allocation12], 4
      %s44 = int_to_ptr.vmem [resolvable:$true] %s43
      %49 = dma.hbm_to_vmem [thread:$0]  %s2, 512, %s44, [#allocation11], 128, 128, 8
    $region13: #{tpu_custom_call.1} parent=1 // pred_fallthru
      _
    // Predicated region
    $region14: #{tpu_custom_call.1} parent=1 // pred_check
      _
    $region15: #{tpu_custom_call.1} parent=1 // pred_check_branch
      %51 = sbr.rel (0) target = $region17
    $region16: #{tpu_custom_call.1} parent=1 // pred_region
      %s53 = ssub.s32 512, 512
      %54 = vsyncadd [#allocation14], %s53
      %s55 = sshll.u32 [#allocation13], 4
      %s56 = int_to_ptr.vmem [resolvable:$true] %s55
      %61 = dma.hbm_to_vmem [thread:$0]  %s3, 512, %s56, [#allocation14], 128, 128, 8
    $region17: #{tpu_custom_call.1} parent=1 // pred_fallthru
      _
    // Predicated region
    $region18: #{tpu_custom_call.1} parent=1 // pred_check
      _
    $region19: #{tpu_custom_call.1} parent=1 // pred_check_branch
      %63 = sbr.rel (0) target = $region21
    $region20: #{tpu_custom_call.1} parent=1 // pred_region
      _
    $region21: #{tpu_custom_call.1} parent=1 // pred_fallthru
      _
    // Predicated region
    $region22: #{tpu_custom_call.1} parent=1 // pred_check
      _
    $region23: #{tpu_custom_call.1} parent=1 // pred_check_branch
      %65 = sbr.rel (0) target = $region25
    $region24: #{tpu_custom_call.1} parent=1 // pred_region
      %66 = dma.done [#allocation8], 256
    $region25: #{tpu_custom_call.1} parent=1 // pred_fallthru
      _
    // Predicated region
    $region26: #{tpu_custom_call.1} parent=1 // pred_check
      _
    $region27: #{tpu_custom_call.1} parent=1 // pred_check_branch
      %68 = sbr.rel (0) target = $region29
    $region28: #{tpu_custom_call.1} parent=1 // pred_region
      %69 = dma.done [#allocation11], 2048
    $region29: #{tpu_custom_call.1} parent=1 // pred_fallthru
      _
    // Predicated region
    $region30: #{tpu_custom_call.1} parent=1 // pred_check
      _
    $region31: #{tpu_custom_call.1} parent=1 // pred_check_branch
      %71 = sbr.rel (0) target = $region33
    $region32: #{tpu_custom_call.1} parent=1 // pred_region
      %72 = dma.done [#allocation11], 512
    $region33: #{tpu_custom_call.1} parent=1 // pred_fallthru
      _
    // Predicated region
    $region34: #{tpu_custom_call.1} parent=1 // pred_check
      _
    $region35: #{tpu_custom_call.1} parent=1 // pred_check_branch
      %74 = sbr.rel (0) target = $region37
    $region36: #{tpu_custom_call.1} parent=1 // pred_region
      %75 = dma.done [#allocation14], 512
    $region37: #{tpu_custom_call.1} parent=1 // pred_fallthru
      _
    %v76 = vld [vmem:[#allocation7] sm:$0x3]
    %v77 = vld [vmem:[#allocation7 + $0x2] sm:$0x3]
    %v78 = vld [vmem:[#allocation7 + $0x4] sm:$0x3]
    %v79 = vld [vmem:[#allocation7 + $0x6] sm:$0x3]
    %v80 = vld [vmem:[#allocation7 + $0x8] sm:$0x3]
    %v81 = vld [vmem:[#allocation7 + $0xa] sm:$0x3]
    %v82 = vld [vmem:[#allocation7 + $0xc] sm:$0x3]
    %v83 = vld [vmem:[#allocation7 + $0xe] sm:$0x3]
    %v84 = vld [vmem:[#allocation10] sm:$0xff]
    %v85 = vld [vmem:[#allocation10 + $0x8] sm:$0xff]
    %v86 = vld [vmem:[#allocation10 + $0x10] sm:$0xff]
    %v87 = vld [vmem:[#allocation10 + $0x18] sm:$0xff]
    %v88 = vld [vmem:[#allocation10 + $0x20] sm:$0xff]
    %v89 = vld [vmem:[#allocation10 + $0x28] sm:$0xff]
    %v90 = vld [vmem:[#allocation10 + $0x30] sm:$0xff]
    %v91 = vld [vmem:[#allocation10 + $0x38] sm:$0xff]
    %v92 = vld [vmem:[#allocation10 + $0x40] sm:$0xff]
    %v93 = vld [vmem:[#allocation10 + $0x48] sm:$0xff]
    %v94 = vld [vmem:[#allocation10 + $0x50] sm:$0xff]
    %v95 = vld [vmem:[#allocation10 + $0x58] sm:$0xff]
    %v96 = vld [vmem:[#allocation10 + $0x60] sm:$0xff]
    %v97 = vld [vmem:[#allocation10 + $0x68] sm:$0xff]
    %v98 = vld [vmem:[#allocation10 + $0x70] sm:$0xff]
    %v99 = vld [vmem:[#allocation10 + $0x78] sm:$0xff]
    %v100 = vld [vmem:[%s4] sm:$0x3]
    %v102 = vlaneseq
    %v103 = vshrl.u32 %v102, 7
    %v104 = vsub.s32 0, %v103
    %v105 = vrot.slane %v100, %v104
    %v106 = vlaneseq
    %v107 = vshrl.u32 %v106, 7
    %v108 = vsub.s32 1, %v107
    %v109 = vrot.slane %v100, %v108
    %v120 = vcombine.low %v76, %v77
    %v121 = vcombine.low %v78, %v79
    %v123 = vunpack.c.l.s4 1983009808
    %v124 = vunpack.c.0.s8 %v123
    %v125 = vlaneseq
    %v126 = vshrl.u32 %v125, 7
    %v127 = vsub.s32 %v124, %v126
    %v128 = vrot.slane %v120, %v127
    %v130 = vunpack.c.l.s4 1983009808
    %v131 = vunpack.c.0.s8 %v130
    %v132 = vlaneseq
    %v133 = vshrl.u32 %v132, 7
    %v134 = vsub.s32 %v131, %v133
    %v135 = vrot.slane %v121, %v134
    %v136 = vcombine.low %v128, %v135
    %v137 = vcombine.low %v80, %v81
    %v138 = vcombine.low %v82, %v83
    %v140 = vunpack.c.l.s4 1983009808
    %v141 = vunpack.c.0.s8 %v140
    %v142 = vlaneseq
    %v143 = vshrl.u32 %v142, 7
    %v144 = vsub.s32 %v141, %v143
    %v145 = vrot.slane %v137, %v144
    %v147 = vunpack.c.l.s4 1983009808
    %v148 = vunpack.c.0.s8 %v147
    %v149 = vlaneseq
    %v150 = vshrl.u32 %v149, 7
    %v151 = vsub.s32 %v148, %v150
    %v152 = vrot.slane %v138, %v151
    %v153 = vcombine.low %v145, %v152
    %vm154 = vcmask 523264
    %v155 = vsel %vm154, %v136, 0
    %v157 = vsel %vm154, %v153, 0
    %159 = vmatprep.subr.mxu0 %v85
    %160 = vmatpush1.msra.mxu0 %v84
    %161 = vmatprep.subr.mxu0 %v87
    %162 = vmatpush1.msra.mxu0 %v86
    %163 = vmatprep.subr.mxu0 %v89
    %164 = vmatpush1.msra.mxu0 %v88
    %165 = vmatprep.subr.mxu0 %v91
    %166 = vmatpush1.msra.mxu0 %v90
    %167 = vmatprep.subr.mxu0 %v93
    %168 = vmatpush1.msra.mxu0 %v92
    %169 = vmatprep.subr.mxu0 %v95
    %170 = vmatpush1.msra.mxu0 %v94
    %171 = vmatprep.subr.mxu0 %v97
    %172 = vmatpush1.msra.mxu0 %v96
    %173 = vmatprep.subr.mxu0 %v99
    %174 = vmatpush1.msra.mxu0 %v98
    %175 = vmatprep.subr.mxu0 0.0
    %176 = vmatpush1.msra.mxu0 0.0
    %177 = vmatprep.subr.mxu0 0.0
    %178 = vmatpush1.msra.mxu0 0.0
    %179 = vmatprep.subr.mxu0 0.0
    %180 = vmatpush1.msra.mxu0 0.0
    %181 = vmatprep.subr.mxu0 0.0
    %182 = vmatpush1.msra.mxu0 0.0
    %183 = vmatprep.subr.mxu0 0.0
    %184 = vmatpush1.msra.mxu0 0.0
    %185 = vmatprep.subr.mxu0 0.0
    %186 = vmatpush1.msra.mxu0 0.0
    %187 = vmatprep.subr.mxu0 0.0
    %188 = vmatpush1.msra.mxu0 0.0
    %189 = vmatprep.subr.mxu0 0.0
    %190 = vmatpush1.msra.mxu0 0.0
    %191 = vmatprep.subr.mxu0 0.0
    %192 = vmatpush1.msra.mxu0 0.0
    %193 = vmatprep.subr.mxu0 0.0
    %194 = vmatpush1.msra.mxu0 0.0
    %195 = vmatprep.subr.mxu0 0.0
    %196 = vmatpush1.msra.mxu0 0.0
    %197 = vmatprep.subr.mxu0 0.0
    %198 = vmatpush1.msra.mxu0 0.0
    %199 = vmatprep.subr.mxu0 0.0
    %200 = vmatpush1.msra.mxu0 0.0
    %201 = vmatprep.subr.mxu0 0.0
    %202 = vmatpush1.msra.mxu0 0.0
    %203 = vmatprep.subr.mxu0 0.0
    %204 = vmatpush1.msra.mxu0 0.0
    %205 = vmatprep.subr.mxu0 0.0
    %206 = vmatpush1.msra.mxu0 0.0
    %207 = vmatprep.subr.mxu0 0.0
    %208 = vmatpush1.msra.mxu0 0.0
    %209 = vmatprep.subr.mxu0 0.0
    %210 = vmatpush1.msra.mxu0 0.0
    %211 = vmatprep.subr.mxu0 0.0
    %212 = vmatpush1.msra.mxu0 0.0
    %213 = vmatprep.subr.mxu0 0.0
    %214 = vmatpush1.msra.mxu0 0.0
    %215 = vmatprep.subr.mxu0 0.0
    %216 = vmatpush1.msra.mxu0 0.0
    %217 = vmatprep.subr.mxu0 0.0
    %218 = vmatpush1.msra.mxu0 0.0
    %219 = vmatprep.subr.mxu0 0.0
    %220 = vmatpush1.msra.mxu0 0.0
    %221 = vmatprep.subr.mxu0 0.0
    %222 = vmatpush1.msra.mxu0 0.0
    %223 = vmatprep.mubr.f32.mxu0 0.0
    %224 = vmatmul.mubr.f32.gmra.mrb[0].mxu0 %v155
    %v225 = vpop.f32.mrb[0].mxu0
    %v226 = vadd.f32 %v105, %v225
    %v227 = vpop.f32.mrb[0].mxu0
    %v228 = vadd.f32 %v109, %v227
    %229 = vmatprep.mubr.f32.mxu0 0.0
    %230 = vmatmul.mubr.f32.gmra.mrb[0].mxu0 %v157
    %v231 = vpop.f32.mrb[0].mxu0
    %v232 = vadd.f32 %v105, %v231
    %v233 = vpop.f32.mrb[0].mxu0
    %v234 = vadd.f32 %v109, %v233
    %235 = vdwg.mxu0
    %v240 = vcombine.low %v226, %v228
    %v241 = vcombine.high %v226, %v228
    %v243 = vunpack.c.l.s4 1983009808
    %v244 = vunpack.c.0.s8 %v243
    %v245 = vlaneseq
    %v246 = vshrl.u32 %v245, 7
    %v247 = vsub.s32 %v244, %v246
    %v248 = vrot.slane %v240, %v247
    %v250 = vunpack.c.l.s4 1983009808
    %v251 = vunpack.c.0.s8 %v250
    %v252 = vlaneseq
    %v253 = vshrl.u32 %v252, 7
    %v254 = vsub.s32 %v251, %v253
    %v255 = vrot.slane %v241, %v254
    %v256 = vcombine.high %v248, %v248
    %v257 = vcombine.high %v255, %v255
    %v258 = vcombine.low %v232, %v234
    %v259 = vcombine.high %v232, %v234
    %v261 = vunpack.c.l.s4 1983009808
    %v262 = vunpack.c.0.s8 %v261
    %v263 = vlaneseq
    %v264 = vshrl.u32 %v263, 7
    %v265 = vsub.s32 %v262, %v264
    %v266 = vrot.slane %v258, %v265
    %v268 = vunpack.c.l.s4 1983009808
    %v269 = vunpack.c.0.s8 %v268
    %v270 = vlaneseq
    %v271 = vshrl.u32 %v270, 7
    %v272 = vsub.s32 %v269, %v271
    %v273 = vrot.slane %v259, %v272
    %v274 = vcombine.high %v266, %v266
    %v275 = vcombine.high %v273, %v273
    %284 = vst [vmem:[#allocation2] sm:$0xf] %v248
    %285 = vst [vmem:[#allocation2 + $0x4] sm:$0xf] %v256
    %286 = vst [vmem:[#allocation2 + $0x8] sm:$0xf] %v255
    %287 = vst [vmem:[#allocation2 + $0xc] sm:$0xf] %v257
    %288 = vst [vmem:[#allocation2 + $0x10] sm:$0xf] %v266
    %289 = vst [vmem:[#allocation2 + $0x14] sm:$0xf] %v274
    %290 = vst [vmem:[#allocation2 + $0x18] sm:$0xf] %v273
    %291 = vst [vmem:[#allocation2 + $0x1c] sm:$0xf] %v275
    %vm292 = vcmask 254976
    %293 = vst.msk [vmem:[#allocation3] sm:$0x3] %vm292, 0.0
    %294 = vst.msk [vmem:[#allocation4] sm:$0x3] %vm292, 0.0
    %295 = vst.msk [vmem:[#allocation5] sm:$0x3] %vm292, 0.0
    %296 = vst.msk [vmem:[#allocation6] sm:$0x3] %vm292, 0.0
    %v297 = vld [vmem:[#allocation2] sm:$0x3]
    %v298 = vld [vmem:[#allocation3] sm:$0x3]
    %v299 = vld [vmem:[#allocation12] sm:$0xff]
    %v300 = vld [vmem:[#allocation12 + $0x8] sm:$0xff]
    %v301 = vld [vmem:[#allocation12 + $0x10] sm:$0xff]
    %v302 = vld [vmem:[#allocation12 + $0x18] sm:$0xff]
    %vm303 = vcmask 261120
    %v305 = vsel %vm303, %v298, 0
    %307 = vmatprep.subr.mxu0 0.0
    %308 = vmatpush1.msra.mxu0 %v299
    %309 = vmatprep.subr.mxu0 0.0
    %310 = vmatpush1.msra.mxu0 %v300
    %311 = vmatprep.subr.mxu0 0.0
    %312 = vmatpush1.msra.mxu0 %v301
    %313 = vmatprep.subr.mxu0 0.0
    %314 = vmatpush1.msra.mxu0 %v302
    %315 = vmatprep.subr.mxu0 0.0
    %316 = vmatpush1.msra.mxu0 0.0
    %317 = vmatprep.subr.mxu0 0.0
    %318 = vmatpush1.msra.mxu0 0.0
    %319 = vmatprep.subr.mxu0 0.0
    %320 = vmatpush1.msra.mxu0 0.0
    %321 = vmatprep.subr.mxu0 0.0
    %322 = vmatpush1.msra.mxu0 0.0
    %323 = vmatprep.subr.mxu0 0.0
    %324 = vmatpush1.msra.mxu0 0.0
    %325 = vmatprep.subr.mxu0 0.0
    %326 = vmatpush1.msra.mxu0 0.0
    %327 = vmatprep.subr.mxu0 0.0
    %328 = vmatpush1.msra.mxu0 0.0
    %329 = vmatprep.subr.mxu0 0.0
    %330 = vmatpush1.msra.mxu0 0.0
    %331 = vmatprep.subr.mxu0 0.0
    %332 = vmatpush1.msra.mxu0 0.0
    %333 = vmatprep.subr.mxu0 0.0
    %334 = vmatpush1.msra.mxu0 0.0
    %335 = vmatprep.subr.mxu0 0.0
    %336 = vmatpush1.msra.mxu0 0.0
    %337 = vmatprep.subr.mxu0 0.0
    %338 = vmatpush1.msra.mxu0 0.0
    %339 = vmatprep.subr.mxu0 0.0
    %340 = vmatpush1.msra.mxu0 0.0
    %341 = vmatprep.subr.mxu0 0.0
    %342 = vmatpush1.msra.mxu0 0.0
    %343 = vmatprep.subr.mxu0 0.0
    %344 = vmatpush1.msra.mxu0 0.0
    %345 = vmatprep.subr.mxu0 0.0
    %346 = vmatpush1.msra.mxu0 0.0
    %347 = vmatprep.subr.mxu0 0.0
    %348 = vmatpush1.msra.mxu0 0.0
    %349 = vmatprep.subr.mxu0 0.0
    %350 = vmatpush1.msra.mxu0 0.0
    %351 = vmatprep.subr.mxu0 0.0
    %352 = vmatpush1.msra.mxu0 0.0
    %353 = vmatprep.subr.mxu0 0.0
    %354 = vmatpush1.msra.mxu0 0.0
    %355 = vmatprep.subr.mxu0 0.0
    %356 = vmatpush1.msra.mxu0 0.0
    %357 = vmatprep.subr.mxu0 0.0
    %358 = vmatpush1.msra.mxu0 0.0
    %359 = vmatprep.subr.mxu0 0.0
    %360 = vmatpush1.msra.mxu0 0.0
    %361 = vmatprep.subr.mxu0 0.0
    %362 = vmatpush1.msra.mxu0 0.0
    %363 = vmatprep.subr.mxu0 0.0
    %364 = vmatpush1.msra.mxu0 0.0
    %365 = vmatprep.subr.mxu0 0.0
    %366 = vmatpush1.msra.mxu0 0.0
    %367 = vmatprep.subr.mxu0 0.0
    %368 = vmatpush1.msra.mxu0 0.0
    %369 = vmatprep.subr.mxu0 0.0
    %370 = vmatpush1.msra.mxu0 0.0
    %371 = vmatprep.mubr.f32.mxu0 0.0
    %372 = vmatmul.mubr.f32.gmra.mrb[0].mxu0 %v305
    %v373 = vpop.f32.mrb[0].mxu0
    %v374 = vadd.f32 0.0, %v373
    %v375 = vpop.f32.mrb[0].mxu0
    %376 = vdwg.mxu0
    %v377 = vadd.f32 %v297, %v374
    %s378 = scalar_lea.vmem [#allocation2], 28
    %v379 = vld [vmem:[%s378 + $0x2] sm:$0x3]
    %v380 = vld [vmem:[#allocation5] sm:$0x3]
    %v381 = vld [vmem:[#allocation13] sm:$0xff]
    %v382 = vld [vmem:[#allocation13 + $0x8] sm:$0xff]
    %v383 = vld [vmem:[#allocation13 + $0x10] sm:$0xff]
    %v384 = vld [vmem:[#allocation13 + $0x18] sm:$0xff]
    %v386 = vsel %vm303, %v380, 0
    %388 = vmatprep.subr.mxu0 0.0
    %389 = vmatpush1.msra.mxu0 %v381
    %390 = vmatprep.subr.mxu0 0.0
    %391 = vmatpush1.msra.mxu0 %v382
    %392 = vmatprep.subr.mxu0 0.0
    %393 = vmatpush1.msra.mxu0 %v383
    %394 = vmatprep.subr.mxu0 0.0
    %395 = vmatpush1.msra.mxu0 %v384
    %396 = vmatprep.subr.mxu0 0.0
    %397 = vmatpush1.msra.mxu0 0.0
    %398 = vmatprep.subr.mxu0 0.0
    %399 = vmatpush1.msra.mxu0 0.0
    %400 = vmatprep.subr.mxu0 0.0
    %401 = vmatpush1.msra.mxu0 0.0
    %402 = vmatprep.subr.mxu0 0.0
    %403 = vmatpush1.msra.mxu0 0.0
    %404 = vmatprep.subr.mxu0 0.0
    %405 = vmatpush1.msra.mxu0 0.0
    %406 = vmatprep.subr.mxu0 0.0
    %407 = vmatpush1.msra.mxu0 0.0
    %408 = vmatprep.subr.mxu0 0.0
    %409 = vmatpush1.msra.mxu0 0.0
    %410 = vmatprep.subr.mxu0 0.0
    %411 = vmatpush1.msra.mxu0 0.0
    %412 = vmatprep.subr.mxu0 0.0
    %413 = vmatpush1.msra.mxu0 0.0
    %414 = vmatprep.subr.mxu0 0.0
    %415 = vmatpush1.msra.mxu0 0.0
    %416 = vmatprep.subr.mxu0 0.0
    %417 = vmatpush1.msra.mxu0 0.0
    %418 = vmatprep.subr.mxu0 0.0
    %419 = vmatpush1.msra.mxu0 0.0
    %420 = vmatprep.subr.mxu0 0.0
    %421 = vmatpush1.msra.mxu0 0.0
    %422 = vmatprep.subr.mxu0 0.0
    %423 = vmatpush1.msra.mxu0 0.0
    %424 = vmatprep.subr.mxu0 0.0
    %425 = vmatpush1.msra.mxu0 0.0
    %426 = vmatprep.subr.mxu0 0.0
    %427 = vmatpush1.msra.mxu0 0.0
    %428 = vmatprep.subr.mxu0 0.0
    %429 = vmatpush1.msra.mxu0 0.0
    %430 = vmatprep.subr.mxu0 0.0
    %431 = vmatpush1.msra.mxu0 0.0
    %432 = vmatprep.subr.mxu0 0.0
    %433 = vmatpush1.msra.mxu0 0.0
    %434 = vmatprep.subr.mxu0 0.0
    %435 = vmatpush1.msra.mxu0 0.0
    %436 = vmatprep.subr.mxu0 0.0
    %437 = vmatpush1.msra.mxu0 0.0
    %438 = vmatprep.subr.mxu0 0.0
    %439 = vmatpush1.msra.mxu0 0.0
    %440 = vmatprep.subr.mxu0 0.0
    %441 = vmatpush1.msra.mxu0 0.0
    %442 = vmatprep.subr.mxu0 0.0
    %443 = vmatpush1.msra.mxu0 0.0
    %444 = vmatprep.subr.mxu0 0.0
    %445 = vmatpush1.msra.mxu0 0.0
    %446 = vmatprep.subr.mxu0 0.0
    %447 = vmatpush1.msra.mxu0 0.0
    %448 = vmatprep.subr.mxu0 0.0
    %449 = vmatpush1.msra.mxu0 0.0
    %450 = vmatprep.subr.mxu0 0.0
    %451 = vmatpush1.msra.mxu0 0.0
    %452 = vmatprep.mubr.f32.mxu0 0.0
    %453 = vmatmul.mubr.f32.gmra.mrb[0].mxu0 %v386
    %v454 = vpop.f32.mrb[0].mxu0
    %v455 = vadd.f32 0.0, %v454
    %v456 = vpop.f32.mrb[0].mxu0
    %457 = vdwg.mxu0
    %v458 = vadd.f32 %v379, %v455
    %v459 = vld [vmem:[#allocation4] sm:$0x3]
    %v460 = vxor.u32 %v377, 2147483648
    %v461 = vmul.f32 %v460, 1.442695
    %v462 = vpow.pop %v461
    %v463 = vadd.f32 %v462, 1.0
    %v464 = vrcp.pop %v463
    %v465 = vmul.f32 1.0, %v464
    %v466 = vtanh.pop %v377
    %v469 = vunpack.c.l.s4 1983009808
    %v470 = vunpack.c.0.s8 %v469
    %v471 = vlaneseq
    %v472 = vshrl.u32 %v471, 7
    %v473 = vsub.s32 %v470, %v472
    %v474 = vrot.slane %v459, %v473
    %475 = vrot.lane.b32.xlu0 %v474, 32
    %v476 = vpop.permute.xlu0 %475
    %v478 = vmul.f32 %v465, %v476
    %480 = vrot.lane.b32.xlu0 %v466, 64
    %v481 = vpop.permute.xlu0 %480
    %v483 = vmul.f32 %v465, %v481
    %485 = vrot.lane.b32.xlu0 %v483, 32
    %v486 = vpop.permute.xlu0 %485
    %v488 = vadd.f32 %v478, %v486
    %v489 = vtanh.pop %v488
    %491 = vrot.lane.b32.xlu0 %v489, 64
    %v492 = vpop.permute.xlu0 %491
    %v494 = vmul.f32 %v465, %v492
    %v495 = vld [vmem:[#allocation6] sm:$0x3]
    %v496 = vxor.u32 %v458, 2147483648
    %v497 = vmul.f32 %v496, 1.442695
    %v498 = vpow.pop %v497
    %v499 = vadd.f32 %v498, 1.0
    %v500 = vrcp.pop %v499
    %v501 = vmul.f32 1.0, %v500
    %v502 = vtanh.pop %v458
    %v505 = vunpack.c.l.s4 1983009808
    %v506 = vunpack.c.0.s8 %v505
    %v507 = vlaneseq
    %v508 = vshrl.u32 %v507, 7
    %v509 = vsub.s32 %v506, %v508
    %v510 = vrot.slane %v495, %v509
    %511 = vrot.lane.b32.xlu0 %v510, 32
    %v512 = vpop.permute.xlu0 %511
    %v514 = vmul.f32 %v501, %v512
    %516 = vrot.lane.b32.xlu0 %v502, 64
    %v517 = vpop.permute.xlu0 %516
    %v519 = vmul.f32 %v501, %v517
    %521 = vrot.lane.b32.xlu0 %v519, 32
    %v522 = vpop.permute.xlu0 %521
    %v524 = vadd.f32 %v514, %v522
    %v525 = vtanh.pop %v524
    %527 = vrot.lane.b32.xlu0 %v525, 64
    %v528 = vpop.permute.xlu0 %527
    %v530 = vmul.f32 %v501, %v528
    %v533 = vunpack.c.l.s4 1983009808
    %v534 = vunpack.c.0.s8 %v533
    %v535 = vlaneseq
    %v536 = vshrl.u32 %v535, 7
    %v537 = vsub.s32 %v534, %v536
    %v538 = vrot.slane %v494, %v537
    %539 = vrot.lane.b32.xlu0 %v538, 32
    %v540 = vpop.permute.xlu0 %539
    %542 = vst.msk [vmem:[#allocation3] sm:$0x3] %vm292, %v540
    %v545 = vunpack.c.l.s4 1983009808
    %v546 = vunpack.c.0.s8 %v545
    %v547 = vlaneseq
    %v548 = vshrl.u32 %v547, 7
    %v549 = vsub.s32 %v546, %v548
    %v550 = vrot.slane %v488, %v549
    %551 = vrot.lane.b32.xlu0 %v550, 96
    %v552 = vpop.permute.xlu0 %551
    %554 = vst.msk [vmem:[#allocation4] sm:$0x3] %vm292, %v552
    %v557 = vunpack.c.l.s4 1983009808
    %v558 = vunpack.c.0.s8 %v557
    %v559 = vlaneseq
    %v560 = vshrl.u32 %v559, 7
    %v561 = vsub.s32 %v558, %v560
    %v562 = vrot.slane %v530, %v561
    %563 = vrot.lane.b32.xlu0 %v562, 32
    %v564 = vpop.permute.xlu0 %563
    %566 = vst.msk [vmem:[#allocation5] sm:$0x3] %vm292, %v564
    %v569 = vunpack.c.l.s4 1983009808
    %v570 = vunpack.c.0.s8 %v569
    %v571 = vlaneseq
    %v572 = vshrl.u32 %v571, 7
    %v573 = vsub.s32 %v570, %v572
    %v574 = vrot.slane %v524, %v573
    %575 = vrot.lane.b32.xlu0 %v574, 96
    %v576 = vpop.permute.xlu0 %575
    %578 = vst.msk [vmem:[#allocation6] sm:$0x3] %vm292, %v576
    %579 = vst.msk [vmem:[#allocation15] sm:$0x3] %vm292, %v540
    %580 = vrot.lane.b32.xlu0 %v562, 64
    %v581 = vpop.permute.xlu0 %580
    %s583 = scalar_lea.vmem [#allocation15], 14
    %vm584 = vcmask 517376
    %585 = vst.msk [vmem:[%s583] sm:$0x3] %vm584, %v581
    %s586 = scalar_lea.vmem [#allocation2], 4
    %v587 = vld [vmem:[%s586] sm:$0x3]
    %v588 = vld [vmem:[#allocation3] sm:$0x3]
    %v589 = vld [vmem:[#allocation12] sm:$0xff]
    %v590 = vld [vmem:[#allocation12 + $0x8] sm:$0xff]
    %v591 = vld [vmem:[#allocation12 + $0x10] sm:$0xff]
    %v592 = vld [vmem:[#allocation12 + $0x18] sm:$0xff]
    %v594 = vsel %vm303, %v588, 0
    %596 = vmatprep.subr.mxu0 0.0
    %597 = vmatpush1.msra.mxu0 %v589
    %598 = vmatprep.subr.mxu0 0.0
    %599 = vmatpush1.msra.mxu0 %v590
    %600 = vmatprep.subr.mxu0 0.0
    %601 = vmatpush1.msra.mxu0 %v591
    %602 = vmatprep.subr.mxu0 0.0
    %603 = vmatpush1.msra.mxu0 %v592
    %604 = vmatprep.subr.mxu0 0.0
    %605 = vmatpush1.msra.mxu0 0.0
    %606 = vmatprep.subr.mxu0 0.0
    %607 = vmatpush1.msra.mxu0 0.0
    %608 = vmatprep.subr.mxu0 0.0
    %609 = vmatpush1.msra.mxu0 0.0
    %610 = vmatprep.subr.mxu0 0.0
    %611 = vmatpush1.msra.mxu0 0.0
    %612 = vmatprep.subr.mxu0 0.0
    %613 = vmatpush1.msra.mxu0 0.0
    %614 = vmatprep.subr.mxu0 0.0
    %615 = vmatpush1.msra.mxu0 0.0
    %616 = vmatprep.subr.mxu0 0.0
    %617 = vmatpush1.msra.mxu0 0.0
    %618 = vmatprep.subr.mxu0 0.0
    %619 = vmatpush1.msra.mxu0 0.0
    %620 = vmatprep.subr.mxu0 0.0
    %621 = vmatpush1.msra.mxu0 0.0
    %622 = vmatprep.subr.mxu0 0.0
    %623 = vmatpush1.msra.mxu0 0.0
    %624 = vmatprep.subr.mxu0 0.0
    %625 = vmatpush1.msra.mxu0 0.0
    %626 = vmatprep.subr.mxu0 0.0
    %627 = vmatpush1.msra.mxu0 0.0
    %628 = vmatprep.subr.mxu0 0.0
    %629 = vmatpush1.msra.mxu0 0.0
    %630 = vmatprep.subr.mxu0 0.0
    %631 = vmatpush1.msra.mxu0 0.0
    %632 = vmatprep.subr.mxu0 0.0
    %633 = vmatpush1.msra.mxu0 0.0
    %634 = vmatprep.subr.mxu0 0.0
    %635 = vmatpush1.msra.mxu0 0.0
    %636 = vmatprep.subr.mxu0 0.0
    %637 = vmatpush1.msra.mxu0 0.0
    %638 = vmatprep.subr.mxu0 0.0
    %639 = vmatpush1.msra.mxu0 0.0
    %640 = vmatprep.subr.mxu0 0.0
    %641 = vmatpush1.msra.mxu0 0.0
    %642 = vmatprep.subr.mxu0 0.0
    %643 = vmatpush1.msra.mxu0 0.0
    %644 = vmatprep.subr.mxu0 0.0
    %645 = vmatpush1.msra.mxu0 0.0
    %646 = vmatprep.subr.mxu0 0.0
    %647 = vmatpush1.msra.mxu0 0.0
    %648 = vmatprep.subr.mxu0 0.0
    %649 = vmatpush1.msra.mxu0 0.0
    %650 = vmatprep.subr.mxu0 0.0
    %651 = vmatpush1.msra.mxu0 0.0
    %652 = vmatprep.subr.mxu0 0.0
    %653 = vmatpush1.msra.mxu0 0.0
    %654 = vmatprep.subr.mxu0 0.0
    %655 = vmatpush1.msra.mxu0 0.0
    %656 = vmatprep.subr.mxu0 0.0
    %657 = vmatpush1.msra.mxu0 0.0
    %658 = vmatprep.subr.mxu0 0.0
    %659 = vmatpush1.msra.mxu0 0.0
    %660 = vmatprep.mubr.f32.mxu0 0.0
    %661 = vmatmul.mubr.f32.gmra.mrb[0].mxu0 %v594
    %v662 = vpop.f32.mrb[0].mxu0
    %v663 = vadd.f32 0.0, %v662
    %v664 = vpop.f32.mrb[0].mxu0
    %665 = vdwg.mxu0
    %v666 = vadd.f32 %v587, %v663
    %s667 = scalar_lea.vmem [#allocation2], 24
    %v668 = vld [vmem:[%s667 + $0x2] sm:$0x3]
    %v669 = vld [vmem:[#allocation5] sm:$0x3]
    %v670 = vld [vmem:[#allocation13] sm:$0xff]
    %v671 = vld [vmem:[#allocation13 + $0x8] sm:$0xff]
    %v672 = vld [vmem:[#allocation13 + $0x10] sm:$0xff]
    %v673 = vld [vmem:[#allocation13 + $0x18] sm:$0xff]
    %v675 = vsel %vm303, %v669, 0
    %677 = vmatprep.subr.mxu0 0.0
    %678 = vmatpush1.msra.mxu0 %v670
    %679 = vmatprep.subr.mxu0 0.0
    %680 = vmatpush1.msra.mxu0 %v671
    %681 = vmatprep.subr.mxu0 0.0
    %682 = vmatpush1.msra.mxu0 %v672
    %683 = vmatprep.subr.mxu0 0.0
    %684 = vmatpush1.msra.mxu0 %v673
    %685 = vmatprep.subr.mxu0 0.0
    %686 = vmatpush1.msra.mxu0 0.0
    %687 = vmatprep.subr.mxu0 0.0
    %688 = vmatpush1.msra.mxu0 0.0
    %689 = vmatprep.subr.mxu0 0.0
    %690 = vmatpush1.msra.mxu0 0.0
    %691 = vmatprep.subr.mxu0 0.0
    %692 = vmatpush1.msra.mxu0 0.0
    %693 = vmatprep.subr.mxu0 0.0
    %694 = vmatpush1.msra.mxu0 0.0
    %695 = vmatprep.subr.mxu0 0.0
    %696 = vmatpush1.msra.mxu0 0.0
    %697 = vmatprep.subr.mxu0 0.0
    %698 = vmatpush1.msra.mxu0 0.0
    %699 = vmatprep.subr.mxu0 0.0
    %700 = vmatpush1.msra.mxu0 0.0
    %701 = vmatprep.subr.mxu0 0.0
    %702 = vmatpush1.msra.mxu0 0.0
    %703 = vmatprep.subr.mxu0 0.0
    %704 = vmatpush1.msra.mxu0 0.0
    %705 = vmatprep.subr.mxu0 0.0
    %706 = vmatpush1.msra.mxu0 0.0
    %707 = vmatprep.subr.mxu0 0.0
    %708 = vmatpush1.msra.mxu0 0.0
    %709 = vmatprep.subr.mxu0 0.0
    %710 = vmatpush1.msra.mxu0 0.0
    %711 = vmatprep.subr.mxu0 0.0
    %712 = vmatpush1.msra.mxu0 0.0
    %713 = vmatprep.subr.mxu0 0.0
    %714 = vmatpush1.msra.mxu0 0.0
    %715 = vmatprep.subr.mxu0 0.0
    %716 = vmatpush1.msra.mxu0 0.0
    %717 = vmatprep.subr.mxu0 0.0
    %718 = vmatpush1.msra.mxu0 0.0
    %719 = vmatprep.subr.mxu0 0.0
    %720 = vmatpush1.msra.mxu0 0.0
    %721 = vmatprep.subr.mxu0 0.0
    %722 = vmatpush1.msra.mxu0 0.0
    %723 = vmatprep.subr.mxu0 0.0
    %724 = vmatpush1.msra.mxu0 0.0
    %725 = vmatprep.subr.mxu0 0.0
    %726 = vmatpush1.msra.mxu0 0.0
    %727 = vmatprep.subr.mxu0 0.0
    %728 = vmatpush1.msra.mxu0 0.0
    %729 = vmatprep.subr.mxu0 0.0
    %730 = vmatpush1.msra.mxu0 0.0
    %731 = vmatprep.subr.mxu0 0.0
    %732 = vmatpush1.msra.mxu0 0.0
    %733 = vmatprep.subr.mxu0 0.0
    %734 = vmatpush1.msra.mxu0 0.0
    %735 = vmatprep.subr.mxu0 0.0
    %736 = vmatpush1.msra.mxu0 0.0
    %737 = vmatprep.subr.mxu0 0.0
    %738 = vmatpush1.msra.mxu0 0.0
    %739 = vmatprep.subr.mxu0 0.0
    %740 = vmatpush1.msra.mxu0 0.0
    %741 = vmatprep.mubr.f32.mxu0 0.0
    %742 = vmatmul.mubr.f32.gmra.mrb[0].mxu0 %v675
    %v743 = vpop.f32.mrb[0].mxu0
    %v744 = vadd.f32 0.0, %v743
    %v745 = vpop.f32.mrb[0].mxu0
    %746 = vdwg.mxu0
    %v747 = vadd.f32 %v668, %v744
    %v748 = vld [vmem:[#allocation4] sm:$0x3]
    %v749 = vxor.u32 %v666, 2147483648
    %v750 = vmul.f32 %v749, 1.442695
    %v751 = vpow.pop %v750
    %v752 = vadd.f32 %v751, 1.0
    %v753 = vrcp.pop %v752
    %v754 = vmul.f32 1.0, %v753
    %v755 = vtanh.pop %v666
    %v758 = vunpack.c.l.s4 1983009808
    %v759 = vunpack.c.0.s8 %v758
    %v760 = vlaneseq
    %v761 = vshrl.u32 %v760, 7
    %v762 = vsub.s32 %v759, %v761
    %v763 = vrot.slane %v748, %v762
    %764 = vrot.lane.b32.xlu0 %v763, 32
    %v765 = vpop.permute.xlu0 %764
    %v767 = vmul.f32 %v754, %v765
    %769 = vrot.lane.b32.xlu0 %v755, 64
    %v770 = vpop.permute.xlu0 %769
    %v772 = vmul.f32 %v754, %v770
    %774 = vrot.lane.b32.xlu0 %v772, 32
    %v775 = vpop.permute.xlu0 %774
    %v777 = vadd.f32 %v767, %v775
    %v778 = vtanh.pop %v777
    %780 = vrot.lane.b32.xlu0 %v778, 64
    %v781 = vpop.permute.xlu0 %780
    %v783 = vmul.f32 %v754, %v781
    %v784 = vld [vmem:[#allocation6] sm:$0x3]
    %v785 = vxor.u32 %v747, 2147483648
    %v786 = vmul.f32 %v785, 1.442695
    %v787 = vpow.pop %v786
    %v788 = vadd.f32 %v787, 1.0
    %v789 = vrcp.pop %v788
    %v790 = vmul.f32 1.0, %v789
    %v791 = vtanh.pop %v747
    %v794 = vunpack.c.l.s4 1983009808
    %v795 = vunpack.c.0.s8 %v794
    %v796 = vlaneseq
    %v797 = vshrl.u32 %v796, 7
    %v798 = vsub.s32 %v795, %v797
    %v799 = vrot.slane %v784, %v798
    %800 = vrot.lane.b32.xlu0 %v799, 32
    %v801 = vpop.permute.xlu0 %800
    %v803 = vmul.f32 %v790, %v801
    %805 = vrot.lane.b32.xlu0 %v791, 64
    %v806 = vpop.permute.xlu0 %805
    %v808 = vmul.f32 %v790, %v806
    %810 = vrot.lane.b32.xlu0 %v808, 32
    %v811 = vpop.permute.xlu0 %810
    %v813 = vadd.f32 %v803, %v811
    %v814 = vtanh.pop %v813
    %816 = vrot.lane.b32.xlu0 %v814, 64
    %v817 = vpop.permute.xlu0 %816
    %v819 = vmul.f32 %v790, %v817
    %v822 = vunpack.c.l.s4 1983009808
    %v823 = vunpack.c.0.s8 %v822
    %v824 = vlaneseq
    %v825 = vshrl.u32 %v824, 7
    %v826 = vsub.s32 %v823, %v825
    %v827 = vrot.slane %v783, %v826
    %828 = vrot.lane.b32.xlu0 %v827, 32
    %v829 = vpop.permute.xlu0 %828
    %831 = vst.msk [vmem:[#allocation3] sm:$0x3] %vm292, %v829
    %v834 = vunpack.c.l.s4 1983009808
    %v835 = vunpack.c.0.s8 %v834
    %v836 = vlaneseq
    %v837 = vshrl.u32 %v836, 7
    %v838 = vsub.s32 %v835, %v837
    %v839 = vrot.slane %v777, %v838
    %840 = vrot.lane.b32.xlu0 %v839, 96
    %v841 = vpop.permute.xlu0 %840
    %843 = vst.msk [vmem:[#allocation4] sm:$0x3] %vm292, %v841
    %v846 = vunpack.c.l.s4 1983009808
    %v847 = vunpack.c.0.s8 %v846
    %v848 = vlaneseq
    %v849 = vshrl.u32 %v848, 7
    %v850 = vsub.s32 %v847, %v849
    %v851 = vrot.slane %v819, %v850
    %852 = vrot.lane.b32.xlu0 %v851, 32
    %v853 = vpop.permute.xlu0 %852
    %855 = vst.msk [vmem:[#allocation5] sm:$0x3] %vm292, %v853
    %v858 = vunpack.c.l.s4 1983009808
    %v859 = vunpack.c.0.s8 %v858
    %v860 = vlaneseq
    %v861 = vshrl.u32 %v860, 7
    %v862 = vsub.s32 %v859, %v861
    %v863 = vrot.slane %v813, %v862
    %864 = vrot.lane.b32.xlu0 %v863, 96
    %v865 = vpop.permute.xlu0 %864
    %867 = vst.msk [vmem:[#allocation6] sm:$0x3] %vm292, %v865
    %s868 = scalar_lea.vmem [#allocation15], 2
    %869 = vst.msk [vmem:[%s868] sm:$0x3] %vm292, %v829
    %870 = vrot.lane.b32.xlu0 %v851, 64
    %v871 = vpop.permute.xlu0 %870
    %s873 = scalar_lea.vmem [#allocation15], 12
    %874 = vst.msk [vmem:[%s873] sm:$0x3] %vm584, %v871
    %s875 = scalar_lea.vmem [#allocation2], 8
    %v876 = vld [vmem:[%s875] sm:$0x3]
    %v877 = vld [vmem:[#allocation3] sm:$0x3]
    %v878 = vld [vmem:[#allocation12] sm:$0xff]
    %v879 = vld [vmem:[#allocation12 + $0x8] sm:$0xff]
    %v880 = vld [vmem:[#allocation12 + $0x10] sm:$0xff]
    %v881 = vld [vmem:[#allocation12 + $0x18] sm:$0xff]
    %v883 = vsel %vm303, %v877, 0
    %885 = vmatprep.subr.mxu0 0.0
    %886 = vmatpush1.msra.mxu0 %v878
    %887 = vmatprep.subr.mxu0 0.0
    %888 = vmatpush1.msra.mxu0 %v879
    %889 = vmatprep.subr.mxu0 0.0
    %890 = vmatpush1.msra.mxu0 %v880
    %891 = vmatprep.subr.mxu0 0.0
    %892 = vmatpush1.msra.mxu0 %v881
    %893 = vmatprep.subr.mxu0 0.0
    %894 = vmatpush1.msra.mxu0 0.0
    %895 = vmatprep.subr.mxu0 0.0
    %896 = vmatpush1.msra.mxu0 0.0
    %897 = vmatprep.subr.mxu0 0.0
    %898 = vmatpush1.msra.mxu0 0.0
    %899 = vmatprep.subr.mxu0 0.0
    %900 = vmatpush1.msra.mxu0 0.0
    %901 = vmatprep.subr.mxu0 0.0
    %902 = vmatpush1.msra.mxu0 0.0
    %903 = vmatprep.subr.mxu0 0.0
    %904 = vmatpush1.msra.mxu0 0.0
    %905 = vmatprep.subr.mxu0 0.0
    %906 = vmatpush1.msra.mxu0 0.0
    %907 = vmatprep.subr.mxu0 0.0
    %908 = vmatpush1.msra.mxu0 0.0
    %909 = vmatprep.subr.mxu0 0.0
    %910 = vmatpush1.msra.mxu0 0.0
    %911 = vmatprep.subr.mxu0 0.0
    %912 = vmatpush1.msra.mxu0 0.0
    %913 = vmatprep.subr.mxu0 0.0
    %914 = vmatpush1.msra.mxu0 0.0
    %915 = vmatprep.subr.mxu0 0.0
    %916 = vmatpush1.msra.mxu0 0.0
    %917 = vmatprep.subr.mxu0 0.0
    %918 = vmatpush1.msra.mxu0 0.0
    %919 = vmatprep.subr.mxu0 0.0
    %920 = vmatpush1.msra.mxu0 0.0
    %921 = vmatprep.subr.mxu0 0.0
    %922 = vmatpush1.msra.mxu0 0.0
    %923 = vmatprep.subr.mxu0 0.0
    %924 = vmatpush1.msra.mxu0 0.0
    %925 = vmatprep.subr.mxu0 0.0
    %926 = vmatpush1.msra.mxu0 0.0
    %927 = vmatprep.subr.mxu0 0.0
    %928 = vmatpush1.msra.mxu0 0.0
    %929 = vmatprep.subr.mxu0 0.0
    %930 = vmatpush1.msra.mxu0 0.0
    %931 = vmatprep.subr.mxu0 0.0
    %932 = vmatpush1.msra.mxu0 0.0
    %933 = vmatprep.subr.mxu0 0.0
    %934 = vmatpush1.msra.mxu0 0.0
    %935 = vmatprep.subr.mxu0 0.0
    %936 = vmatpush1.msra.mxu0 0.0
    %937 = vmatprep.subr.mxu0 0.0
    %938 = vmatpush1.msra.mxu0 0.0
    %939 = vmatprep.subr.mxu0 0.0
    %940 = vmatpush1.msra.mxu0 0.0
    %941 = vmatprep.subr.mxu0 0.0
    %942 = vmatpush1.msra.mxu0 0.0
    %943 = vmatprep.subr.mxu0 0.0
    %944 = vmatpush1.msra.mxu0 0.0
    %945 = vmatprep.subr.mxu0 0.0
    %946 = vmatpush1.msra.mxu0 0.0
    %947 = vmatprep.subr.mxu0 0.0
    %948 = vmatpush1.msra.mxu0 0.0
    %949 = vmatprep.mubr.f32.mxu0 0.0
    %950 = vmatmul.mubr.f32.gmra.mrb[0].mxu0 %v883
    %v951 = vpop.f32.mrb[0].mxu0
    %v952 = vadd.f32 0.0, %v951
    %v953 = vpop.f32.mrb[0].mxu0
    %954 = vdwg.mxu0
    %v955 = vadd.f32 %v876, %v952
    %s956 = scalar_lea.vmem [#allocation2], 20
    %v957 = vld [vmem:[%s956 + $0x2] sm:$0x3]
    %v958 = vld [vmem:[#allocation5] sm:$0x3]
    %v959 = vld [vmem:[#allocation13] sm:$0xff]
    %v960 = vld [vmem:[#allocation13 + $0x8] sm:$0xff]
    %v961 = vld [vmem:[#allocation13 + $0x10] sm:$0xff]
    %v962 = vld [vmem:[#allocation13 + $0x18] sm:$0xff]
    %v964 = vsel %vm303, %v958, 0
    %966 = vmatprep.subr.mxu0 0.0
    %967 = vmatpush1.msra.mxu0 %v959
    %968 = vmatprep.subr.mxu0 0.0
    %969 = vmatpush1.msra.mxu0 %v960
    %970 = vmatprep.subr.mxu0 0.0
    %971 = vmatpush1.msra.mxu0 %v961
    %972 = vmatprep.subr.mxu0 0.0
    %973 = vmatpush1.msra.mxu0 %v962
    %974 = vmatprep.subr.mxu0 0.0
    %975 = vmatpush1.msra.mxu0 0.0
    %976 = vmatprep.subr.mxu0 0.0
    %977 = vmatpush1.msra.mxu0 0.0
    %978 = vmatprep.subr.mxu0 0.0
    %979 = vmatpush1.msra.mxu0 0.0
    %980 = vmatprep.subr.mxu0 0.0
    %981 = vmatpush1.msra.mxu0 0.0
    %982 = vmatprep.subr.mxu0 0.0
    %983 = vmatpush1.msra.mxu0 0.0
    %984 = vmatprep.subr.mxu0 0.0
    %985 = vmatpush1.msra.mxu0 0.0
    %986 = vmatprep.subr.mxu0 0.0
    %987 = vmatpush1.msra.mxu0 0.0
    %988 = vmatprep.subr.mxu0 0.0
    %989 = vmatpush1.msra.mxu0 0.0
    %990 = vmatprep.subr.mxu0 0.0
    %991 = vmatpush1.msra.mxu0 0.0
    %992 = vmatprep.subr.mxu0 0.0
    %993 = vmatpush1.msra.mxu0 0.0
    %994 = vmatprep.subr.mxu0 0.0
    %995 = vmatpush1.msra.mxu0 0.0
    %996 = vmatprep.subr.mxu0 0.0
    %997 = vmatpush1.msra.mxu0 0.0
    %998 = vmatprep.subr.mxu0 0.0
    %999 = vmatpush1.msra.mxu0 0.0
    %1000 = vmatprep.subr.mxu0 0.0
    %1001 = vmatpush1.msra.mxu0 0.0
    %1002 = vmatprep.subr.mxu0 0.0
    %1003 = vmatpush1.msra.mxu0 0.0
    %1004 = vmatprep.subr.mxu0 0.0
    %1005 = vmatpush1.msra.mxu0 0.0
    %1006 = vmatprep.subr.mxu0 0.0
    %1007 = vmatpush1.msra.mxu0 0.0
    %1008 = vmatprep.subr.mxu0 0.0
    %1009 = vmatpush1.msra.mxu0 0.0
    %1010 = vmatprep.subr.mxu0 0.0
    %1011 = vmatpush1.msra.mxu0 0.0
    %1012 = vmatprep.subr.mxu0 0.0
    %1013 = vmatpush1.msra.mxu0 0.0
    %1014 = vmatprep.subr.mxu0 0.0
    %1015 = vmatpush1.msra.mxu0 0.0
    %1016 = vmatprep.subr.mxu0 0.0
    %1017 = vmatpush1.msra.mxu0 0.0
    %1018 = vmatprep.subr.mxu0 0.0
    %1019 = vmatpush1.msra.mxu0 0.0
    %1020 = vmatprep.subr.mxu0 0.0
    %1021 = vmatpush1.msra.mxu0 0.0
    %1022 = vmatprep.subr.mxu0 0.0
    %1023 = vmatpush1.msra.mxu0 0.0
    %1024 = vmatprep.subr.mxu0 0.0
    %1025 = vmatpush1.msra.mxu0 0.0
    %1026 = vmatprep.subr.mxu0 0.0
    %1027 = vmatpush1.msra.mxu0 0.0
    %1028 = vmatprep.subr.mxu0 0.0
    %1029 = vmatpush1.msra.mxu0 0.0
    %1030 = vmatprep.mubr.f32.mxu0 0.0
    %1031 = vmatmul.mubr.f32.gmra.mrb[0].mxu0 %v964
    %v1032 = vpop.f32.mrb[0].mxu0
    %v1033 = vadd.f32 0.0, %v1032
    %v1034 = vpop.f32.mrb[0].mxu0
    %1035 = vdwg.mxu0
    %v1036 = vadd.f32 %v957, %v1033
    %v1037 = vld [vmem:[#allocation4] sm:$0x3]
    %v1038 = vxor.u32 %v955, 2147483648
    %v1039 = vmul.f32 %v1038, 1.442695
    %v1040 = vpow.pop %v1039
    %v1041 = vadd.f32 %v1040, 1.0
    %v1042 = vrcp.pop %v1041
    %v1043 = vmul.f32 1.0, %v1042
    %v1044 = vtanh.pop %v955
    %v1047 = vunpack.c.l.s4 1983009808
    %v1048 = vunpack.c.0.s8 %v1047
    %v1049 = vlaneseq
    %v1050 = vshrl.u32 %v1049, 7
    %v1051 = vsub.s32 %v1048, %v1050
    %v1052 = vrot.slane %v1037, %v1051
    %1053 = vrot.lane.b32.xlu0 %v1052, 32
    %v1054 = vpop.permute.xlu0 %1053
    %v1056 = vmul.f32 %v1043, %v1054
    %1058 = vrot.lane.b32.xlu0 %v1044, 64
    %v1059 = vpop.permute.xlu0 %1058
    %v1061 = vmul.f32 %v1043, %v1059
    %1063 = vrot.lane.b32.xlu0 %v1061, 32
    %v1064 = vpop.permute.xlu0 %1063
    %v1066 = vadd.f32 %v1056, %v1064
    %v1067 = vtanh.pop %v1066
    %1069 = vrot.lane.b32.xlu0 %v1067, 64
    %v1070 = vpop.permute.xlu0 %1069
    %v1072 = vmul.f32 %v1043, %v1070
    %v1073 = vld [vmem:[#allocation6] sm:$0x3]
    %v1074 = vxor.u32 %v1036, 2147483648
    %v1075 = vmul.f32 %v1074, 1.442695
    %v1076 = vpow.pop %v1075
    %v1077 = vadd.f32 %v1076, 1.0
    %v1078 = vrcp.pop %v1077
    %v1079 = vmul.f32 1.0, %v1078
    %v1080 = vtanh.pop %v1036
    %v1083 = vunpack.c.l.s4 1983009808
    %v1084 = vunpack.c.0.s8 %v1083
    %v1085 = vlaneseq
    %v1086 = vshrl.u32 %v1085, 7
    %v1087 = vsub.s32 %v1084, %v1086
    %v1088 = vrot.slane %v1073, %v1087
    %1089 = vrot.lane.b32.xlu0 %v1088, 32
    %v1090 = vpop.permute.xlu0 %1089
    %v1092 = vmul.f32 %v1079, %v1090
    %1094 = vrot.lane.b32.xlu0 %v1080, 64
    %v1095 = vpop.permute.xlu0 %1094
    %v1097 = vmul.f32 %v1079, %v1095
    %1099 = vrot.lane.b32.xlu0 %v1097, 32
    %v1100 = vpop.permute.xlu0 %1099
    %v1102 = vadd.f32 %v1092, %v1100
    %v1103 = vtanh.pop %v1102
    %1105 = vrot.lane.b32.xlu0 %v1103, 64
    %v1106 = vpop.permute.xlu0 %1105
    %v1108 = vmul.f32 %v1079, %v1106
    %v1111 = vunpack.c.l.s4 1983009808
    %v1112 = vunpack.c.0.s8 %v1111
    %v1113 = vlaneseq
    %v1114 = vshrl.u32 %v1113, 7
    %v1115 = vsub.s32 %v1112, %v1114
    %v1116 = vrot.slane %v1072, %v1115
    %1117 = vrot.lane.b32.xlu0 %v1116, 32
    %v1118 = vpop.permute.xlu0 %1117
    %1120 = vst.msk [vmem:[#allocation3] sm:$0x3] %vm292, %v1118
    %v1123 = vunpack.c.l.s4 1983009808
    %v1124 = vunpack.c.0.s8 %v1123
    %v1125 = vlaneseq
    %v1126 = vshrl.u32 %v1125, 7
    %v1127 = vsub.s32 %v1124, %v1126
    %v1128 = vrot.slane %v1066, %v1127
    %1129 = vrot.lane.b32.xlu0 %v1128, 96
    %v1130 = vpop.permute.xlu0 %1129
    %1132 = vst.msk [vmem:[#allocation4] sm:$0x3] %vm292, %v1130
    %v1135 = vunpack.c.l.s4 1983009808
    %v1136 = vunpack.c.0.s8 %v1135
    %v1137 = vlaneseq
    %v1138 = vshrl.u32 %v1137, 7
    %v1139 = vsub.s32 %v1136, %v1138
    %v1140 = vrot.slane %v1108, %v1139
    %1141 = vrot.lane.b32.xlu0 %v1140, 32
    %v1142 = vpop.permute.xlu0 %1141
    %1144 = vst.msk [vmem:[#allocation5] sm:$0x3] %vm292, %v1142
    %v1147 = vunpack.c.l.s4 1983009808
    %v1148 = vunpack.c.0.s8 %v1147
    %v1149 = vlaneseq
    %v1150 = vshrl.u32 %v1149, 7
    %v1151 = vsub.s32 %v1148, %v1150
    %v1152 = vrot.slane %v1102, %v1151
    %1153 = vrot.lane.b32.xlu0 %v1152, 96
    %v1154 = vpop.permute.xlu0 %1153
    %1156 = vst.msk [vmem:[#allocation6] sm:$0x3] %vm292, %v1154
    %s1157 = scalar_lea.vmem [#allocation15], 4
    %1158 = vst.msk [vmem:[%s1157] sm:$0x3] %vm292, %v1118
    %1159 = vrot.lane.b32.xlu0 %v1140, 64
    %v1160 = vpop.permute.xlu0 %1159
    %s1162 = scalar_lea.vmem [#allocation15], 10
    %1163 = vst.msk [vmem:[%s1162] sm:$0x3] %vm584, %v1160
    %s1164 = scalar_lea.vmem [#allocation2], 12
    %v1165 = vld [vmem:[%s1164] sm:$0x3]
    %v1166 = vld [vmem:[#allocation3] sm:$0x3]
    %v1167 = vld [vmem:[#allocation12] sm:$0xff]
    %v1168 = vld [vmem:[#allocation12 + $0x8] sm:$0xff]
    %v1169 = vld [vmem:[#allocation12 + $0x10] sm:$0xff]
    %v1170 = vld [vmem:[#allocation12 + $0x18] sm:$0xff]
    %v1172 = vsel %vm303, %v1166, 0
    %1174 = vmatprep.subr.mxu0 0.0
    %1175 = vmatpush1.msra.mxu0 %v1167
    %1176 = vmatprep.subr.mxu0 0.0
    %1177 = vmatpush1.msra.mxu0 %v1168
    %1178 = vmatprep.subr.mxu0 0.0
    %1179 = vmatpush1.msra.mxu0 %v1169
    %1180 = vmatprep.subr.mxu0 0.0
    %1181 = vmatpush1.msra.mxu0 %v1170
    %1182 = vmatprep.subr.mxu0 0.0
    %1183 = vmatpush1.msra.mxu0 0.0
    %1184 = vmatprep.subr.mxu0 0.0
    %1185 = vmatpush1.msra.mxu0 0.0
    %1186 = vmatprep.subr.mxu0 0.0
    %1187 = vmatpush1.msra.mxu0 0.0
    %1188 = vmatprep.subr.mxu0 0.0
    %1189 = vmatpush1.msra.mxu0 0.0
    %1190 = vmatprep.subr.mxu0 0.0
    %1191 = vmatpush1.msra.mxu0 0.0
    %1192 = vmatprep.subr.mxu0 0.0
    %1193 = vmatpush1.msra.mxu0 0.0
    %1194 = vmatprep.subr.mxu0 0.0
    %1195 = vmatpush1.msra.mxu0 0.0
    %1196 = vmatprep.subr.mxu0 0.0
    %1197 = vmatpush1.msra.mxu0 0.0
    %1198 = vmatprep.subr.mxu0 0.0
    %1199 = vmatpush1.msra.mxu0 0.0
    %1200 = vmatprep.subr.mxu0 0.0
    %1201 = vmatpush1.msra.mxu0 0.0
    %1202 = vmatprep.subr.mxu0 0.0
    %1203 = vmatpush1.msra.mxu0 0.0
    %1204 = vmatprep.subr.mxu0 0.0
    %1205 = vmatpush1.msra.mxu0 0.0
    %1206 = vmatprep.subr.mxu0 0.0
    %1207 = vmatpush1.msra.mxu0 0.0
    %1208 = vmatprep.subr.mxu0 0.0
    %1209 = vmatpush1.msra.mxu0 0.0
    %1210 = vmatprep.subr.mxu0 0.0
    %1211 = vmatpush1.msra.mxu0 0.0
    %1212 = vmatprep.subr.mxu0 0.0
    %1213 = vmatpush1.msra.mxu0 0.0
    %1214 = vmatprep.subr.mxu0 0.0
    %1215 = vmatpush1.msra.mxu0 0.0
    %1216 = vmatprep.subr.mxu0 0.0
    %1217 = vmatpush1.msra.mxu0 0.0
    %1218 = vmatprep.subr.mxu0 0.0
    %1219 = vmatpush1.msra.mxu0 0.0
    %1220 = vmatprep.subr.mxu0 0.0
    %1221 = vmatpush1.msra.mxu0 0.0
    %1222 = vmatprep.subr.mxu0 0.0
    %1223 = vmatpush1.msra.mxu0 0.0
    %1224 = vmatprep.subr.mxu0 0.0
    %1225 = vmatpush1.msra.mxu0 0.0
    %1226 = vmatprep.subr.mxu0 0.0
    %1227 = vmatpush1.msra.mxu0 0.0
    %1228 = vmatprep.subr.mxu0 0.0
    %1229 = vmatpush1.msra.mxu0 0.0
    %1230 = vmatprep.subr.mxu0 0.0
    %1231 = vmatpush1.msra.mxu0 0.0
    %1232 = vmatprep.subr.mxu0 0.0
    %1233 = vmatpush1.msra.mxu0 0.0
    %1234 = vmatprep.subr.mxu0 0.0
    %1235 = vmatpush1.msra.mxu0 0.0
    %1236 = vmatprep.subr.mxu0 0.0
    %1237 = vmatpush1.msra.mxu0 0.0
    %1238 = vmatprep.mubr.f32.mxu0 0.0
    %1239 = vmatmul.mubr.f32.gmra.mrb[0].mxu0 %v1172
    %v1240 = vpop.f32.mrb[0].mxu0
    %v1241 = vadd.f32 0.0, %v1240
    %v1242 = vpop.f32.mrb[0].mxu0
    %1243 = vdwg.mxu0
    %v1244 = vadd.f32 %v1165, %v1241
    %s1245 = scalar_lea.vmem [#allocation2], 16
    %v1246 = vld [vmem:[%s1245 + $0x2] sm:$0x3]
    %v1247 = vld [vmem:[#allocation5] sm:$0x3]
    %v1248 = vld [vmem:[#allocation13] sm:$0xff]
    %v1249 = vld [vmem:[#allocation13 + $0x8] sm:$0xff]
    %v1250 = vld [vmem:[#allocation13 + $0x10] sm:$0xff]
    %v1251 = vld [vmem:[#allocation13 + $0x18] sm:$0xff]
    %v1253 = vsel %vm303, %v1247, 0
    %1255 = vmatprep.subr.mxu0 0.0
    %1256 = vmatpush1.msra.mxu0 %v1248
    %1257 = vmatprep.subr.mxu0 0.0
    %1258 = vmatpush1.msra.mxu0 %v1249
    %1259 = vmatprep.subr.mxu0 0.0
    %1260 = vmatpush1.msra.mxu0 %v1250
    %1261 = vmatprep.subr.mxu0 0.0
    %1262 = vmatpush1.msra.mxu0 %v1251
    %1263 = vmatprep.subr.mxu0 0.0
    %1264 = vmatpush1.msra.mxu0 0.0
    %1265 = vmatprep.subr.mxu0 0.0
    %1266 = vmatpush1.msra.mxu0 0.0
    %1267 = vmatprep.subr.mxu0 0.0
    %1268 = vmatpush1.msra.mxu0 0.0
    %1269 = vmatprep.subr.mxu0 0.0
    %1270 = vmatpush1.msra.mxu0 0.0
    %1271 = vmatprep.subr.mxu0 0.0
    %1272 = vmatpush1.msra.mxu0 0.0
    %1273 = vmatprep.subr.mxu0 0.0
    %1274 = vmatpush1.msra.mxu0 0.0
    %1275 = vmatprep.subr.mxu0 0.0
    %1276 = vmatpush1.msra.mxu0 0.0
    %1277 = vmatprep.subr.mxu0 0.0
    %1278 = vmatpush1.msra.mxu0 0.0
    %1279 = vmatprep.subr.mxu0 0.0
    %1280 = vmatpush1.msra.mxu0 0.0
    %1281 = vmatprep.subr.mxu0 0.0
    %1282 = vmatpush1.msra.mxu0 0.0
    %1283 = vmatprep.subr.mxu0 0.0
    %1284 = vmatpush1.msra.mxu0 0.0
    %1285 = vmatprep.subr.mxu0 0.0
    %1286 = vmatpush1.msra.mxu0 0.0
    %1287 = vmatprep.subr.mxu0 0.0
    %1288 = vmatpush1.msra.mxu0 0.0
    %1289 = vmatprep.subr.mxu0 0.0
    %1290 = vmatpush1.msra.mxu0 0.0
    %1291 = vmatprep.subr.mxu0 0.0
    %1292 = vmatpush1.msra.mxu0 0.0
    %1293 = vmatprep.subr.mxu0 0.0
    %1294 = vmatpush1.msra.mxu0 0.0
    %1295 = vmatprep.subr.mxu0 0.0
    %1296 = vmatpush1.msra.mxu0 0.0
    %1297 = vmatprep.subr.mxu0 0.0
    %1298 = vmatpush1.msra.mxu0 0.0
    %1299 = vmatprep.subr.mxu0 0.0
    %1300 = vmatpush1.msra.mxu0 0.0
    %1301 = vmatprep.subr.mxu0 0.0
    %1302 = vmatpush1.msra.mxu0 0.0
    %1303 = vmatprep.subr.mxu0 0.0
    %1304 = vmatpush1.msra.mxu0 0.0
    %1305 = vmatprep.subr.mxu0 0.0
    %1306 = vmatpush1.msra.mxu0 0.0
    %1307 = vmatprep.subr.mxu0 0.0
    %1308 = vmatpush1.msra.mxu0 0.0
    %1309 = vmatprep.subr.mxu0 0.0
    %1310 = vmatpush1.msra.mxu0 0.0
    %1311 = vmatprep.subr.mxu0 0.0
    %1312 = vmatpush1.msra.mxu0 0.0
    %1313 = vmatprep.subr.mxu0 0.0
    %1314 = vmatpush1.msra.mxu0 0.0
    %1315 = vmatprep.subr.mxu0 0.0
    %1316 = vmatpush1.msra.mxu0 0.0
    %1317 = vmatprep.subr.mxu0 0.0
    %1318 = vmatpush1.msra.mxu0 0.0
    %1319 = vmatprep.mubr.f32.mxu0 0.0
    %1320 = vmatmul.mubr.f32.gmra.mrb[0].mxu0 %v1253
    %v1321 = vpop.f32.mrb[0].mxu0
    %v1322 = vadd.f32 0.0, %v1321
    %v1323 = vpop.f32.mrb[0].mxu0
    %1324 = vdwg.mxu0
    %v1325 = vadd.f32 %v1246, %v1322
    %v1326 = vld [vmem:[#allocation4] sm:$0x3]
    %v1327 = vxor.u32 %v1244, 2147483648
    %v1328 = vmul.f32 %v1327, 1.442695
    %v1329 = vpow.pop %v1328
    %v1330 = vadd.f32 %v1329, 1.0
    %v1331 = vrcp.pop %v1330
    %v1332 = vmul.f32 1.0, %v1331
    %v1333 = vtanh.pop %v1244
    %v1336 = vunpack.c.l.s4 1983009808
    %v1337 = vunpack.c.0.s8 %v1336
    %v1338 = vlaneseq
    %v1339 = vshrl.u32 %v1338, 7
    %v1340 = vsub.s32 %v1337, %v1339
    %v1341 = vrot.slane %v1326, %v1340
    %1342 = vrot.lane.b32.xlu0 %v1341, 32
    %v1343 = vpop.permute.xlu0 %1342
    %v1345 = vmul.f32 %v1332, %v1343
    %1347 = vrot.lane.b32.xlu0 %v1333, 64
    %v1348 = vpop.permute.xlu0 %1347
    %v1350 = vmul.f32 %v1332, %v1348
    %1352 = vrot.lane.b32.xlu0 %v1350, 32
    %v1353 = vpop.permute.xlu0 %1352
    %v1355 = vadd.f32 %v1345, %v1353
    %v1356 = vtanh.pop %v1355
    %1358 = vrot.lane.b32.xlu0 %v1356, 64
    %v1359 = vpop.permute.xlu0 %1358
    %v1361 = vmul.f32 %v1332, %v1359
    %v1362 = vld [vmem:[#allocation6] sm:$0x3]
    %v1363 = vxor.u32 %v1325, 2147483648
    %v1364 = vmul.f32 %v1363, 1.442695
    %v1365 = vpow.pop %v1364
    %v1366 = vadd.f32 %v1365, 1.0
    %v1367 = vrcp.pop %v1366
    %v1368 = vmul.f32 1.0, %v1367
    %v1369 = vtanh.pop %v1325
    %v1372 = vunpack.c.l.s4 1983009808
    %v1373 = vunpack.c.0.s8 %v1372
    %v1374 = vlaneseq
    %v1375 = vshrl.u32 %v1374, 7
    %v1376 = vsub.s32 %v1373, %v1375
    %v1377 = vrot.slane %v1362, %v1376
    %1378 = vrot.lane.b32.xlu0 %v1377, 32
    %v1379 = vpop.permute.xlu0 %1378
    %v1381 = vmul.f32 %v1368, %v1379
    %1383 = vrot.lane.b32.xlu0 %v1369, 64
    %v1384 = vpop.permute.xlu0 %1383
    %v1386 = vmul.f32 %v1368, %v1384
    %1388 = vrot.lane.b32.xlu0 %v1386, 32
    %v1389 = vpop.permute.xlu0 %1388
    %v1391 = vadd.f32 %v1381, %v1389
    %v1392 = vtanh.pop %v1391
    %1394 = vrot.lane.b32.xlu0 %v1392, 64
    %v1395 = vpop.permute.xlu0 %1394
    %v1397 = vmul.f32 %v1368, %v1395
    %v1400 = vunpack.c.l.s4 1983009808
    %v1401 = vunpack.c.0.s8 %v1400
    %v1402 = vlaneseq
    %v1403 = vshrl.u32 %v1402, 7
    %v1404 = vsub.s32 %v1401, %v1403
    %v1405 = vrot.slane %v1361, %v1404
    %1406 = vrot.lane.b32.xlu0 %v1405, 32
    %v1407 = vpop.permute.xlu0 %1406
    %1409 = vst.msk [vmem:[#allocation3] sm:$0x3] %vm292, %v1407
    %v1412 = vunpack.c.l.s4 1983009808
    %v1413 = vunpack.c.0.s8 %v1412
    %v1414 = vlaneseq
    %v1415 = vshrl.u32 %v1414, 7
    %v1416 = vsub.s32 %v1413, %v1415
    %v1417 = vrot.slane %v1355, %v1416
    %1418 = vrot.lane.b32.xlu0 %v1417, 96
    %v1419 = vpop.permute.xlu0 %1418
    %1421 = vst.msk [vmem:[#allocation4] sm:$0x3] %vm292, %v1419
    %v1424 = vunpack.c.l.s4 1983009808
    %v1425 = vunpack.c.0.s8 %v1424
    %v1426 = vlaneseq
    %v1427 = vshrl.u32 %v1426, 7
    %v1428 = vsub.s32 %v1425, %v1427
    %v1429 = vrot.slane %v1397, %v1428
    %1430 = vrot.lane.b32.xlu0 %v1429, 32
    %v1431 = vpop.permute.xlu0 %1430
    %1433 = vst.msk [vmem:[#allocation5] sm:$0x3] %vm292, %v1431
    %v1436 = vunpack.c.l.s4 1983009808
    %v1437 = vunpack.c.0.s8 %v1436
    %v1438 = vlaneseq
    %v1439 = vshrl.u32 %v1438, 7
    %v1440 = vsub.s32 %v1437, %v1439
    %v1441 = vrot.slane %v1391, %v1440
    %1442 = vrot.lane.b32.xlu0 %v1441, 96
    %v1443 = vpop.permute.xlu0 %1442
    %1445 = vst.msk [vmem:[#allocation6] sm:$0x3] %vm292, %v1443
    %s1446 = scalar_lea.vmem [#allocation15], 6
    %1447 = vst.msk [vmem:[%s1446] sm:$0x3] %vm292, %v1407
    %1448 = vrot.lane.b32.xlu0 %v1429, 64
    %v1449 = vpop.permute.xlu0 %1448
    %s1451 = scalar_lea.vmem [#allocation15], 8
    %1452 = vst.msk [vmem:[%s1451] sm:$0x3] %vm584, %v1449
    %v1453 = vld [vmem:[%s1245] sm:$0x3]
    %v1454 = vld [vmem:[#allocation3] sm:$0x3]
    %v1455 = vld [vmem:[#allocation12] sm:$0xff]
    %v1456 = vld [vmem:[#allocation12 + $0x8] sm:$0xff]
    %v1457 = vld [vmem:[#allocation12 + $0x10] sm:$0xff]
    %v1458 = vld [vmem:[#allocation12 + $0x18] sm:$0xff]
    %v1460 = vsel %vm303, %v1454, 0
    %1462 = vmatprep.subr.mxu0 0.0
    %1463 = vmatpush1.msra.mxu0 %v1455
    %1464 = vmatprep.subr.mxu0 0.0
    %1465 = vmatpush1.msra.mxu0 %v1456
    %1466 = vmatprep.subr.mxu0 0.0
    %1467 = vmatpush1.msra.mxu0 %v1457
    %1468 = vmatprep.subr.mxu0 0.0
    %1469 = vmatpush1.msra.mxu0 %v1458
    %1470 = vmatprep.subr.mxu0 0.0
    %1471 = vmatpush1.msra.mxu0 0.0
    %1472 = vmatprep.subr.mxu0 0.0
    %1473 = vmatpush1.msra.mxu0 0.0
    %1474 = vmatprep.subr.mxu0 0.0
    %1475 = vmatpush1.msra.mxu0 0.0
    %1476 = vmatprep.subr.mxu0 0.0
    %1477 = vmatpush1.msra.mxu0 0.0
    %1478 = vmatprep.subr.mxu0 0.0
    %1479 = vmatpush1.msra.mxu0 0.0
    %1480 = vmatprep.subr.mxu0 0.0
    %1481 = vmatpush1.msra.mxu0 0.0
    %1482 = vmatprep.subr.mxu0 0.0
    %1483 = vmatpush1.msra.mxu0 0.0
    %1484 = vmatprep.subr.mxu0 0.0
    %1485 = vmatpush1.msra.mxu0 0.0
    %1486 = vmatprep.subr.mxu0 0.0
    %1487 = vmatpush1.msra.mxu0 0.0
    %1488 = vmatprep.subr.mxu0 0.0
    %1489 = vmatpush1.msra.mxu0 0.0
    %1490 = vmatprep.subr.mxu0 0.0
    %1491 = vmatpush1.msra.mxu0 0.0
    %1492 = vmatprep.subr.mxu0 0.0
    %1493 = vmatpush1.msra.mxu0 0.0
    %1494 = vmatprep.subr.mxu0 0.0
    %1495 = vmatpush1.msra.mxu0 0.0
    %1496 = vmatprep.subr.mxu0 0.0
    %1497 = vmatpush1.msra.mxu0 0.0
    %1498 = vmatprep.subr.mxu0 0.0
    %1499 = vmatpush1.msra.mxu0 0.0
    %1500 = vmatprep.subr.mxu0 0.0
    %1501 = vmatpush1.msra.mxu0 0.0
    %1502 = vmatprep.subr.mxu0 0.0
    %1503 = vmatpush1.msra.mxu0 0.0
    %1504 = vmatprep.subr.mxu0 0.0
    %1505 = vmatpush1.msra.mxu0 0.0
    %1506 = vmatprep.subr.mxu0 0.0
    %1507 = vmatpush1.msra.mxu0 0.0
    %1508 = vmatprep.subr.mxu0 0.0
    %1509 = vmatpush1.msra.mxu0 0.0
    %1510 = vmatprep.subr.mxu0 0.0
    %1511 = vmatpush1.msra.mxu0 0.0
    %1512 = vmatprep.subr.mxu0 0.0
    %1513 = vmatpush1.msra.mxu0 0.0
    %1514 = vmatprep.subr.mxu0 0.0
    %1515 = vmatpush1.msra.mxu0 0.0
    %1516 = vmatprep.subr.mxu0 0.0
    %1517 = vmatpush1.msra.mxu0 0.0
    %1518 = vmatprep.subr.mxu0 0.0
    %1519 = vmatpush1.msra.mxu0 0.0
    %1520 = vmatprep.subr.mxu0 0.0
    %1521 = vmatpush1.msra.mxu0 0.0
    %1522 = vmatprep.subr.mxu0 0.0
    %1523 = vmatpush1.msra.mxu0 0.0
    %1524 = vmatprep.subr.mxu0 0.0
    %1525 = vmatpush1.msra.mxu0 0.0
    %1526 = vmatprep.mubr.f32.mxu0 0.0
    %1527 = vmatmul.mubr.f32.gmra.mrb[0].mxu0 %v1460
    %v1528 = vpop.f32.mrb[0].mxu0
    %v1529 = vadd.f32 0.0, %v1528
    %v1530 = vpop.f32.mrb[0].mxu0
    %1531 = vdwg.mxu0
    %v1532 = vadd.f32 %v1453, %v1529
    %v1533 = vld [vmem:[%s1164 + $0x2] sm:$0x3]
    %v1534 = vld [vmem:[#allocation5] sm:$0x3]
    %v1535 = vld [vmem:[#allocation13] sm:$0xff]
    %v1536 = vld [vmem:[#allocation13 + $0x8] sm:$0xff]
    %v1537 = vld [vmem:[#allocation13 + $0x10] sm:$0xff]
    %v1538 = vld [vmem:[#allocation13 + $0x18] sm:$0xff]
    %v1540 = vsel %vm303, %v1534, 0
    %1542 = vmatprep.subr.mxu0 0.0
    %1543 = vmatpush1.msra.mxu0 %v1535
    %1544 = vmatprep.subr.mxu0 0.0
    %1545 = vmatpush1.msra.mxu0 %v1536
    %1546 = vmatprep.subr.mxu0 0.0
    %1547 = vmatpush1.msra.mxu0 %v1537
    %1548 = vmatprep.subr.mxu0 0.0
    %1549 = vmatpush1.msra.mxu0 %v1538
    %1550 = vmatprep.subr.mxu0 0.0
    %1551 = vmatpush1.msra.mxu0 0.0
    %1552 = vmatprep.subr.mxu0 0.0
    %1553 = vmatpush1.msra.mxu0 0.0
    %1554 = vmatprep.subr.mxu0 0.0
    %1555 = vmatpush1.msra.mxu0 0.0
    %1556 = vmatprep.subr.mxu0 0.0
    %1557 = vmatpush1.msra.mxu0 0.0
    %1558 = vmatprep.subr.mxu0 0.0
    %1559 = vmatpush1.msra.mxu0 0.0
    %1560 = vmatprep.subr.mxu0 0.0
    %1561 = vmatpush1.msra.mxu0 0.0
    %1562 = vmatprep.subr.mxu0 0.0
    %1563 = vmatpush1.msra.mxu0 0.0
    %1564 = vmatprep.subr.mxu0 0.0
    %1565 = vmatpush1.msra.mxu0 0.0
    %1566 = vmatprep.subr.mxu0 0.0
    %1567 = vmatpush1.msra.mxu0 0.0
    %1568 = vmatprep.subr.mxu0 0.0
    %1569 = vmatpush1.msra.mxu0 0.0
    %1570 = vmatprep.subr.mxu0 0.0
    %1571 = vmatpush1.msra.mxu0 0.0
    %1572 = vmatprep.subr.mxu0 0.0
    %1573 = vmatpush1.msra.mxu0 0.0
    %1574 = vmatprep.subr.mxu0 0.0
    %1575 = vmatpush1.msra.mxu0 0.0
    %1576 = vmatprep.subr.mxu0 0.0
    %1577 = vmatpush1.msra.mxu0 0.0
    %1578 = vmatprep.subr.mxu0 0.0
    %1579 = vmatpush1.msra.mxu0 0.0
    %1580 = vmatprep.subr.mxu0 0.0
    %1581 = vmatpush1.msra.mxu0 0.0
    %1582 = vmatprep.subr.mxu0 0.0
    %1583 = vmatpush1.msra.mxu0 0.0
    %1584 = vmatprep.subr.mxu0 0.0
    %1585 = vmatpush1.msra.mxu0 0.0
    %1586 = vmatprep.subr.mxu0 0.0
    %1587 = vmatpush1.msra.mxu0 0.0
    %1588 = vmatprep.subr.mxu0 0.0
    %1589 = vmatpush1.msra.mxu0 0.0
    %1590 = vmatprep.subr.mxu0 0.0
    %1591 = vmatpush1.msra.mxu0 0.0
    %1592 = vmatprep.subr.mxu0 0.0
    %1593 = vmatpush1.msra.mxu0 0.0
    %1594 = vmatprep.subr.mxu0 0.0
    %1595 = vmatpush1.msra.mxu0 0.0
    %1596 = vmatprep.subr.mxu0 0.0
    %1597 = vmatpush1.msra.mxu0 0.0
    %1598 = vmatprep.subr.mxu0 0.0
    %1599 = vmatpush1.msra.mxu0 0.0
    %1600 = vmatprep.subr.mxu0 0.0
    %1601 = vmatpush1.msra.mxu0 0.0
    %1602 = vmatprep.subr.mxu0 0.0
    %1603 = vmatpush1.msra.mxu0 0.0
    %1604 = vmatprep.subr.mxu0 0.0
    %1605 = vmatpush1.msra.mxu0 0.0
    %1606 = vmatprep.mubr.f32.mxu0 0.0
    %1607 = vmatmul.mubr.f32.gmra.mrb[0].mxu0 %v1540
    %v1608 = vpop.f32.mrb[0].mxu0
    %v1609 = vadd.f32 0.0, %v1608
    %v1610 = vpop.f32.mrb[0].mxu0
    %1611 = vdwg.mxu0
    %v1612 = vadd.f32 %v1533, %v1609
    %v1613 = vld [vmem:[#allocation4] sm:$0x3]
    %v1614 = vxor.u32 %v1532, 2147483648
    %v1615 = vmul.f32 %v1614, 1.442695
    %v1616 = vpow.pop %v1615
    %v1617 = vadd.f32 %v1616, 1.0
    %v1618 = vrcp.pop %v1617
    %v1619 = vmul.f32 1.0, %v1618
    %v1620 = vtanh.pop %v1532
    %v1623 = vunpack.c.l.s4 1983009808
    %v1624 = vunpack.c.0.s8 %v1623
    %v1625 = vlaneseq
    %v1626 = vshrl.u32 %v1625, 7
    %v1627 = vsub.s32 %v1624, %v1626
    %v1628 = vrot.slane %v1613, %v1627
    %1629 = vrot.lane.b32.xlu0 %v1628, 32
    %v1630 = vpop.permute.xlu0 %1629
    %v1632 = vmul.f32 %v1619, %v1630
    %1634 = vrot.lane.b32.xlu0 %v1620, 64
    %v1635 = vpop.permute.xlu0 %1634
    %v1637 = vmul.f32 %v1619, %v1635
    %1639 = vrot.lane.b32.xlu0 %v1637, 32
    %v1640 = vpop.permute.xlu0 %1639
    %v1642 = vadd.f32 %v1632, %v1640
    %v1643 = vtanh.pop %v1642
    %1645 = vrot.lane.b32.xlu0 %v1643, 64
    %v1646 = vpop.permute.xlu0 %1645
    %v1648 = vmul.f32 %v1619, %v1646
    %v1649 = vld [vmem:[#allocation6] sm:$0x3]
    %v1650 = vxor.u32 %v1612, 2147483648
    %v1651 = vmul.f32 %v1650, 1.442695
    %v1652 = vpow.pop %v1651
    %v1653 = vadd.f32 %v1652, 1.0
    %v1654 = vrcp.pop %v1653
    %v1655 = vmul.f32 1.0, %v1654
    %v1656 = vtanh.pop %v1612
    %v1659 = vunpack.c.l.s4 1983009808
    %v1660 = vunpack.c.0.s8 %v1659
    %v1661 = vlaneseq
    %v1662 = vshrl.u32 %v1661, 7
    %v1663 = vsub.s32 %v1660, %v1662
    %v1664 = vrot.slane %v1649, %v1663
    %1665 = vrot.lane.b32.xlu0 %v1664, 32
    %v1666 = vpop.permute.xlu0 %1665
    %v1668 = vmul.f32 %v1655, %v1666
    %1670 = vrot.lane.b32.xlu0 %v1656, 64
    %v1671 = vpop.permute.xlu0 %1670
    %v1673 = vmul.f32 %v1655, %v1671
    %1675 = vrot.lane.b32.xlu0 %v1673, 32
    %v1676 = vpop.permute.xlu0 %1675
    %v1678 = vadd.f32 %v1668, %v1676
    %v1679 = vtanh.pop %v1678
    %1681 = vrot.lane.b32.xlu0 %v1679, 64
    %v1682 = vpop.permute.xlu0 %1681
    %v1684 = vmul.f32 %v1655, %v1682
    %v1687 = vunpack.c.l.s4 1983009808
    %v1688 = vunpack.c.0.s8 %v1687
    %v1689 = vlaneseq
    %v1690 = vshrl.u32 %v1689, 7
    %v1691 = vsub.s32 %v1688, %v1690
    %v1692 = vrot.slane %v1648, %v1691
    %1693 = vrot.lane.b32.xlu0 %v1692, 32
    %v1694 = vpop.permute.xlu0 %1693
    %1696 = vst.msk [vmem:[#allocation3] sm:$0x3] %vm292, %v1694
    %v1699 = vunpack.c.l.s4 1983009808
    %v1700 = vunpack.c.0.s8 %v1699
    %v1701 = vlaneseq
    %v1702 = vshrl.u32 %v1701, 7
    %v1703 = vsub.s32 %v1700, %v1702
    %v1704 = vrot.slane %v1642, %v1703
    %1705 = vrot.lane.b32.xlu0 %v1704, 96
    %v1706 = vpop.permute.xlu0 %1705
    %1708 = vst.msk [vmem:[#allocation4] sm:$0x3] %vm292, %v1706
    %v1711 = vunpack.c.l.s4 1983009808
    %v1712 = vunpack.c.0.s8 %v1711
    %v1713 = vlaneseq
    %v1714 = vshrl.u32 %v1713, 7
    %v1715 = vsub.s32 %v1712, %v1714
    %v1716 = vrot.slane %v1684, %v1715
    %1717 = vrot.lane.b32.xlu0 %v1716, 32
    %v1718 = vpop.permute.xlu0 %1717
    %1720 = vst.msk [vmem:[#allocation5] sm:$0x3] %vm292, %v1718
    %v1723 = vunpack.c.l.s4 1983009808
    %v1724 = vunpack.c.0.s8 %v1723
    %v1725 = vlaneseq
    %v1726 = vshrl.u32 %v1725, 7
    %v1727 = vsub.s32 %v1724, %v1726
    %v1728 = vrot.slane %v1678, %v1727
    %1729 = vrot.lane.b32.xlu0 %v1728, 96
    %v1730 = vpop.permute.xlu0 %1729
    %1732 = vst.msk [vmem:[#allocation6] sm:$0x3] %vm292, %v1730
    %1733 = vst.msk [vmem:[%s1451] sm:$0x3] %vm292, %v1694
    %1734 = vrot.lane.b32.xlu0 %v1716, 64
    %v1735 = vpop.permute.xlu0 %1734
    %1737 = vst.msk [vmem:[%s1446] sm:$0x3] %vm584, %v1735
    %v1738 = vld [vmem:[%s956] sm:$0x3]
    %v1739 = vld [vmem:[#allocation3] sm:$0x3]
    %v1740 = vld [vmem:[#allocation12] sm:$0xff]
    %v1741 = vld [vmem:[#allocation12 + $0x8] sm:$0xff]
    %v1742 = vld [vmem:[#allocation12 + $0x10] sm:$0xff]
    %v1743 = vld [vmem:[#allocation12 + $0x18] sm:$0xff]
    %v1745 = vsel %vm303, %v1739, 0
    %1747 = vmatprep.subr.mxu0 0.0
    %1748 = vmatpush1.msra.mxu0 %v1740
    %1749 = vmatprep.subr.mxu0 0.0
    %1750 = vmatpush1.msra.mxu0 %v1741
    %1751 = vmatprep.subr.mxu0 0.0
    %1752 = vmatpush1.msra.mxu0 %v1742
    %1753 = vmatprep.subr.mxu0 0.0
    %1754 = vmatpush1.msra.mxu0 %v1743
    %1755 = vmatprep.subr.mxu0 0.0
    %1756 = vmatpush1.msra.mxu0 0.0
    %1757 = vmatprep.subr.mxu0 0.0
    %1758 = vmatpush1.msra.mxu0 0.0
    %1759 = vmatprep.subr.mxu0 0.0
    %1760 = vmatpush1.msra.mxu0 0.0
    %1761 = vmatprep.subr.mxu0 0.0
    %1762 = vmatpush1.msra.mxu0 0.0
    %1763 = vmatprep.subr.mxu0 0.0
    %1764 = vmatpush1.msra.mxu0 0.0
    %1765 = vmatprep.subr.mxu0 0.0
    %1766 = vmatpush1.msra.mxu0 0.0
    %1767 = vmatprep.subr.mxu0 0.0
    %1768 = vmatpush1.msra.mxu0 0.0
    %1769 = vmatprep.subr.mxu0 0.0
    %1770 = vmatpush1.msra.mxu0 0.0
    %1771 = vmatprep.subr.mxu0 0.0
    %1772 = vmatpush1.msra.mxu0 0.0
    %1773 = vmatprep.subr.mxu0 0.0
    %1774 = vmatpush1.msra.mxu0 0.0
    %1775 = vmatprep.subr.mxu0 0.0
    %1776 = vmatpush1.msra.mxu0 0.0
    %1777 = vmatprep.subr.mxu0 0.0
    %1778 = vmatpush1.msra.mxu0 0.0
    %1779 = vmatprep.subr.mxu0 0.0
    %1780 = vmatpush1.msra.mxu0 0.0
    %1781 = vmatprep.subr.mxu0 0.0
    %1782 = vmatpush1.msra.mxu0 0.0
    %1783 = vmatprep.subr.mxu0 0.0
    %1784 = vmatpush1.msra.mxu0 0.0
    %1785 = vmatprep.subr.mxu0 0.0
    %1786 = vmatpush1.msra.mxu0 0.0
    %1787 = vmatprep.subr.mxu0 0.0
    %1788 = vmatpush1.msra.mxu0 0.0
    %1789 = vmatprep.subr.mxu0 0.0
    %1790 = vmatpush1.msra.mxu0 0.0
    %1791 = vmatprep.subr.mxu0 0.0
    %1792 = vmatpush1.msra.mxu0 0.0
    %1793 = vmatprep.subr.mxu0 0.0
    %1794 = vmatpush1.msra.mxu0 0.0
    %1795 = vmatprep.subr.mxu0 0.0
    %1796 = vmatpush1.msra.mxu0 0.0
    %1797 = vmatprep.subr.mxu0 0.0
    %1798 = vmatpush1.msra.mxu0 0.0
    %1799 = vmatprep.subr.mxu0 0.0
    %1800 = vmatpush1.msra.mxu0 0.0
    %1801 = vmatprep.subr.mxu0 0.0
    %1802 = vmatpush1.msra.mxu0 0.0
    %1803 = vmatprep.subr.mxu0 0.0
    %1804 = vmatpush1.msra.mxu0 0.0
    %1805 = vmatprep.subr.mxu0 0.0
    %1806 = vmatpush1.msra.mxu0 0.0
    %1807 = vmatprep.subr.mxu0 0.0
    %1808 = vmatpush1.msra.mxu0 0.0
    %1809 = vmatprep.subr.mxu0 0.0
    %1810 = vmatpush1.msra.mxu0 0.0
    %1811 = vmatprep.mubr.f32.mxu0 0.0
    %1812 = vmatmul.mubr.f32.gmra.mrb[0].mxu0 %v1745
    %v1813 = vpop.f32.mrb[0].mxu0
    %v1814 = vadd.f32 0.0, %v1813
    %v1815 = vpop.f32.mrb[0].mxu0
    %1816 = vdwg.mxu0
    %v1817 = vadd.f32 %v1738, %v1814
    %v1818 = vld [vmem:[%s875 + $0x2] sm:$0x3]
    %v1819 = vld [vmem:[#allocation5] sm:$0x3]
    %v1820 = vld [vmem:[#allocation13] sm:$0xff]
    %v1821 = vld [vmem:[#allocation13 + $0x8] sm:$0xff]
    %v1822 = vld [vmem:[#allocation13 + $0x10] sm:$0xff]
    %v1823 = vld [vmem:[#allocation13 + $0x18] sm:$0xff]
    %v1825 = vsel %vm303, %v1819, 0
    %1827 = vmatprep.subr.mxu0 0.0
    %1828 = vmatpush1.msra.mxu0 %v1820
    %1829 = vmatprep.subr.mxu0 0.0
    %1830 = vmatpush1.msra.mxu0 %v1821
    %1831 = vmatprep.subr.mxu0 0.0
    %1832 = vmatpush1.msra.mxu0 %v1822
    %1833 = vmatprep.subr.mxu0 0.0
    %1834 = vmatpush1.msra.mxu0 %v1823
    %1835 = vmatprep.subr.mxu0 0.0
    %1836 = vmatpush1.msra.mxu0 0.0
    %1837 = vmatprep.subr.mxu0 0.0
    %1838 = vmatpush1.msra.mxu0 0.0
    %1839 = vmatprep.subr.mxu0 0.0
    %1840 = vmatpush1.msra.mxu0 0.0
    %1841 = vmatprep.subr.mxu0 0.0
    %1842 = vmatpush1.msra.mxu0 0.0
    %1843 = vmatprep.subr.mxu0 0.0
    %1844 = vmatpush1.msra.mxu0 0.0
    %1845 = vmatprep.subr.mxu0 0.0
    %1846 = vmatpush1.msra.mxu0 0.0
    %1847 = vmatprep.subr.mxu0 0.0
    %1848 = vmatpush1.msra.mxu0 0.0
    %1849 = vmatprep.subr.mxu0 0.0
    %1850 = vmatpush1.msra.mxu0 0.0
    %1851 = vmatprep.subr.mxu0 0.0
    %1852 = vmatpush1.msra.mxu0 0.0
    %1853 = vmatprep.subr.mxu0 0.0
    %1854 = vmatpush1.msra.mxu0 0.0
    %1855 = vmatprep.subr.mxu0 0.0
    %1856 = vmatpush1.msra.mxu0 0.0
    %1857 = vmatprep.subr.mxu0 0.0
    %1858 = vmatpush1.msra.mxu0 0.0
    %1859 = vmatprep.subr.mxu0 0.0
    %1860 = vmatpush1.msra.mxu0 0.0
    %1861 = vmatprep.subr.mxu0 0.0
    %1862 = vmatpush1.msra.mxu0 0.0
    %1863 = vmatprep.subr.mxu0 0.0
    %1864 = vmatpush1.msra.mxu0 0.0
    %1865 = vmatprep.subr.mxu0 0.0
    %1866 = vmatpush1.msra.mxu0 0.0
    %1867 = vmatprep.subr.mxu0 0.0
    %1868 = vmatpush1.msra.mxu0 0.0
    %1869 = vmatprep.subr.mxu0 0.0
    %1870 = vmatpush1.msra.mxu0 0.0
    %1871 = vmatprep.subr.mxu0 0.0
    %1872 = vmatpush1.msra.mxu0 0.0
    %1873 = vmatprep.subr.mxu0 0.0
    %1874 = vmatpush1.msra.mxu0 0.0
    %1875 = vmatprep.subr.mxu0 0.0
    %1876 = vmatpush1.msra.mxu0 0.0
    %1877 = vmatprep.subr.mxu0 0.0
    %1878 = vmatpush1.msra.mxu0 0.0
    %1879 = vmatprep.subr.mxu0 0.0
    %1880 = vmatpush1.msra.mxu0 0.0
    %1881 = vmatprep.subr.mxu0 0.0
    %1882 = vmatpush1.msra.mxu0 0.0
    %1883 = vmatprep.subr.mxu0 0.0
    %1884 = vmatpush1.msra.mxu0 0.0
    %1885 = vmatprep.subr.mxu0 0.0
    %1886 = vmatpush1.msra.mxu0 0.0
    %1887 = vmatprep.subr.mxu0 0.0
    %1888 = vmatpush1.msra.mxu0 0.0
    %1889 = vmatprep.subr.mxu0 0.0
    %1890 = vmatpush1.msra.mxu0 0.0
    %1891 = vmatprep.mubr.f32.mxu0 0.0
    %1892 = vmatmul.mubr.f32.gmra.mrb[0].mxu0 %v1825
    %v1893 = vpop.f32.mrb[0].mxu0
    %v1894 = vadd.f32 0.0, %v1893
    %v1895 = vpop.f32.mrb[0].mxu0
    %1896 = vdwg.mxu0
    %v1897 = vadd.f32 %v1818, %v1894
    %v1898 = vld [vmem:[#allocation4] sm:$0x3]
    %v1899 = vxor.u32 %v1817, 2147483648
    %v1900 = vmul.f32 %v1899, 1.442695
    %v1901 = vpow.pop %v1900
    %v1902 = vadd.f32 %v1901, 1.0
    %v1903 = vrcp.pop %v1902
    %v1904 = vmul.f32 1.0, %v1903
    %v1905 = vtanh.pop %v1817
    %v1908 = vunpack.c.l.s4 1983009808
    %v1909 = vunpack.c.0.s8 %v1908
    %v1910 = vlaneseq
    %v1911 = vshrl.u32 %v1910, 7
    %v1912 = vsub.s32 %v1909, %v1911
    %v1913 = vrot.slane %v1898, %v1912
    %1914 = vrot.lane.b32.xlu0 %v1913, 32
    %v1915 = vpop.permute.xlu0 %1914
    %v1917 = vmul.f32 %v1904, %v1915
    %1919 = vrot.lane.b32.xlu0 %v1905, 64
    %v1920 = vpop.permute.xlu0 %1919
    %v1922 = vmul.f32 %v1904, %v1920
    %1924 = vrot.lane.b32.xlu0 %v1922, 32
    %v1925 = vpop.permute.xlu0 %1924
    %v1927 = vadd.f32 %v1917, %v1925
    %v1928 = vtanh.pop %v1927
    %1930 = vrot.lane.b32.xlu0 %v1928, 64
    %v1931 = vpop.permute.xlu0 %1930
    %v1933 = vmul.f32 %v1904, %v1931
    %v1934 = vld [vmem:[#allocation6] sm:$0x3]
    %v1935 = vxor.u32 %v1897, 2147483648
    %v1936 = vmul.f32 %v1935, 1.442695
    %v1937 = vpow.pop %v1936
    %v1938 = vadd.f32 %v1937, 1.0
    %v1939 = vrcp.pop %v1938
    %v1940 = vmul.f32 1.0, %v1939
    %v1941 = vtanh.pop %v1897
    %v1944 = vunpack.c.l.s4 1983009808
    %v1945 = vunpack.c.0.s8 %v1944
    %v1946 = vlaneseq
    %v1947 = vshrl.u32 %v1946, 7
    %v1948 = vsub.s32 %v1945, %v1947
    %v1949 = vrot.slane %v1934, %v1948
    %1950 = vrot.lane.b32.xlu0 %v1949, 32
    %v1951 = vpop.permute.xlu0 %1950
    %v1953 = vmul.f32 %v1940, %v1951
    %1955 = vrot.lane.b32.xlu0 %v1941, 64
    %v1956 = vpop.permute.xlu0 %1955
    %v1958 = vmul.f32 %v1940, %v1956
    %1960 = vrot.lane.b32.xlu0 %v1958, 32
    %v1961 = vpop.permute.xlu0 %1960
    %v1963 = vadd.f32 %v1953, %v1961
    %v1964 = vtanh.pop %v1963
    %1966 = vrot.lane.b32.xlu0 %v1964, 64
    %v1967 = vpop.permute.xlu0 %1966
    %v1969 = vmul.f32 %v1940, %v1967
    %v1972 = vunpack.c.l.s4 1983009808
    %v1973 = vunpack.c.0.s8 %v1972
    %v1974 = vlaneseq
    %v1975 = vshrl.u32 %v1974, 7
    %v1976 = vsub.s32 %v1973, %v1975
    %v1977 = vrot.slane %v1933, %v1976
    %1978 = vrot.lane.b32.xlu0 %v1977, 32
    %v1979 = vpop.permute.xlu0 %1978
    %1981 = vst.msk [vmem:[#allocation3] sm:$0x3] %vm292, %v1979
    %v1984 = vunpack.c.l.s4 1983009808
    %v1985 = vunpack.c.0.s8 %v1984
    %v1986 = vlaneseq
    %v1987 = vshrl.u32 %v1986, 7
    %v1988 = vsub.s32 %v1985, %v1987
    %v1989 = vrot.slane %v1927, %v1988
    %1990 = vrot.lane.b32.xlu0 %v1989, 96
    %v1991 = vpop.permute.xlu0 %1990
    %1993 = vst.msk [vmem:[#allocation4] sm:$0x3] %vm292, %v1991
    %v1996 = vunpack.c.l.s4 1983009808
    %v1997 = vunpack.c.0.s8 %v1996
    %v1998 = vlaneseq
    %v1999 = vshrl.u32 %v1998, 7
    %v2000 = vsub.s32 %v1997, %v1999
    %v2001 = vrot.slane %v1969, %v2000
    %2002 = vrot.lane.b32.xlu0 %v2001, 32
    %v2003 = vpop.permute.xlu0 %2002
    %2005 = vst.msk [vmem:[#allocation5] sm:$0x3] %vm292, %v2003
    %v2008 = vunpack.c.l.s4 1983009808
    %v2009 = vunpack.c.0.s8 %v2008
    %v2010 = vlaneseq
    %v2011 = vshrl.u32 %v2010, 7
    %v2012 = vsub.s32 %v2009, %v2011
    %v2013 = vrot.slane %v1963, %v2012
    %2014 = vrot.lane.b32.xlu0 %v2013, 96
    %v2015 = vpop.permute.xlu0 %2014
    %2017 = vst.msk [vmem:[#allocation6] sm:$0x3] %vm292, %v2015
    %2018 = vst.msk [vmem:[%s1162] sm:$0x3] %vm292, %v1979
    %2019 = vrot.lane.b32.xlu0 %v2001, 64
    %v2020 = vpop.permute.xlu0 %2019
    %2022 = vst.msk [vmem:[%s1157] sm:$0x3] %vm584, %v2020
    %v2023 = vld [vmem:[%s667] sm:$0x3]
    %v2024 = vld [vmem:[#allocation3] sm:$0x3]
    %v2025 = vld [vmem:[#allocation12] sm:$0xff]
    %v2026 = vld [vmem:[#allocation12 + $0x8] sm:$0xff]
    %v2027 = vld [vmem:[#allocation12 + $0x10] sm:$0xff]
    %v2028 = vld [vmem:[#allocation12 + $0x18] sm:$0xff]
    %v2030 = vsel %vm303, %v2024, 0
    %2032 = vmatprep.subr.mxu0 0.0
    %2033 = vmatpush1.msra.mxu0 %v2025
    %2034 = vmatprep.subr.mxu0 0.0
    %2035 = vmatpush1.msra.mxu0 %v2026
    %2036 = vmatprep.subr.mxu0 0.0
    %2037 = vmatpush1.msra.mxu0 %v2027
    %2038 = vmatprep.subr.mxu0 0.0
    %2039 = vmatpush1.msra.mxu0 %v2028
    %2040 = vmatprep.subr.mxu0 0.0
    %2041 = vmatpush1.msra.mxu0 0.0
    %2042 = vmatprep.subr.mxu0 0.0
    %2043 = vmatpush1.msra.mxu0 0.0
    %2044 = vmatprep.subr.mxu0 0.0
    %2045 = vmatpush1.msra.mxu0 0.0
    %2046 = vmatprep.subr.mxu0 0.0
    %2047 = vmatpush1.msra.mxu0 0.0
    %2048 = vmatprep.subr.mxu0 0.0
    %2049 = vmatpush1.msra.mxu0 0.0
    %2050 = vmatprep.subr.mxu0 0.0
    %2051 = vmatpush1.msra.mxu0 0.0
    %2052 = vmatprep.subr.mxu0 0.0
    %2053 = vmatpush1.msra.mxu0 0.0
    %2054 = vmatprep.subr.mxu0 0.0
    %2055 = vmatpush1.msra.mxu0 0.0
    %2056 = vmatprep.subr.mxu0 0.0
    %2057 = vmatpush1.msra.mxu0 0.0
    %2058 = vmatprep.subr.mxu0 0.0
    %2059 = vmatpush1.msra.mxu0 0.0
    %2060 = vmatprep.subr.mxu0 0.0
    %2061 = vmatpush1.msra.mxu0 0.0
    %2062 = vmatprep.subr.mxu0 0.0
    %2063 = vmatpush1.msra.mxu0 0.0
    %2064 = vmatprep.subr.mxu0 0.0
    %2065 = vmatpush1.msra.mxu0 0.0
    %2066 = vmatprep.subr.mxu0 0.0
    %2067 = vmatpush1.msra.mxu0 0.0
    %2068 = vmatprep.subr.mxu0 0.0
    %2069 = vmatpush1.msra.mxu0 0.0
    %2070 = vmatprep.subr.mxu0 0.0
    %2071 = vmatpush1.msra.mxu0 0.0
    %2072 = vmatprep.subr.mxu0 0.0
    %2073 = vmatpush1.msra.mxu0 0.0
    %2074 = vmatprep.subr.mxu0 0.0
    %2075 = vmatpush1.msra.mxu0 0.0
    %2076 = vmatprep.subr.mxu0 0.0
    %2077 = vmatpush1.msra.mxu0 0.0
    %2078 = vmatprep.subr.mxu0 0.0
    %2079 = vmatpush1.msra.mxu0 0.0
    %2080 = vmatprep.subr.mxu0 0.0
    %2081 = vmatpush1.msra.mxu0 0.0
    %2082 = vmatprep.subr.mxu0 0.0
    %2083 = vmatpush1.msra.mxu0 0.0
    %2084 = vmatprep.subr.mxu0 0.0
    %2085 = vmatpush1.msra.mxu0 0.0
    %2086 = vmatprep.subr.mxu0 0.0
    %2087 = vmatpush1.msra.mxu0 0.0
    %2088 = vmatprep.subr.mxu0 0.0
    %2089 = vmatpush1.msra.mxu0 0.0
    %2090 = vmatprep.subr.mxu0 0.0
    %2091 = vmatpush1.msra.mxu0 0.0
    %2092 = vmatprep.subr.mxu0 0.0
    %2093 = vmatpush1.msra.mxu0 0.0
    %2094 = vmatprep.subr.mxu0 0.0
    %2095 = vmatpush1.msra.mxu0 0.0
    %2096 = vmatprep.mubr.f32.mxu0 0.0
    %2097 = vmatmul.mubr.f32.gmra.mrb[0].mxu0 %v2030
    %v2098 = vpop.f32.mrb[0].mxu0
    %v2099 = vadd.f32 0.0, %v2098
    %v2100 = vpop.f32.mrb[0].mxu0
    %2101 = vdwg.mxu0
    %v2102 = vadd.f32 %v2023, %v2099
    %v2103 = vld [vmem:[%s586 + $0x2] sm:$0x3]
    %v2104 = vld [vmem:[#allocation5] sm:$0x3]
    %v2105 = vld [vmem:[#allocation13] sm:$0xff]
    %v2106 = vld [vmem:[#allocation13 + $0x8] sm:$0xff]
    %v2107 = vld [vmem:[#allocation13 + $0x10] sm:$0xff]
    %v2108 = vld [vmem:[#allocation13 + $0x18] sm:$0xff]
    %v2110 = vsel %vm303, %v2104, 0
    %2112 = vmatprep.subr.mxu0 0.0
    %2113 = vmatpush1.msra.mxu0 %v2105
    %2114 = vmatprep.subr.mxu0 0.0
    %2115 = vmatpush1.msra.mxu0 %v2106
    %2116 = vmatprep.subr.mxu0 0.0
    %2117 = vmatpush1.msra.mxu0 %v2107
    %2118 = vmatprep.subr.mxu0 0.0
    %2119 = vmatpush1.msra.mxu0 %v2108
    %2120 = vmatprep.subr.mxu0 0.0
    %2121 = vmatpush1.msra.mxu0 0.0
    %2122 = vmatprep.subr.mxu0 0.0
    %2123 = vmatpush1.msra.mxu0 0.0
    %2124 = vmatprep.subr.mxu0 0.0
    %2125 = vmatpush1.msra.mxu0 0.0
    %2126 = vmatprep.subr.mxu0 0.0
    %2127 = vmatpush1.msra.mxu0 0.0
    %2128 = vmatprep.subr.mxu0 0.0
    %2129 = vmatpush1.msra.mxu0 0.0
    %2130 = vmatprep.subr.mxu0 0.0
    %2131 = vmatpush1.msra.mxu0 0.0
    %2132 = vmatprep.subr.mxu0 0.0
    %2133 = vmatpush1.msra.mxu0 0.0
    %2134 = vmatprep.subr.mxu0 0.0
    %2135 = vmatpush1.msra.mxu0 0.0
    %2136 = vmatprep.subr.mxu0 0.0
    %2137 = vmatpush1.msra.mxu0 0.0
    %2138 = vmatprep.subr.mxu0 0.0
    %2139 = vmatpush1.msra.mxu0 0.0
    %2140 = vmatprep.subr.mxu0 0.0
    %2141 = vmatpush1.msra.mxu0 0.0
    %2142 = vmatprep.subr.mxu0 0.0
    %2143 = vmatpush1.msra.mxu0 0.0
    %2144 = vmatprep.subr.mxu0 0.0
    %2145 = vmatpush1.msra.mxu0 0.0
    %2146 = vmatprep.subr.mxu0 0.0
    %2147 = vmatpush1.msra.mxu0 0.0
    %2148 = vmatprep.subr.mxu0 0.0
    %2149 = vmatpush1.msra.mxu0 0.0
    %2150 = vmatprep.subr.mxu0 0.0
    %2151 = vmatpush1.msra.mxu0 0.0
    %2152 = vmatprep.subr.mxu0 0.0
    %2153 = vmatpush1.msra.mxu0 0.0
    %2154 = vmatprep.subr.mxu0 0.0
    %2155 = vmatpush1.msra.mxu0 0.0
    %2156 = vmatprep.subr.mxu0 0.0
    %2157 = vmatpush1.msra.mxu0 0.0
    %2158 = vmatprep.subr.mxu0 0.0
    %2159 = vmatpush1.msra.mxu0 0.0
    %2160 = vmatprep.subr.mxu0 0.0
    %2161 = vmatpush1.msra.mxu0 0.0
    %2162 = vmatprep.subr.mxu0 0.0
    %2163 = vmatpush1.msra.mxu0 0.0
    %2164 = vmatprep.subr.mxu0 0.0
    %2165 = vmatpush1.msra.mxu0 0.0
    %2166 = vmatprep.subr.mxu0 0.0
    %2167 = vmatpush1.msra.mxu0 0.0
    %2168 = vmatprep.subr.mxu0 0.0
    %2169 = vmatpush1.msra.mxu0 0.0
    %2170 = vmatprep.subr.mxu0 0.0
    %2171 = vmatpush1.msra.mxu0 0.0
    %2172 = vmatprep.subr.mxu0 0.0
    %2173 = vmatpush1.msra.mxu0 0.0
    %2174 = vmatprep.subr.mxu0 0.0
    %2175 = vmatpush1.msra.mxu0 0.0
    %2176 = vmatprep.mubr.f32.mxu0 0.0
    %2177 = vmatmul.mubr.f32.gmra.mrb[0].mxu0 %v2110
    %v2178 = vpop.f32.mrb[0].mxu0
    %v2179 = vadd.f32 0.0, %v2178
    %v2180 = vpop.f32.mrb[0].mxu0
    %2181 = vdwg.mxu0
    %v2182 = vadd.f32 %v2103, %v2179
    %v2183 = vld [vmem:[#allocation4] sm:$0x3]
    %v2184 = vxor.u32 %v2102, 2147483648
    %v2185 = vmul.f32 %v2184, 1.442695
    %v2186 = vpow.pop %v2185
    %v2187 = vadd.f32 %v2186, 1.0
    %v2188 = vrcp.pop %v2187
    %v2189 = vmul.f32 1.0, %v2188
    %v2190 = vtanh.pop %v2102
    %v2193 = vunpack.c.l.s4 1983009808
    %v2194 = vunpack.c.0.s8 %v2193
    %v2195 = vlaneseq
    %v2196 = vshrl.u32 %v2195, 7
    %v2197 = vsub.s32 %v2194, %v2196
    %v2198 = vrot.slane %v2183, %v2197
    %2199 = vrot.lane.b32.xlu0 %v2198, 32
    %v2200 = vpop.permute.xlu0 %2199
    %v2202 = vmul.f32 %v2189, %v2200
    %2204 = vrot.lane.b32.xlu0 %v2190, 64
    %v2205 = vpop.permute.xlu0 %2204
    %v2207 = vmul.f32 %v2189, %v2205
    %2209 = vrot.lane.b32.xlu0 %v2207, 32
    %v2210 = vpop.permute.xlu0 %2209
    %v2212 = vadd.f32 %v2202, %v2210
    %v2213 = vtanh.pop %v2212
    %2215 = vrot.lane.b32.xlu0 %v2213, 64
    %v2216 = vpop.permute.xlu0 %2215
    %v2218 = vmul.f32 %v2189, %v2216
    %v2219 = vld [vmem:[#allocation6] sm:$0x3]
    %v2220 = vxor.u32 %v2182, 2147483648
    %v2221 = vmul.f32 %v2220, 1.442695
    %v2222 = vpow.pop %v2221
    %v2223 = vadd.f32 %v2222, 1.0
    %v2224 = vrcp.pop %v2223
    %v2225 = vmul.f32 1.0, %v2224
    %v2226 = vtanh.pop %v2182
    %v2229 = vunpack.c.l.s4 1983009808
    %v2230 = vunpack.c.0.s8 %v2229
    %v2231 = vlaneseq
    %v2232 = vshrl.u32 %v2231, 7
    %v2233 = vsub.s32 %v2230, %v2232
    %v2234 = vrot.slane %v2219, %v2233
    %2235 = vrot.lane.b32.xlu0 %v2234, 32
    %v2236 = vpop.permute.xlu0 %2235
    %v2238 = vmul.f32 %v2225, %v2236
    %2240 = vrot.lane.b32.xlu0 %v2226, 64
    %v2241 = vpop.permute.xlu0 %2240
    %v2243 = vmul.f32 %v2225, %v2241
    %2245 = vrot.lane.b32.xlu0 %v2243, 32
    %v2246 = vpop.permute.xlu0 %2245
    %v2248 = vadd.f32 %v2238, %v2246
    %v2249 = vtanh.pop %v2248
    %2251 = vrot.lane.b32.xlu0 %v2249, 64
    %v2252 = vpop.permute.xlu0 %2251
    %v2254 = vmul.f32 %v2225, %v2252
    %v2257 = vunpack.c.l.s4 1983009808
    %v2258 = vunpack.c.0.s8 %v2257
    %v2259 = vlaneseq
    %v2260 = vshrl.u32 %v2259, 7
    %v2261 = vsub.s32 %v2258, %v2260
    %v2262 = vrot.slane %v2218, %v2261
    %2263 = vrot.lane.b32.xlu0 %v2262, 32
    %v2264 = vpop.permute.xlu0 %2263
    %2266 = vst.msk [vmem:[#allocation3] sm:$0x3] %vm292, %v2264
    %v2269 = vunpack.c.l.s4 1983009808
    %v2270 = vunpack.c.0.s8 %v2269
    %v2271 = vlaneseq
    %v2272 = vshrl.u32 %v2271, 7
    %v2273 = vsub.s32 %v2270, %v2272
    %v2274 = vrot.slane %v2212, %v2273
    %2275 = vrot.lane.b32.xlu0 %v2274, 96
    %v2276 = vpop.permute.xlu0 %2275
    %2278 = vst.msk [vmem:[#allocation4] sm:$0x3] %vm292, %v2276
    %v2281 = vunpack.c.l.s4 1983009808
    %v2282 = vunpack.c.0.s8 %v2281
    %v2283 = vlaneseq
    %v2284 = vshrl.u32 %v2283, 7
    %v2285 = vsub.s32 %v2282, %v2284
    %v2286 = vrot.slane %v2254, %v2285
    %2287 = vrot.lane.b32.xlu0 %v2286, 32
    %v2288 = vpop.permute.xlu0 %2287
    %2290 = vst.msk [vmem:[#allocation5] sm:$0x3] %vm292, %v2288
    %v2293 = vunpack.c.l.s4 1983009808
    %v2294 = vunpack.c.0.s8 %v2293
    %v2295 = vlaneseq
    %v2296 = vshrl.u32 %v2295, 7
    %v2297 = vsub.s32 %v2294, %v2296
    %v2298 = vrot.slane %v2248, %v2297
    %2299 = vrot.lane.b32.xlu0 %v2298, 96
    %v2300 = vpop.permute.xlu0 %2299
    %2302 = vst.msk [vmem:[#allocation6] sm:$0x3] %vm292, %v2300
    %2303 = vst.msk [vmem:[%s873] sm:$0x3] %vm292, %v2264
    %2304 = vrot.lane.b32.xlu0 %v2286, 64
    %v2305 = vpop.permute.xlu0 %2304
    %2307 = vst.msk [vmem:[%s868] sm:$0x3] %vm584, %v2305
    %v2308 = vld [vmem:[%s378] sm:$0x3]
    %v2309 = vld [vmem:[#allocation3] sm:$0x3]
    %v2310 = vld [vmem:[#allocation12] sm:$0xff]
    %v2311 = vld [vmem:[#allocation12 + $0x8] sm:$0xff]
    %v2312 = vld [vmem:[#allocation12 + $0x10] sm:$0xff]
    %v2313 = vld [vmem:[#allocation12 + $0x18] sm:$0xff]
    %v2315 = vsel %vm303, %v2309, 0
    %2317 = vmatprep.subr.mxu0 0.0
    %2318 = vmatpush1.msra.mxu0 %v2310
    %2319 = vmatprep.subr.mxu0 0.0
    %2320 = vmatpush1.msra.mxu0 %v2311
    %2321 = vmatprep.subr.mxu0 0.0
    %2322 = vmatpush1.msra.mxu0 %v2312
    %2323 = vmatprep.subr.mxu0 0.0
    %2324 = vmatpush1.msra.mxu0 %v2313
    %2325 = vmatprep.subr.mxu0 0.0
    %2326 = vmatpush1.msra.mxu0 0.0
    %2327 = vmatprep.subr.mxu0 0.0
    %2328 = vmatpush1.msra.mxu0 0.0
    %2329 = vmatprep.subr.mxu0 0.0
    %2330 = vmatpush1.msra.mxu0 0.0
    %2331 = vmatprep.subr.mxu0 0.0
    %2332 = vmatpush1.msra.mxu0 0.0
    %2333 = vmatprep.subr.mxu0 0.0
    %2334 = vmatpush1.msra.mxu0 0.0
    %2335 = vmatprep.subr.mxu0 0.0
    %2336 = vmatpush1.msra.mxu0 0.0
    %2337 = vmatprep.subr.mxu0 0.0
    %2338 = vmatpush1.msra.mxu0 0.0
    %2339 = vmatprep.subr.mxu0 0.0
    %2340 = vmatpush1.msra.mxu0 0.0
    %2341 = vmatprep.subr.mxu0 0.0
    %2342 = vmatpush1.msra.mxu0 0.0
    %2343 = vmatprep.subr.mxu0 0.0
    %2344 = vmatpush1.msra.mxu0 0.0
    %2345 = vmatprep.subr.mxu0 0.0
    %2346 = vmatpush1.msra.mxu0 0.0
    %2347 = vmatprep.subr.mxu0 0.0
    %2348 = vmatpush1.msra.mxu0 0.0
    %2349 = vmatprep.subr.mxu0 0.0
    %2350 = vmatpush1.msra.mxu0 0.0
    %2351 = vmatprep.subr.mxu0 0.0
    %2352 = vmatpush1.msra.mxu0 0.0
    %2353 = vmatprep.subr.mxu0 0.0
    %2354 = vmatpush1.msra.mxu0 0.0
    %2355 = vmatprep.subr.mxu0 0.0
    %2356 = vmatpush1.msra.mxu0 0.0
    %2357 = vmatprep.subr.mxu0 0.0
    %2358 = vmatpush1.msra.mxu0 0.0
    %2359 = vmatprep.subr.mxu0 0.0
    %2360 = vmatpush1.msra.mxu0 0.0
    %2361 = vmatprep.subr.mxu0 0.0
    %2362 = vmatpush1.msra.mxu0 0.0
    %2363 = vmatprep.subr.mxu0 0.0
    %2364 = vmatpush1.msra.mxu0 0.0
    %2365 = vmatprep.subr.mxu0 0.0
    %2366 = vmatpush1.msra.mxu0 0.0
    %2367 = vmatprep.subr.mxu0 0.0
    %2368 = vmatpush1.msra.mxu0 0.0
    %2369 = vmatprep.subr.mxu0 0.0
    %2370 = vmatpush1.msra.mxu0 0.0
    %2371 = vmatprep.subr.mxu0 0.0
    %2372 = vmatpush1.msra.mxu0 0.0
    %2373 = vmatprep.subr.mxu0 0.0
    %2374 = vmatpush1.msra.mxu0 0.0
    %2375 = vmatprep.subr.mxu0 0.0
    %2376 = vmatpush1.msra.mxu0 0.0
    %2377 = vmatprep.subr.mxu0 0.0
    %2378 = vmatpush1.msra.mxu0 0.0
    %2379 = vmatprep.subr.mxu0 0.0
    %2380 = vmatpush1.msra.mxu0 0.0
    %2381 = vmatprep.mubr.f32.mxu0 0.0
    %2382 = vmatmul.mubr.f32.gmra.mrb[0].mxu0 %v2315
    %v2383 = vpop.f32.mrb[0].mxu0
    %v2384 = vadd.f32 0.0, %v2383
    %v2385 = vpop.f32.mrb[0].mxu0
    %2386 = vdwg.mxu0
    %v2387 = vadd.f32 %v2308, %v2384
    %v2388 = vld [vmem:[#allocation2 + $0x2] sm:$0x3]
    %v2389 = vld [vmem:[#allocation5] sm:$0x3]
    %v2390 = vld [vmem:[#allocation13] sm:$0xff]
    %v2391 = vld [vmem:[#allocation13 + $0x8] sm:$0xff]
    %v2392 = vld [vmem:[#allocation13 + $0x10] sm:$0xff]
    %v2393 = vld [vmem:[#allocation13 + $0x18] sm:$0xff]
    %v2395 = vsel %vm303, %v2389, 0
    %2397 = vmatprep.subr.mxu0 0.0
    %2398 = vmatpush1.msra.mxu0 %v2390
    %2399 = vmatprep.subr.mxu0 0.0
    %2400 = vmatpush1.msra.mxu0 %v2391
    %2401 = vmatprep.subr.mxu0 0.0
    %2402 = vmatpush1.msra.mxu0 %v2392
    %2403 = vmatprep.subr.mxu0 0.0
    %2404 = vmatpush1.msra.mxu0 %v2393
    %2405 = vmatprep.subr.mxu0 0.0
    %2406 = vmatpush1.msra.mxu0 0.0
    %2407 = vmatprep.subr.mxu0 0.0
    %2408 = vmatpush1.msra.mxu0 0.0
    %2409 = vmatprep.subr.mxu0 0.0
    %2410 = vmatpush1.msra.mxu0 0.0
    %2411 = vmatprep.subr.mxu0 0.0
    %2412 = vmatpush1.msra.mxu0 0.0
    %2413 = vmatprep.subr.mxu0 0.0
    %2414 = vmatpush1.msra.mxu0 0.0
    %2415 = vmatprep.subr.mxu0 0.0
    %2416 = vmatpush1.msra.mxu0 0.0
    %2417 = vmatprep.subr.mxu0 0.0
    %2418 = vmatpush1.msra.mxu0 0.0
    %2419 = vmatprep.subr.mxu0 0.0
    %2420 = vmatpush1.msra.mxu0 0.0
    %2421 = vmatprep.subr.mxu0 0.0
    %2422 = vmatpush1.msra.mxu0 0.0
    %2423 = vmatprep.subr.mxu0 0.0
    %2424 = vmatpush1.msra.mxu0 0.0
    %2425 = vmatprep.subr.mxu0 0.0
    %2426 = vmatpush1.msra.mxu0 0.0
    %2427 = vmatprep.subr.mxu0 0.0
    %2428 = vmatpush1.msra.mxu0 0.0
    %2429 = vmatprep.subr.mxu0 0.0
    %2430 = vmatpush1.msra.mxu0 0.0
    %2431 = vmatprep.subr.mxu0 0.0
    %2432 = vmatpush1.msra.mxu0 0.0
    %2433 = vmatprep.subr.mxu0 0.0
    %2434 = vmatpush1.msra.mxu0 0.0
    %2435 = vmatprep.subr.mxu0 0.0
    %2436 = vmatpush1.msra.mxu0 0.0
    %2437 = vmatprep.subr.mxu0 0.0
    %2438 = vmatpush1.msra.mxu0 0.0
    %2439 = vmatprep.subr.mxu0 0.0
    %2440 = vmatpush1.msra.mxu0 0.0
    %2441 = vmatprep.subr.mxu0 0.0
    %2442 = vmatpush1.msra.mxu0 0.0
    %2443 = vmatprep.subr.mxu0 0.0
    %2444 = vmatpush1.msra.mxu0 0.0
    %2445 = vmatprep.subr.mxu0 0.0
    %2446 = vmatpush1.msra.mxu0 0.0
    %2447 = vmatprep.subr.mxu0 0.0
    %2448 = vmatpush1.msra.mxu0 0.0
    %2449 = vmatprep.subr.mxu0 0.0
    %2450 = vmatpush1.msra.mxu0 0.0
    %2451 = vmatprep.subr.mxu0 0.0
    %2452 = vmatpush1.msra.mxu0 0.0
    %2453 = vmatprep.subr.mxu0 0.0
    %2454 = vmatpush1.msra.mxu0 0.0
    %2455 = vmatprep.subr.mxu0 0.0
    %2456 = vmatpush1.msra.mxu0 0.0
    %2457 = vmatprep.subr.mxu0 0.0
    %2458 = vmatpush1.msra.mxu0 0.0
    %2459 = vmatprep.subr.mxu0 0.0
    %2460 = vmatpush1.msra.mxu0 0.0
    %2461 = vmatprep.mubr.f32.mxu0 0.0
    %2462 = vmatmul.mubr.f32.gmra.mrb[0].mxu0 %v2395
    %v2463 = vpop.f32.mrb[0].mxu0
    %v2464 = vadd.f32 0.0, %v2463
    %v2465 = vpop.f32.mrb[0].mxu0
    %2466 = vdwg.mxu0
    %v2467 = vadd.f32 %v2388, %v2464
    %v2468 = vld [vmem:[#allocation4] sm:$0x3]
    %v2469 = vxor.u32 %v2387, 2147483648
    %v2470 = vmul.f32 %v2469, 1.442695
    %v2471 = vpow.pop %v2470
    %v2472 = vadd.f32 %v2471, 1.0
    %v2473 = vrcp.pop %v2472
    %v2474 = vmul.f32 1.0, %v2473
    %v2475 = vtanh.pop %v2387
    %v2478 = vunpack.c.l.s4 1983009808
    %v2479 = vunpack.c.0.s8 %v2478
    %v2480 = vlaneseq
    %v2481 = vshrl.u32 %v2480, 7
    %v2482 = vsub.s32 %v2479, %v2481
    %v2483 = vrot.slane %v2468, %v2482
    %2484 = vrot.lane.b32.xlu0 %v2483, 32
    %v2485 = vpop.permute.xlu0 %2484
    %v2487 = vmul.f32 %v2474, %v2485
    %2489 = vrot.lane.b32.xlu0 %v2475, 64
    %v2490 = vpop.permute.xlu0 %2489
    %v2492 = vmul.f32 %v2474, %v2490
    %2494 = vrot.lane.b32.xlu0 %v2492, 32
    %v2495 = vpop.permute.xlu0 %2494
    %v2497 = vadd.f32 %v2487, %v2495
    %v2498 = vtanh.pop %v2497
    %2500 = vrot.lane.b32.xlu0 %v2498, 64
    %v2501 = vpop.permute.xlu0 %2500
    %v2503 = vmul.f32 %v2474, %v2501
    %v2504 = vld [vmem:[#allocation6] sm:$0x3]
    %v2505 = vxor.u32 %v2467, 2147483648
    %v2506 = vmul.f32 %v2505, 1.442695
    %v2507 = vpow.pop %v2506
    %v2508 = vadd.f32 %v2507, 1.0
    %v2509 = vrcp.pop %v2508
    %v2510 = vmul.f32 1.0, %v2509
    %v2511 = vtanh.pop %v2467
    %v2514 = vunpack.c.l.s4 1983009808
    %v2515 = vunpack.c.0.s8 %v2514
    %v2516 = vlaneseq
    %v2517 = vshrl.u32 %v2516, 7
    %v2518 = vsub.s32 %v2515, %v2517
    %v2519 = vrot.slane %v2504, %v2518
    %2520 = vrot.lane.b32.xlu0 %v2519, 32
    %v2521 = vpop.permute.xlu0 %2520
    %v2523 = vmul.f32 %v2510, %v2521
    %2525 = vrot.lane.b32.xlu0 %v2511, 64
    %v2526 = vpop.permute.xlu0 %2525
    %v2528 = vmul.f32 %v2510, %v2526
    %2530 = vrot.lane.b32.xlu0 %v2528, 32
    %v2531 = vpop.permute.xlu0 %2530
    %v2533 = vadd.f32 %v2523, %v2531
    %v2534 = vtanh.pop %v2533
    %2536 = vrot.lane.b32.xlu0 %v2534, 64
    %v2537 = vpop.permute.xlu0 %2536
    %v2539 = vmul.f32 %v2510, %v2537
    %v2542 = vunpack.c.l.s4 1983009808
    %v2543 = vunpack.c.0.s8 %v2542
    %v2544 = vlaneseq
    %v2545 = vshrl.u32 %v2544, 7
    %v2546 = vsub.s32 %v2543, %v2545
    %v2547 = vrot.slane %v2503, %v2546
    %2548 = vrot.lane.b32.xlu0 %v2547, 32
    %v2549 = vpop.permute.xlu0 %2548
    %2551 = vst.msk [vmem:[#allocation3] sm:$0x3] %vm292, %v2549
    %v2554 = vunpack.c.l.s4 1983009808
    %v2555 = vunpack.c.0.s8 %v2554
    %v2556 = vlaneseq
    %v2557 = vshrl.u32 %v2556, 7
    %v2558 = vsub.s32 %v2555, %v2557
    %v2559 = vrot.slane %v2497, %v2558
    %2560 = vrot.lane.b32.xlu0 %v2559, 96
    %v2561 = vpop.permute.xlu0 %2560
    %2563 = vst.msk [vmem:[#allocation4] sm:$0x3] %vm292, %v2561
    %v2566 = vunpack.c.l.s4 1983009808
    %v2567 = vunpack.c.0.s8 %v2566
    %v2568 = vlaneseq
    %v2569 = vshrl.u32 %v2568, 7
    %v2570 = vsub.s32 %v2567, %v2569
    %v2571 = vrot.slane %v2539, %v2570
    %2572 = vrot.lane.b32.xlu0 %v2571, 32
    %v2573 = vpop.permute.xlu0 %2572
    %2575 = vst.msk [vmem:[#allocation5] sm:$0x3] %vm292, %v2573
    %v2578 = vunpack.c.l.s4 1983009808
    %v2579 = vunpack.c.0.s8 %v2578
    %v2580 = vlaneseq
    %v2581 = vshrl.u32 %v2580, 7
    %v2582 = vsub.s32 %v2579, %v2581
    %v2583 = vrot.slane %v2533, %v2582
    %2584 = vrot.lane.b32.xlu0 %v2583, 96
    %v2585 = vpop.permute.xlu0 %2584
    %2587 = vst.msk [vmem:[#allocation6] sm:$0x3] %vm292, %v2585
    %2588 = vst.msk [vmem:[%s583] sm:$0x3] %vm292, %v2549
    %2589 = vrot.lane.b32.xlu0 %v2571, 64
    %v2590 = vpop.permute.xlu0 %2589
    %2592 = vst.msk [vmem:[#allocation15] sm:$0x3] %vm584, %v2590
    // Predicated region
    $region38: #{tpu_custom_call.1} parent=1 // pred_check
      _
    $region39: #{tpu_custom_call.1} parent=1 // pred_check_branch
      %2594 = sbr.rel (0) target = $region41
    $region40: #{tpu_custom_call.1} parent=1 // pred_region
      %s2596 = ssub.s32 256, 256
      %2597 = vsyncadd [#allocation9], %s2596
      %s2598 = sshll.u32 [#allocation15], 4
      %s2599 = int_to_ptr.vmem [resolvable:$true] %s2598
      %2604 = dma.vmem_to_hbm [thread:$0]  %s2599, 256, %s5, [#allocation9], 32, 32, 2
    $region41: #{tpu_custom_call.1} parent=1 // pred_fallthru
      _
    // Predicated region
    $region42: #{tpu_custom_call.1} parent=1 // pred_check
      _
    $region43: #{tpu_custom_call.1} parent=1 // pred_check_branch
      %2606 = sbr.rel (0) target = $region45
    $region44: #{tpu_custom_call.1} parent=1 // pred_region
      %2607 = dma.done [#allocation9], 256
    $region45: #{tpu_custom_call.1} parent=1 // pred_fallthru
      _
    %2608 = vsyncpa [#allocation8], 1
    %2609 = vsyncpa [#allocation11], 1
    %2610 = vsyncpa [#allocation14], 1
    %2611 = vsyncpa [#allocation9], 1

</llo_original>
